<compile_context>
chip_gen: v7x
topology: tpu7x:2x2x1
jax: 0.10.0
libtpu: 0.0.40
codegen_flags: <defaults>
</compile_context>

<pallas_src>
import functools
import math

import jax
import jax.numpy as jnp
from jax.experimental import pallas as pl
from jax.experimental.pallas import tpu as pltpu


# ----------------------------------------------------------------------------
# Fused decoder-layer kernel (one batch element per grid step)
# ----------------------------------------------------------------------------
# Packed vector rows (vec_ref, shape (15, D)):
#   0 ln1_g  1 ln1_b  2 ln2_g  3 ln2_b  4 ln3_g  5 ln3_b
#   6 sa_bq  7 sa_bk  8 sa_bv  9 sa_bo
#  10 ca_bq 11 ca_bk 12 ca_bv 13 ca_bo
#  14 ffn_b2
def _decoder_layer_kernel(
        tgt_ref, tgt_mask_ref, mem_ref, mem_mask_ref,
        vec_ref,
        sa_wqkv_ref, sa_wo_ref,
        ca_wq_ref, ca_wkv_ref, ca_wo_ref,
        ffn_w1_ref, ffn_b1_ref, ffn_w2_ref,
        o_ref, *, num_heads, eps):
    H = num_heads
    Lq, D = tgt_ref.shape[1], tgt_ref.shape[2]
    dk = D // H
    scale = 1.0 / math.sqrt(dk)

    def layer_norm(x, g, b):                      # x (L,D), g/b (1,D), all f32
        mu = jnp.mean(x, axis=-1, keepdims=True)
        var = jnp.mean(jnp.square(x - mu), axis=-1, keepdims=True)
        return (x - mu) * jax.lax.rsqrt(var + eps) * g + b

    def mm(x, w):                                 # bf16 MXU matmul, f32 accum
        return jnp.dot(x.astype(jnp.bfloat16), w,
                       preferred_element_type=jnp.float32)

    def attention(q, k, v, keep):
        # q (Lq,D), k/v (Lkv,D) f32 (bias already added); keep (Lq or 1, Lkv) bool.
        # Per-head contraction is inherent; heads are static lane slices,
        # result is re-interleaved to (Lq, D) for the single Wo matmul.
        ctx_heads = []
        for h in range(H):
            sl = slice(h * dk, (h + 1) * dk)
            qh = q[:, sl].astype(jnp.bfloat16)
            kh = k[:, sl].astype(jnp.bfloat16)
            vh = v[:, sl].astype(jnp.bfloat16)
            s = jnp.einsum("qd,kd->qk", qh, kh,
                           preferred_element_type=jnp.float32) * scale
            s = jnp.where(keep, s, jnp.float32(-1e30))
            m = jnp.max(s, axis=-1, keepdims=True)
            e = jnp.exp(s - m)
            den = jnp.sum(e, axis=-1, keepdims=True)
            p = e / den
            p = jnp.where(keep, p, 0.0)           # masked_fill(mask==0, 0.0)
            ctx_heads.append(
                jnp.einsum("qk,kd->qd", p.astype(jnp.bfloat16), vh,
                           preferred_element_type=jnp.float32))
        return jnp.concatenate(ctx_heads, axis=-1)        # (Lq, D)

    vecs = vec_ref[...]                           # (15, D) f32
    tgt = tgt_ref[0]                              # (Lq, D)
    mem = mem_ref[0]                              # (Lk, D)
    keep_tgt = tgt_mask_ref[0] > 0.5              # (Lq, Lq)
    keep_mem = mem_mask_ref[0] > 0.5              # (1, Lk)

    # ---- self-attention block:  x = tgt + SelfAttn(LN1(tgt)) -----------------
    xn = layer_norm(tgt, vecs[0:1], vecs[1:2])
    qkv = mm(xn, sa_wqkv_ref[...])                         # (Lq, 3D), one matmul
    q = qkv[:, 0 * D:1 * D] + vecs[6:7]
    k = qkv[:, 1 * D:2 * D] + vecs[7:8]
    v = qkv[:, 2 * D:3 * D] + vecs[8:9]
    ctx = attention(q, k, v, keep_tgt)
    x = tgt + mm(ctx, sa_wo_ref[...]) + vecs[9:10]         # residual folded in

    # ---- source-attention block:  x = x + SrcAttn(LN2(x), memory) ------------
    xn = layer_norm(x, vecs[2:3], vecs[3:4])
    q = mm(xn, ca_wq_ref[...]) + vecs[10:11]               # (Lq, D)
    kv = mm(mem, ca_wkv_ref[...])                          # (Lk, 2D), one matmul
    k = kv[:, 0 * D:1 * D] + vecs[11:12]
    v = kv[:, 1 * D:2 * D] + vecs[12:13]
    ctx = attention(q, k, v, keep_mem)
    x = x + mm(ctx, ca_wo_ref[...]) + vecs[13:14]          # residual folded in

    # ---- feed-forward block:  x = x + FFN(LN3(x)) -----------------------------
    xn = layer_norm(x, vecs[4:5], vecs[5:6])
    h1 = jnp.maximum(mm(xn, ffn_w1_ref[...]) + ffn_b1_ref[...], 0.0)   # ReLU
    x = x + mm(h1, ffn_w2_ref[...]) + vecs[14:15]          # residual folded in

    o_ref[0] = x.astype(o_ref.dtype)


# ----------------------------------------------------------------------------
# One-time weight re-layout (call at parameter-load time, NOT per forward)
# ----------------------------------------------------------------------------
def prepare_params(params, compute_dtype=jnp.bfloat16):
    """Fuse QKV / KV weights, pack all D-width vectors, cast weights to bf16."""
    sa, ca, ffn = params["self_attn"], params["src_attn"], params["ffn"]
    vecs = jnp.concatenate(
        [params["ln1_g"], params["ln1_b"],
         params["ln2_g"], params["ln2_b"],
         params["ln3_g"], params["ln3_b"],
         sa["bq"], sa["bk"], sa["bv"], sa["bo"],
         ca["bq"], ca["bk"], ca["bv"], ca["bo"],
         ffn["b2"]], axis=0).astype(jnp.float32)                  # (15, D)
    return {
        "vecs": vecs,
        "sa_wqkv": jnp.concatenate([sa["wq"], sa["wk"], sa["wv"]],
                                   axis=1).astype(compute_dtype),  # (D, 3D)
        "sa_wo": sa["wo"].astype(compute_dtype),                   # (D, D)
        "ca_wq": ca["wq"].astype(compute_dtype),                   # (D, D)
        "ca_wkv": jnp.concatenate([ca["wk"], ca["wv"]],
                                  axis=1).astype(compute_dtype),   # (D, 2D)
        "ca_wo": ca["wo"].astype(compute_dtype),                   # (D, D)
        "ffn_w1": ffn["w1"].astype(compute_dtype),                 # (D, Dff)
        "ffn_b1": ffn["b1"].astype(jnp.float32),                   # (1, Dff)
        "ffn_w2": ffn["w2"].astype(compute_dtype),                 # (Dff, D)
    }


# ----------------------------------------------------------------------------
# Wrapper: single pallas_call
# ----------------------------------------------------------------------------
def decoder_layer_forward(tgt, tgt_mask, memory, memory_mask, prepped,
                          num_heads, eps=1e-12):
    """DecoderLayer.forward (normalize_before=True, concat_after=False, cache=None)."""
    B, Lq, D = tgt.shape
    Lk = memory.shape[1]
    Lqm = tgt_mask.shape[1]
    Lmm = memory_mask.shape[1]

    def batched(shape):
        nd = len(shape)
        return pl.BlockSpec(shape, lambda b, _nd=nd: (b,) + (0,) * (_nd - 1))

    def shared(shape):
        nd = len(shape)
        return pl.BlockSpec(shape, lambda b, _nd=nd: (0,) * _nd)

    kernel = functools.partial(_decoder_layer_kernel, num_heads=num_heads, eps=eps)

    out = pl.pallas_call(
        kernel,
        out_shape=jax.ShapeDtypeStruct((B, Lq, D), tgt.dtype),
        grid=(B,),
        in_specs=[
            batched((1, Lq, D)),                    # tgt
            batched((1, Lqm, Lq)),                  # tgt_mask
            batched((1, Lk, D)),                    # memory
            batched((1, Lmm, Lk)),                  # memory_mask
            shared(prepped["vecs"].shape),          # packed LN params + biases
            shared(prepped["sa_wqkv"].shape),       # self-attn fused Wqkv (D,3D)
            shared(prepped["sa_wo"].shape),         # self-attn Wo (D,D)
            shared(prepped["ca_wq"].shape),         # src-attn Wq (D,D)
            shared(prepped["ca_wkv"].shape),        # src-attn fused Wkv (D,2D)
            shared(prepped["ca_wo"].shape),         # src-attn Wo (D,D)
            shared(prepped["ffn_w1"].shape),        # FFN W1 (D,Dff)
            shared(prepped["ffn_b1"].shape),        # FFN b1 (1,Dff)
            shared(prepped["ffn_w2"].shape),        # FFN W2 (Dff,D)
        ],
        out_specs=batched((1, Lq, D)),
        compiler_params=pltpu.CompilerParams(
            dimension_semantics=("parallel",)),     # v7x: shard batch over 2 TCs
    )(tgt, tgt_mask, memory, memory_mask,
      prepped["vecs"], prepped["sa_wqkv"], prepped["sa_wo"],
      prepped["ca_wq"], prepped["ca_wkv"], prepped["ca_wo"],
      prepped["ffn_w1"], prepped["ffn_b1"], prepped["ffn_w2"])

    return out, tgt_mask, memory, memory_mask


# ----------------------------------------------------------------------------
# Pure-JAX reference (original weight layout).  matmul_dtype=bf16 mirrors the
# kernel's numerics exactly; matmul_dtype=f32 is the full-precision module.
# ----------------------------------------------------------------------------
def _ref_forward(tgt, tgt_mask, memory, memory_mask, prm, H,
                 matmul_dtype=jnp.float32, eps=1e-12):
    def mm(a, b):
        return jnp.matmul(a.astype(matmul_dtype), b.astype(matmul_dtype),
                          preferred_element_type=jnp.float32)

    def ln(x, g, b):
        mu = jnp.mean(x, axis=-1, keepdims=True)
        var = jnp.mean((x - mu) ** 2, axis=-1, keepdims=True)
        return (x - mu) * jax.lax.rsqrt(var + eps) * g + b

    def mha(q, k, v, mask, p):
        B, Lq, D = q.shape
        Lk = k.shape[1]
        dk = D // H
        qp = (mm(q, p["wq"]) + p["bq"]).reshape(B, Lq, H, dk)
        kp = (mm(k, p["wk"]) + p["bk"]).reshape(B, Lk, H, dk)
        vp = (mm(v, p["wv"]) + p["bv"]).reshape(B, Lk, H, dk)
        s = jnp.einsum("bqhd,bkhd->bhqk", qp.astype(matmul_dtype),
                       kp.astype(matmul_dtype),
                       preferred_element_type=jnp.float32) / math.sqrt(dk)
        keep = (mask > 0.5)[:, None, :, :]
        s = jnp.where(keep, s, -1e30)
        attn = jax.nn.softmax(s, axis=-1)
        attn = jnp.where(keep, attn, 0.0)
        ctx = jnp.einsum("bhqk,bkhd->bqhd", attn.astype(matmul_dtype),
                         vp.astype(matmul_dtype),
                         preferred_element_type=jnp.float32).reshape(B, Lq, D)
        return mm(ctx, p["wo"]) + p["bo"]

    xn = ln(tgt, prm["ln1_g"], prm["ln1_b"])
    x = tgt + mha(xn, xn, xn, tgt_mask, prm["self_attn"])
    xn = ln(x, prm["ln2_g"], prm["ln2_b"])
    x = x + mha(xn, memory, memory, memory_mask, prm["src_attn"])
    xn = ln(x, prm["ln3_g"], prm["ln3_b"])
    h = jnp.maximum(mm(xn, prm["ffn"]["w1"]) + prm["ffn"]["b1"], 0.0)
    return x + mm(h, prm["ffn"]["w2"]) + prm["ffn"]["b2"]


# ----------------------------------------------------------------------------
# Main
# ----------------------------------------------------------------------------
if __name__ == "__main__":
    # D=128 keeps every matmul N dimension and the output store lane-dense.
    B, L_OUT, L_IN, D, H, DFF = 2, 8, 16, 128, 4, 256

    key = jax.random.PRNGKey(0)
    ks = iter(jax.random.split(key, 40))

    def lin(kk, din, dout, scale=0.1):
        return scale * jax.random.normal(kk, (din, dout), jnp.float32)

    def attn_params():
        return {
            "wq": lin(next(ks), D, D), "bq": 0.01 * jax.random.normal(next(ks), (1, D)),
            "wk": lin(next(ks), D, D), "bk": 0.01 * jax.random.normal(next(ks), (1, D)),
            "wv": lin(next(ks), D, D), "bv": 0.01 * jax.random.normal(next(ks), (1, D)),
            "wo": lin(next(ks), D, D), "bo": 0.01 * jax.random.normal(next(ks), (1, D)),
        }

    params = {
        "ln1_g": jnp.ones((1, D), jnp.float32), "ln1_b": jnp.zeros((1, D), jnp.float32),
        "ln2_g": jnp.ones((1, D), jnp.float32), "ln2_b": jnp.zeros((1, D), jnp.float32),
        "ln3_g": jnp.ones((1, D), jnp.float32), "ln3_b": jnp.zeros((1, D), jnp.float32),
        "self_attn": attn_params(),
        "src_attn": attn_params(),
        "ffn": {
            "w1": lin(next(ks), D, DFF), "b1": 0.01 * jax.random.normal(next(ks), (1, DFF)),
            "w2": lin(next(ks), DFF, D), "b2": 0.01 * jax.random.normal(next(ks), (1, D)),
        },
    }

    tgt = jax.random.normal(next(ks), (B, L_OUT, D), jnp.float32)
    memory = jax.random.normal(next(ks), (B, L_IN, D), jnp.float32)

    # causal self-attention mask (B, L_OUT, L_OUT) and memory mask (B, 1, L_IN)
    tgt_mask = jnp.broadcast_to(
        jnp.tril(jnp.ones((L_OUT, L_OUT), jnp.float32))[None], (B, L_OUT, L_OUT))
    mem_valid = jnp.array([L_IN, L_IN - 3])  # second batch has 3 padded frames
    memory_mask = (jnp.arange(L_IN)[None, :] < mem_valid[:, None]).astype(jnp.float32)
    memory_mask = memory_mask[:, None, :]

    # Weight re-layout done ONCE (parameter-load time), not inside the forward.
    prepped = prepare_params(params)

    out, out_tgt_mask, out_mem, out_mem_mask = decoder_layer_forward(
        tgt, tgt_mask, memory, memory_mask, prepped, H)
    out = jax.block_until_ready(out)
    assert out.shape == (B, L_OUT, D)

    # Tight check vs a reference that mirrors the kernel's bf16-matmul numerics.
    ref_bf16 = _ref_forward(tgt, tgt_mask, memory, memory_mask, params, H,
                            matmul_dtype=jnp.bfloat16)
    assert jnp.allclose(out, ref_bf16, atol=5e-3, rtol=5e-3), \
        "mismatch vs bf16-matmul JAX reference"

    # Loose sanity check vs the full-f32 module semantics (bf16 MXU rounding
    # is the only difference).
    ref_f32 = _ref_forward(tgt, tgt_mask, memory, memory_mask, params, H,
                           matmul_dtype=jnp.float32)
    assert jnp.allclose(out, ref_f32, atol=1.5e-1, rtol=1e-1), \
        "mismatch vs f32 JAX reference"

    print("KERNEL_OK")
</pallas_src>

<mosaic_0001>
module attributes {stable_mosaic.version = 11 : i64} {
  func.func @_decoder_layer_kernel(%arg0: i32, %arg1: memref<1x8x128xf32, #tpu.memory_space<vmem>>, %arg2: memref<1x8x8xf32, #tpu.memory_space<vmem>>, %arg3: memref<1x16x128xf32, #tpu.memory_space<vmem>>, %arg4: memref<1x1x16xf32, #tpu.memory_space<vmem>>, %arg5: memref<15x128xf32, #tpu.memory_space<vmem>>, %arg6: memref<128x384xbf16, #tpu.memory_space<vmem>>, %arg7: memref<128x128xbf16, #tpu.memory_space<vmem>>, %arg8: memref<128x128xbf16, #tpu.memory_space<vmem>>, %arg9: memref<128x256xbf16, #tpu.memory_space<vmem>>, %arg10: memref<128x128xbf16, #tpu.memory_space<vmem>>, %arg11: memref<128x256xbf16, #tpu.memory_space<vmem>>, %arg12: memref<1x256xf32, #tpu.memory_space<vmem>>, %arg13: memref<256x128xbf16, #tpu.memory_space<vmem>>, %arg14: memref<1x8x128xf32, #tpu.memory_space<vmem>>) attributes {dimension_semantics = [#tpu.dimension_semantics<parallel>], iteration_bounds = array<i64: 2>, scalar_prefetch = 0 : i64, scratch_operands = 0 : i64, tpu.core_type = #tpu.core_type<tc>, window_params = [{transform_indices = @transform_0, window_bounds = array<i64: 1, 8, 128>}, {transform_indices = @transform_1, window_bounds = array<i64: 1, 8, 8>}, {transform_indices = @transform_2, window_bounds = array<i64: 1, 16, 128>}, {transform_indices = @transform_3, window_bounds = array<i64: 1, 1, 16>}, {pipeline_mode = #tpu.pipeline_mode<synchronous>, transform_indices = @transform_4, window_bounds = array<i64: 15, 128>}, {pipeline_mode = #tpu.pipeline_mode<synchronous>, transform_indices = @transform_5, window_bounds = array<i64: 128, 384>}, {pipeline_mode = #tpu.pipeline_mode<synchronous>, transform_indices = @transform_6, window_bounds = array<i64: 128, 128>}, {pipeline_mode = #tpu.pipeline_mode<synchronous>, transform_indices = @transform_7, window_bounds = array<i64: 128, 128>}, {pipeline_mode = #tpu.pipeline_mode<synchronous>, transform_indices = @transform_8, window_bounds = array<i64: 128, 256>}, {pipeline_mode = #tpu.pipeline_mode<synchronous>, transform_indices = @transform_9, window_bounds = array<i64: 128, 128>}, {pipeline_mode = #tpu.pipeline_mode<synchronous>, transform_indices = @transform_10, window_bounds = array<i64: 128, 256>}, {pipeline_mode = #tpu.pipeline_mode<synchronous>, transform_indices = @transform_11, window_bounds = array<i64: 1, 256>}, {pipeline_mode = #tpu.pipeline_mode<synchronous>, transform_indices = @transform_12, window_bounds = array<i64: 256, 128>}, {transform_indices = @transform_13, window_bounds = array<i64: 1, 8, 128>}]} {
    %c0 = arith.constant 0 : index
    %c0_0 = arith.constant 0 : index
    %0 = vector.load %arg5[%c0, %c0_0] : memref<15x128xf32, #tpu.memory_space<vmem>>, vector<15x128xf32>
    %c0_1 = arith.constant 0 : index
    %c0_2 = arith.constant 0 : index
    %c0_3 = arith.constant 0 : index
    %1 = vector.load %arg1[%c0_1, %c0_2, %c0_3] : memref<1x8x128xf32, #tpu.memory_space<vmem>>, vector<1x8x128xf32>
    %2 = vector.shape_cast %1 : vector<1x8x128xf32> to vector<8x128xf32>
    %c0_4 = arith.constant 0 : index
    %c0_5 = arith.constant 0 : index
    %c0_6 = arith.constant 0 : index
    %3 = vector.load %arg3[%c0_4, %c0_5, %c0_6] : memref<1x16x128xf32, #tpu.memory_space<vmem>>, vector<1x16x128xf32>
    %4 = vector.shape_cast %3 : vector<1x16x128xf32> to vector<16x128xf32>
    %c0_7 = arith.constant 0 : index
    %c0_8 = arith.constant 0 : index
    %c0_9 = arith.constant 0 : index
    %5 = vector.load %arg2[%c0_7, %c0_8, %c0_9] : memref<1x8x8xf32, #tpu.memory_space<vmem>>, vector<1x8x8xf32>
    %6 = vector.shape_cast %5 : vector<1x8x8xf32> to vector<8x8xf32>
    %cst = arith.constant 5.000000e-01 : f32
    %7 = vector.broadcast %cst : f32 to vector<8x8xf32>
    %8 = arith.cmpf ogt, %6, %7 : vector<8x8xf32>
    %c0_10 = arith.constant 0 : index
    %c0_11 = arith.constant 0 : index
    %c0_12 = arith.constant 0 : index
    %9 = vector.load %arg4[%c0_10, %c0_11, %c0_12] : memref<1x1x16xf32, #tpu.memory_space<vmem>>, vector<1x1x16xf32>
    %10 = vector.shape_cast %9 : vector<1x1x16xf32> to vector<1x16xf32>
    %cst_13 = arith.constant 5.000000e-01 : f32
    %11 = vector.broadcast %cst_13 : f32 to vector<1x16xf32>
    %12 = arith.cmpf ogt, %10, %11 : vector<1x16xf32>
    %13 = vector.extract_strided_slice %0 {offsets = [0, 0], sizes = [1, 128], strides = [1, 1]} : vector<15x128xf32> to vector<1x128xf32>
    %14 = vector.extract_strided_slice %0 {offsets = [1, 0], sizes = [1, 128], strides = [1, 1]} : vector<15x128xf32> to vector<1x128xf32>
    %cst_14 = arith.constant dense<0.000000e+00> : vector<8xf32>
    %15 = vector.multi_reduction <add>, %2, %cst_14 [1] : vector<8x128xf32> to vector<8xf32>
    %16 = vector.shape_cast %15 : vector<8xf32> to vector<8x1xf32>
    %cst_15 = arith.constant 1.280000e+02 : f32
    %17 = vector.broadcast %cst_15 : f32 to vector<8x1xf32>
    %18 = arith.divf %16, %17 : vector<8x1xf32>
    %19 = vector.broadcast %18 : vector<8x1xf32> to vector<8x128xf32>
    %20 = arith.subf %2, %19 : vector<8x128xf32>
    %21 = arith.mulf %20, %20 : vector<8x128xf32>
    %cst_16 = arith.constant dense<0.000000e+00> : vector<8xf32>
    %22 = vector.multi_reduction <add>, %21, %cst_16 [1] : vector<8x128xf32> to vector<8xf32>
    %23 = vector.shape_cast %22 : vector<8xf32> to vector<8x1xf32>
    %cst_17 = arith.constant 1.280000e+02 : f32
    %24 = vector.broadcast %cst_17 : f32 to vector<8x1xf32>
    %25 = arith.divf %23, %24 : vector<8x1xf32>
    %26 = vector.broadcast %18 : vector<8x1xf32> to vector<8x128xf32>
    %27 = arith.subf %2, %26 : vector<8x128xf32>
    %cst_18 = arith.constant 9.99999996E-13 : f32
    %28 = vector.broadcast %cst_18 : f32 to vector<8x1xf32>
    %29 = arith.addf %25, %28 : vector<8x1xf32>
    %30 = math.rsqrt %29 : vector<8x1xf32>
    %31 = vector.broadcast %30 : vector<8x1xf32> to vector<8x128xf32>
    %32 = arith.mulf %27, %31 : vector<8x128xf32>
    %33 = vector.broadcast %13 : vector<1x128xf32> to vector<8x128xf32>
    %34 = arith.mulf %32, %33 : vector<8x128xf32>
    %35 = vector.broadcast %14 : vector<1x128xf32> to vector<8x128xf32>
    %36 = arith.addf %34, %35 : vector<8x128xf32>
    %c0_19 = arith.constant 0 : index
    %c0_20 = arith.constant 0 : index
    %37 = vector.load %arg6[%c0_19, %c0_20] : memref<128x384xbf16, #tpu.memory_space<vmem>>, vector<128x384xbf16>
    %38 = arith.truncf %36 : vector<8x128xf32> to vector<8x128xbf16>
    %cst_21 = arith.constant dense<0.000000e+00> : vector<8x384xf32>
    %39 = tpu.matmul %38, %37, %cst_21 {dimension_numbers = #tpu.dot_dimension_numbers<[1], [0], [0], [1], [0, 0, 1, 1], [], []>} : vector<8x128xbf16>, vector<128x384xbf16>, vector<8x384xf32> -> vector<8x384xf32>
    %40 = vector.extract_strided_slice %39 {offsets = [0, 0], sizes = [8, 128], strides = [1, 1]} : vector<8x384xf32> to vector<8x128xf32>
    %41 = vector.extract_strided_slice %0 {offsets = [6, 0], sizes = [1, 128], strides = [1, 1]} : vector<15x128xf32> to vector<1x128xf32>
    %42 = vector.broadcast %41 : vector<1x128xf32> to vector<8x128xf32>
    %43 = arith.addf %40, %42 : vector<8x128xf32>
    %44 = vector.extract_strided_slice %39 {offsets = [0, 128], sizes = [8, 128], strides = [1, 1]} : vector<8x384xf32> to vector<8x128xf32>
    %45 = vector.extract_strided_slice %0 {offsets = [7, 0], sizes = [1, 128], strides = [1, 1]} : vector<15x128xf32> to vector<1x128xf32>
    %46 = vector.broadcast %45 : vector<1x128xf32> to vector<8x128xf32>
    %47 = arith.addf %44, %46 : vector<8x128xf32>
    %48 = vector.extract_strided_slice %39 {offsets = [0, 256], sizes = [8, 128], strides = [1, 1]} : vector<8x384xf32> to vector<8x128xf32>
    %49 = vector.extract_strided_slice %0 {offsets = [8, 0], sizes = [1, 128], strides = [1, 1]} : vector<15x128xf32> to vector<1x128xf32>
    %50 = vector.broadcast %49 : vector<1x128xf32> to vector<8x128xf32>
    %51 = arith.addf %48, %50 : vector<8x128xf32>
    %52 = vector.extract_strided_slice %43 {offsets = [0, 0], sizes = [8, 32], strides = [1, 1]} : vector<8x128xf32> to vector<8x32xf32>
    %53 = arith.truncf %52 : vector<8x32xf32> to vector<8x32xbf16>
    %54 = vector.extract_strided_slice %47 {offsets = [0, 0], sizes = [8, 32], strides = [1, 1]} : vector<8x128xf32> to vector<8x32xf32>
    %55 = arith.truncf %54 : vector<8x32xf32> to vector<8x32xbf16>
    %56 = vector.extract_strided_slice %51 {offsets = [0, 0], sizes = [8, 32], strides = [1, 1]} : vector<8x128xf32> to vector<8x32xf32>
    %57 = arith.truncf %56 : vector<8x32xf32> to vector<8x32xbf16>
    "tpu.trace_start"() <{level = 10 : i32, message = "qd,kd->qk"}> : () -> ()
    %cst_22 = arith.constant dense<0.000000e+00> : vector<8x8xf32>
    %58 = tpu.matmul %53, %55, %cst_22 {dimension_numbers = #tpu.dot_dimension_numbers<[1], [1], [0], [0], [0, 0, 1, 0], [], []>} : vector<8x32xbf16>, vector<8x32xbf16>, vector<8x8xf32> -> vector<8x8xf32>
    "tpu.trace_stop"() : () -> ()
    %cst_23 = arith.constant 0.176776692 : f32
    %59 = vector.broadcast %cst_23 : f32 to vector<8x8xf32>
    %60 = arith.mulf %58, %59 : vector<8x8xf32>
    %cst_24 = arith.constant -1.000000e+30 : f32
    %61 = vector.broadcast %cst_24 : f32 to vector<8x8xf32>
    %62 = arith.select %8, %60, %61 : vector<8x8xi1>, vector<8x8xf32>
    %cst_25 = arith.constant dense<0xFF800000> : vector<8xf32>
    %63 = vector.multi_reduction <maximumf>, %62, %cst_25 [1] : vector<8x8xf32> to vector<8xf32>
    %64 = vector.shape_cast %63 : vector<8xf32> to vector<8x1xf32>
    %65 = vector.broadcast %64 : vector<8x1xf32> to vector<8x8xf32>
    %66 = arith.subf %62, %65 : vector<8x8xf32>
    %67 = math.exp %66 : vector<8x8xf32>
    %cst_26 = arith.constant dense<0.000000e+00> : vector<8xf32>
    %68 = vector.multi_reduction <add>, %67, %cst_26 [1] : vector<8x8xf32> to vector<8xf32>
    %69 = vector.shape_cast %68 : vector<8xf32> to vector<8x1xf32>
    %70 = vector.broadcast %69 : vector<8x1xf32> to vector<8x8xf32>
    %71 = arith.divf %67, %70 : vector<8x8xf32>
    %cst_27 = arith.constant 0.000000e+00 : f32
    %72 = vector.broadcast %cst_27 : f32 to vector<8x8xf32>
    %73 = arith.select %8, %71, %72 : vector<8x8xi1>, vector<8x8xf32>
    %74 = arith.truncf %73 : vector<8x8xf32> to vector<8x8xbf16>
    "tpu.trace_start"() <{level = 10 : i32, message = "qk,kd->qd"}> : () -> ()
    %cst_28 = arith.constant dense<0.000000e+00> : vector<8x32xf32>
    %75 = tpu.matmul %74, %57, %cst_28 {dimension_numbers = #tpu.dot_dimension_numbers<[1], [0], [0], [1], [0, 0, 1, 1], [], []>} : vector<8x8xbf16>, vector<8x32xbf16>, vector<8x32xf32> -> vector<8x32xf32>
    "tpu.trace_stop"() : () -> ()
    %76 = vector.extract_strided_slice %43 {offsets = [0, 32], sizes = [8, 32], strides = [1, 1]} : vector<8x128xf32> to vector<8x32xf32>
    %77 = arith.truncf %76 : vector<8x32xf32> to vector<8x32xbf16>
    %78 = vector.extract_strided_slice %47 {offsets = [0, 32], sizes = [8, 32], strides = [1, 1]} : vector<8x128xf32> to vector<8x32xf32>
    %79 = arith.truncf %78 : vector<8x32xf32> to vector<8x32xbf16>
    %80 = vector.extract_strided_slice %51 {offsets = [0, 32], sizes = [8, 32], strides = [1, 1]} : vector<8x128xf32> to vector<8x32xf32>
    %81 = arith.truncf %80 : vector<8x32xf32> to vector<8x32xbf16>
    "tpu.trace_start"() <{level = 10 : i32, message = "qd,kd->qk"}> : () -> ()
    %cst_29 = arith.constant dense<0.000000e+00> : vector<8x8xf32>
    %82 = tpu.matmul %77, %79, %cst_29 {dimension_numbers = #tpu.dot_dimension_numbers<[1], [1], [0], [0], [0, 0, 1, 0], [], []>} : vector<8x32xbf16>, vector<8x32xbf16>, vector<8x8xf32> -> vector<8x8xf32>
    "tpu.trace_stop"() : () -> ()
    %cst_30 = arith.constant 0.176776692 : f32
    %83 = vector.broadcast %cst_30 : f32 to vector<8x8xf32>
    %84 = arith.mulf %82, %83 : vector<8x8xf32>
    %cst_31 = arith.constant -1.000000e+30 : f32
    %85 = vector.broadcast %cst_31 : f32 to vector<8x8xf32>
    %86 = arith.select %8, %84, %85 : vector<8x8xi1>, vector<8x8xf32>
    %cst_32 = arith.constant dense<0xFF800000> : vector<8xf32>
    %87 = vector.multi_reduction <maximumf>, %86, %cst_32 [1] : vector<8x8xf32> to vector<8xf32>
    %88 = vector.shape_cast %87 : vector<8xf32> to vector<8x1xf32>
    %89 = vector.broadcast %88 : vector<8x1xf32> to vector<8x8xf32>
    %90 = arith.subf %86, %89 : vector<8x8xf32>
    %91 = math.exp %90 : vector<8x8xf32>
    %cst_33 = arith.constant dense<0.000000e+00> : vector<8xf32>
    %92 = vector.multi_reduction <add>, %91, %cst_33 [1] : vector<8x8xf32> to vector<8xf32>
    %93 = vector.shape_cast %92 : vector<8xf32> to vector<8x1xf32>
    %94 = vector.broadcast %93 : vector<8x1xf32> to vector<8x8xf32>
    %95 = arith.divf %91, %94 : vector<8x8xf32>
    %cst_34 = arith.constant 0.000000e+00 : f32
    %96 = vector.broadcast %cst_34 : f32 to vector<8x8xf32>
    %97 = arith.select %8, %95, %96 : vector<8x8xi1>, vector<8x8xf32>
    %98 = arith.truncf %97 : vector<8x8xf32> to vector<8x8xbf16>
    "tpu.trace_start"() <{level = 10 : i32, message = "qk,kd->qd"}> : () -> ()
    %cst_35 = arith.constant dense<0.000000e+00> : vector<8x32xf32>
    %99 = tpu.matmul %98, %81, %cst_35 {dimension_numbers = #tpu.dot_dimension_numbers<[1], [0], [0], [1], [0, 0, 1, 1], [], []>} : vector<8x8xbf16>, vector<8x32xbf16>, vector<8x32xf32> -> vector<8x32xf32>
    "tpu.trace_stop"() : () -> ()
    %100 = vector.extract_strided_slice %43 {offsets = [0, 64], sizes = [8, 32], strides = [1, 1]} : vector<8x128xf32> to vector<8x32xf32>
    %101 = arith.truncf %100 : vector<8x32xf32> to vector<8x32xbf16>
    %102 = vector.extract_strided_slice %47 {offsets = [0, 64], sizes = [8, 32], strides = [1, 1]} : vector<8x128xf32> to vector<8x32xf32>
    %103 = arith.truncf %102 : vector<8x32xf32> to vector<8x32xbf16>
    %104 = vector.extract_strided_slice %51 {offsets = [0, 64], sizes = [8, 32], strides = [1, 1]} : vector<8x128xf32> to vector<8x32xf32>
    %105 = arith.truncf %104 : vector<8x32xf32> to vector<8x32xbf16>
    "tpu.trace_start"() <{level = 10 : i32, message = "qd,kd->qk"}> : () -> ()
    %cst_36 = arith.constant dense<0.000000e+00> : vector<8x8xf32>
    %106 = tpu.matmul %101, %103, %cst_36 {dimension_numbers = #tpu.dot_dimension_numbers<[1], [1], [0], [0], [0, 0, 1, 0], [], []>} : vector<8x32xbf16>, vector<8x32xbf16>, vector<8x8xf32> -> vector<8x8xf32>
    "tpu.trace_stop"() : () -> ()
    %cst_37 = arith.constant 0.176776692 : f32
    %107 = vector.broadcast %cst_37 : f32 to vector<8x8xf32>
    %108 = arith.mulf %106, %107 : vector<8x8xf32>
    %cst_38 = arith.constant -1.000000e+30 : f32
    %109 = vector.broadcast %cst_38 : f32 to vector<8x8xf32>
    %110 = arith.select %8, %108, %109 : vector<8x8xi1>, vector<8x8xf32>
    %cst_39 = arith.constant dense<0xFF800000> : vector<8xf32>
    %111 = vector.multi_reduction <maximumf>, %110, %cst_39 [1] : vector<8x8xf32> to vector<8xf32>
    %112 = vector.shape_cast %111 : vector<8xf32> to vector<8x1xf32>
    %113 = vector.broadcast %112 : vector<8x1xf32> to vector<8x8xf32>
    %114 = arith.subf %110, %113 : vector<8x8xf32>
    %115 = math.exp %114 : vector<8x8xf32>
    %cst_40 = arith.constant dense<0.000000e+00> : vector<8xf32>
    %116 = vector.multi_reduction <add>, %115, %cst_40 [1] : vector<8x8xf32> to vector<8xf32>
    %117 = vector.shape_cast %116 : vector<8xf32> to vector<8x1xf32>
    %118 = vector.broadcast %117 : vector<8x1xf32> to vector<8x8xf32>
    %119 = arith.divf %115, %118 : vector<8x8xf32>
    %cst_41 = arith.constant 0.000000e+00 : f32
    %120 = vector.broadcast %cst_41 : f32 to vector<8x8xf32>
    %121 = arith.select %8, %119, %120 : vector<8x8xi1>, vector<8x8xf32>
    %122 = arith.truncf %121 : vector<8x8xf32> to vector<8x8xbf16>
    "tpu.trace_start"() <{level = 10 : i32, message = "qk,kd->qd"}> : () -> ()
    %cst_42 = arith.constant dense<0.000000e+00> : vector<8x32xf32>
    %123 = tpu.matmul %122, %105, %cst_42 {dimension_numbers = #tpu.dot_dimension_numbers<[1], [0], [0], [1], [0, 0, 1, 1], [], []>} : vector<8x8xbf16>, vector<8x32xbf16>, vector<8x32xf32> -> vector<8x32xf32>
    "tpu.trace_stop"() : () -> ()
    %124 = vector.extract_strided_slice %43 {offsets = [0, 96], sizes = [8, 32], strides = [1, 1]} : vector<8x128xf32> to vector<8x32xf32>
    %125 = arith.truncf %124 : vector<8x32xf32> to vector<8x32xbf16>
    %126 = vector.extract_strided_slice %47 {offsets = [0, 96], sizes = [8, 32], strides = [1, 1]} : vector<8x128xf32> to vector<8x32xf32>
    %127 = arith.truncf %126 : vector<8x32xf32> to vector<8x32xbf16>
    %128 = vector.extract_strided_slice %51 {offsets = [0, 96], sizes = [8, 32], strides = [1, 1]} : vector<8x128xf32> to vector<8x32xf32>
    %129 = arith.truncf %128 : vector<8x32xf32> to vector<8x32xbf16>
    "tpu.trace_start"() <{level = 10 : i32, message = "qd,kd->qk"}> : () -> ()
    %cst_43 = arith.constant dense<0.000000e+00> : vector<8x8xf32>
    %130 = tpu.matmul %125, %127, %cst_43 {dimension_numbers = #tpu.dot_dimension_numbers<[1], [1], [0], [0], [0, 0, 1, 0], [], []>} : vector<8x32xbf16>, vector<8x32xbf16>, vector<8x8xf32> -> vector<8x8xf32>
    "tpu.trace_stop"() : () -> ()
    %cst_44 = arith.constant 0.176776692 : f32
    %131 = vector.broadcast %cst_44 : f32 to vector<8x8xf32>
    %132 = arith.mulf %130, %131 : vector<8x8xf32>
    %cst_45 = arith.constant -1.000000e+30 : f32
    %133 = vector.broadcast %cst_45 : f32 to vector<8x8xf32>
    %134 = arith.select %8, %132, %133 : vector<8x8xi1>, vector<8x8xf32>
    %cst_46 = arith.constant dense<0xFF800000> : vector<8xf32>
    %135 = vector.multi_reduction <maximumf>, %134, %cst_46 [1] : vector<8x8xf32> to vector<8xf32>
    %136 = vector.shape_cast %135 : vector<8xf32> to vector<8x1xf32>
    %137 = vector.broadcast %136 : vector<8x1xf32> to vector<8x8xf32>
    %138 = arith.subf %134, %137 : vector<8x8xf32>
    %139 = math.exp %138 : vector<8x8xf32>
    %cst_47 = arith.constant dense<0.000000e+00> : vector<8xf32>
    %140 = vector.multi_reduction <add>, %139, %cst_47 [1] : vector<8x8xf32> to vector<8xf32>
    %141 = vector.shape_cast %140 : vector<8xf32> to vector<8x1xf32>
    %142 = vector.broadcast %141 : vector<8x1xf32> to vector<8x8xf32>
    %143 = arith.divf %139, %142 : vector<8x8xf32>
    %cst_48 = arith.constant 0.000000e+00 : f32
    %144 = vector.broadcast %cst_48 : f32 to vector<8x8xf32>
    %145 = arith.select %8, %143, %144 : vector<8x8xi1>, vector<8x8xf32>
    %146 = arith.truncf %145 : vector<8x8xf32> to vector<8x8xbf16>
    "tpu.trace_start"() <{level = 10 : i32, message = "qk,kd->qd"}> : () -> ()
    %cst_49 = arith.constant dense<0.000000e+00> : vector<8x32xf32>
    %147 = tpu.matmul %146, %129, %cst_49 {dimension_numbers = #tpu.dot_dimension_numbers<[1], [0], [0], [1], [0, 0, 1, 1], [], []>} : vector<8x8xbf16>, vector<8x32xbf16>, vector<8x32xf32> -> vector<8x32xf32>
    "tpu.trace_stop"() : () -> ()
    %148 = tpu.concatenate %75, %99, %123, %147 in 1 : vector<8x32xf32>, vector<8x32xf32>, vector<8x32xf32>, vector<8x32xf32> -> vector<8x128xf32>
    %c0_50 = arith.constant 0 : index
    %c0_51 = arith.constant 0 : index
    %149 = vector.load %arg7[%c0_50, %c0_51] : memref<128x128xbf16, #tpu.memory_space<vmem>>, vector<128x128xbf16>
    %150 = arith.truncf %148 : vector<8x128xf32> to vector<8x128xbf16>
    %cst_52 = arith.constant dense<0.000000e+00> : vector<8x128xf32>
    %151 = tpu.matmul %150, %149, %cst_52 {dimension_numbers = #tpu.dot_dimension_numbers<[1], [0], [0], [1], [0, 0, 1, 1], [], []>} : vector<8x128xbf16>, vector<128x128xbf16>, vector<8x128xf32> -> vector<8x128xf32>
    %152 = arith.addf %2, %151 : vector<8x128xf32>
    %153 = vector.extract_strided_slice %0 {offsets = [9, 0], sizes = [1, 128], strides = [1, 1]} : vector<15x128xf32> to vector<1x128xf32>
    %154 = vector.broadcast %153 : vector<1x128xf32> to vector<8x128xf32>
    %155 = arith.addf %152, %154 : vector<8x128xf32>
    %156 = vector.extract_strided_slice %0 {offsets = [2, 0], sizes = [1, 128], strides = [1, 1]} : vector<15x128xf32> to vector<1x128xf32>
    %157 = vector.extract_strided_slice %0 {offsets = [3, 0], sizes = [1, 128], strides = [1, 1]} : vector<15x128xf32> to vector<1x128xf32>
    %cst_53 = arith.constant dense<0.000000e+00> : vector<8xf32>
    %158 = vector.multi_reduction <add>, %155, %cst_53 [1] : vector<8x128xf32> to vector<8xf32>
    %159 = vector.shape_cast %158 : vector<8xf32> to vector<8x1xf32>
    %cst_54 = arith.constant 1.280000e+02 : f32
    %160 = vector.broadcast %cst_54 : f32 to vector<8x1xf32>
    %161 = arith.divf %159, %160 : vector<8x1xf32>
    %162 = vector.broadcast %161 : vector<8x1xf32> to vector<8x128xf32>
    %163 = arith.subf %155, %162 : vector<8x128xf32>
    %164 = arith.mulf %163, %163 : vector<8x128xf32>
    %cst_55 = arith.constant dense<0.000000e+00> : vector<8xf32>
    %165 = vector.multi_reduction <add>, %164, %cst_55 [1] : vector<8x128xf32> to vector<8xf32>
    %166 = vector.shape_cast %165 : vector<8xf32> to vector<8x1xf32>
    %cst_56 = arith.constant 1.280000e+02 : f32
    %167 = vector.broadcast %cst_56 : f32 to vector<8x1xf32>
    %168 = arith.divf %166, %167 : vector<8x1xf32>
    %169 = vector.broadcast %161 : vector<8x1xf32> to vector<8x128xf32>
    %170 = arith.subf %155, %169 : vector<8x128xf32>
    %cst_57 = arith.constant 9.99999996E-13 : f32
    %171 = vector.broadcast %cst_57 : f32 to vector<8x1xf32>
    %172 = arith.addf %168, %171 : vector<8x1xf32>
    %173 = math.rsqrt %172 : vector<8x1xf32>
    %174 = vector.broadcast %173 : vector<8x1xf32> to vector<8x128xf32>
    %175 = arith.mulf %170, %174 : vector<8x128xf32>
    %176 = vector.broadcast %156 : vector<1x128xf32> to vector<8x128xf32>
    %177 = arith.mulf %175, %176 : vector<8x128xf32>
    %178 = vector.broadcast %157 : vector<1x128xf32> to vector<8x128xf32>
    %179 = arith.addf %177, %178 : vector<8x128xf32>
    %c0_58 = arith.constant 0 : index
    %c0_59 = arith.constant 0 : index
    %180 = vector.load %arg8[%c0_58, %c0_59] : memref<128x128xbf16, #tpu.memory_space<vmem>>, vector<128x128xbf16>
    %181 = arith.truncf %179 : vector<8x128xf32> to vector<8x128xbf16>
    %cst_60 = arith.constant dense<0.000000e+00> : vector<8x128xf32>
    %182 = tpu.matmul %181, %180, %cst_60 {dimension_numbers = #tpu.dot_dimension_numbers<[1], [0], [0], [1], [0, 0, 1, 1], [], []>} : vector<8x128xbf16>, vector<128x128xbf16>, vector<8x128xf32> -> vector<8x128xf32>
    %183 = vector.extract_strided_slice %0 {offsets = [10, 0], sizes = [1, 128], strides = [1, 1]} : vector<15x128xf32> to vector<1x128xf32>
    %184 = vector.broadcast %183 : vector<1x128xf32> to vector<8x128xf32>
    %185 = arith.addf %182, %184 : vector<8x128xf32>
    %c0_61 = arith.constant 0 : index
    %c0_62 = arith.constant 0 : index
    %186 = vector.load %arg9[%c0_61, %c0_62] : memref<128x256xbf16, #tpu.memory_space<vmem>>, vector<128x256xbf16>
    %187 = arith.truncf %4 : vector<16x128xf32> to vector<16x128xbf16>
    %cst_63 = arith.constant dense<0.000000e+00> : vector<16x256xf32>
    %188 = tpu.matmul %187, %186, %cst_63 {dimension_numbers = #tpu.dot_dimension_numbers<[1], [0], [0], [1], [0, 0, 1, 1], [], []>} : vector<16x128xbf16>, vector<128x256xbf16>, vector<16x256xf32> -> vector<16x256xf32>
    %189 = vector.extract_strided_slice %188 {offsets = [0, 0], sizes = [16, 128], strides = [1, 1]} : vector<16x256xf32> to vector<16x128xf32>
    %190 = vector.extract_strided_slice %0 {offsets = [11, 0], sizes = [1, 128], strides = [1, 1]} : vector<15x128xf32> to vector<1x128xf32>
    %191 = vector.broadcast %190 : vector<1x128xf32> to vector<16x128xf32>
    %192 = arith.addf %189, %191 : vector<16x128xf32>
    %193 = vector.extract_strided_slice %188 {offsets = [0, 128], sizes = [16, 128], strides = [1, 1]} : vector<16x256xf32> to vector<16x128xf32>
    %194 = vector.extract_strided_slice %0 {offsets = [12, 0], sizes = [1, 128], strides = [1, 1]} : vector<15x128xf32> to vector<1x128xf32>
    %195 = vector.broadcast %194 : vector<1x128xf32> to vector<16x128xf32>
    %196 = arith.addf %193, %195 : vector<16x128xf32>
    %197 = vector.extract_strided_slice %185 {offsets = [0, 0], sizes = [8, 32], strides = [1, 1]} : vector<8x128xf32> to vector<8x32xf32>
    %198 = arith.truncf %197 : vector<8x32xf32> to vector<8x32xbf16>
    %199 = vector.extract_strided_slice %192 {offsets = [0, 0], sizes = [16, 32], strides = [1, 1]} : vector<16x128xf32> to vector<16x32xf32>
    %200 = arith.truncf %199 : vector<16x32xf32> to vector<16x32xbf16>
    %201 = vector.extract_strided_slice %196 {offsets = [0, 0], sizes = [16, 32], strides = [1, 1]} : vector<16x128xf32> to vector<16x32xf32>
    %202 = arith.truncf %201 : vector<16x32xf32> to vector<16x32xbf16>
    "tpu.trace_start"() <{level = 10 : i32, message = "qd,kd->qk"}> : () -> ()
    %cst_64 = arith.constant dense<0.000000e+00> : vector<8x16xf32>
    %203 = tpu.matmul %198, %200, %cst_64 {dimension_numbers = #tpu.dot_dimension_numbers<[1], [1], [0], [0], [0, 0, 1, 0], [], []>} : vector<8x32xbf16>, vector<16x32xbf16>, vector<8x16xf32> -> vector<8x16xf32>
    "tpu.trace_stop"() : () -> ()
    %cst_65 = arith.constant 0.176776692 : f32
    %204 = vector.broadcast %cst_65 : f32 to vector<8x16xf32>
    %205 = arith.mulf %203, %204 : vector<8x16xf32>
    %cst_66 = arith.constant -1.000000e+30 : f32
    %206 = vector.shape_cast %12 : vector<1x16xi1> to vector<1x16xi1>
    %207 = vector.broadcast %206 : vector<1x16xi1> to vector<8x16xi1>
    %208 = vector.broadcast %cst_66 : f32 to vector<8x16xf32>
    %209 = arith.select %207, %205, %208 : vector<8x16xi1>, vector<8x16xf32>
    %cst_67 = arith.constant dense<0xFF800000> : vector<8xf32>
    %210 = vector.multi_reduction <maximumf>, %209, %cst_67 [1] : vector<8x16xf32> to vector<8xf32>
    %211 = vector.shape_cast %210 : vector<8xf32> to vector<8x1xf32>
    %212 = vector.broadcast %211 : vector<8x1xf32> to vector<8x16xf32>
    %213 = arith.subf %209, %212 : vector<8x16xf32>
    %214 = math.exp %213 : vector<8x16xf32>
    %cst_68 = arith.constant dense<0.000000e+00> : vector<8xf32>
    %215 = vector.multi_reduction <add>, %214, %cst_68 [1] : vector<8x16xf32> to vector<8xf32>
    %216 = vector.shape_cast %215 : vector<8xf32> to vector<8x1xf32>
    %217 = vector.broadcast %216 : vector<8x1xf32> to vector<8x16xf32>
    %218 = arith.divf %214, %217 : vector<8x16xf32>
    %cst_69 = arith.constant 0.000000e+00 : f32
    %219 = vector.shape_cast %12 : vector<1x16xi1> to vector<1x16xi1>
    %220 = vector.broadcast %219 : vector<1x16xi1> to vector<8x16xi1>
    %221 = vector.broadcast %cst_69 : f32 to vector<8x16xf32>
    %222 = arith.select %220, %218, %221 : vector<8x16xi1>, vector<8x16xf32>
    %223 = arith.truncf %222 : vector<8x16xf32> to vector<8x16xbf16>
    "tpu.trace_start"() <{level = 10 : i32, message = "qk,kd->qd"}> : () -> ()
    %cst_70 = arith.constant dense<0.000000e+00> : vector<8x32xf32>
    %224 = tpu.matmul %223, %202, %cst_70 {dimension_numbers = #tpu.dot_dimension_numbers<[1], [0], [0], [1], [0, 0, 1, 1], [], []>} : vector<8x16xbf16>, vector<16x32xbf16>, vector<8x32xf32> -> vector<8x32xf32>
    "tpu.trace_stop"() : () -> ()
    %225 = vector.extract_strided_slice %185 {offsets = [0, 32], sizes = [8, 32], strides = [1, 1]} : vector<8x128xf32> to vector<8x32xf32>
    %226 = arith.truncf %225 : vector<8x32xf32> to vector<8x32xbf16>
    %227 = vector.extract_strided_slice %192 {offsets = [0, 32], sizes = [16, 32], strides = [1, 1]} : vector<16x128xf32> to vector<16x32xf32>
    %228 = arith.truncf %227 : vector<16x32xf32> to vector<16x32xbf16>
    %229 = vector.extract_strided_slice %196 {offsets = [0, 32], sizes = [16, 32], strides = [1, 1]} : vector<16x128xf32> to vector<16x32xf32>
    %230 = arith.truncf %229 : vector<16x32xf32> to vector<16x32xbf16>
    "tpu.trace_start"() <{level = 10 : i32, message = "qd,kd->qk"}> : () -> ()
    %cst_71 = arith.constant dense<0.000000e+00> : vector<8x16xf32>
    %231 = tpu.matmul %226, %228, %cst_71 {dimension_numbers = #tpu.dot_dimension_numbers<[1], [1], [0], [0], [0, 0, 1, 0], [], []>} : vector<8x32xbf16>, vector<16x32xbf16>, vector<8x16xf32> -> vector<8x16xf32>
    "tpu.trace_stop"() : () -> ()
    %cst_72 = arith.constant 0.176776692 : f32
    %232 = vector.broadcast %cst_72 : f32 to vector<8x16xf32>
    %233 = arith.mulf %231, %232 : vector<8x16xf32>
    %cst_73 = arith.constant -1.000000e+30 : f32
    %234 = vector.shape_cast %12 : vector<1x16xi1> to vector<1x16xi1>
    %235 = vector.broadcast %234 : vector<1x16xi1> to vector<8x16xi1>
    %236 = vector.broadcast %cst_73 : f32 to vector<8x16xf32>
    %237 = arith.select %235, %233, %236 : vector<8x16xi1>, vector<8x16xf32>
    %cst_74 = arith.constant dense<0xFF800000> : vector<8xf32>
    %238 = vector.multi_reduction <maximumf>, %237, %cst_74 [1] : vector<8x16xf32> to vector<8xf32>
    %239 = vector.shape_cast %238 : vector<8xf32> to vector<8x1xf32>
    %240 = vector.broadcast %239 : vector<8x1xf32> to vector<8x16xf32>
    %241 = arith.subf %237, %240 : vector<8x16xf32>
    %242 = math.exp %241 : vector<8x16xf32>
    %cst_75 = arith.constant dense<0.000000e+00> : vector<8xf32>
    %243 = vector.multi_reduction <add>, %242, %cst_75 [1] : vector<8x16xf32> to vector<8xf32>
    %244 = vector.shape_cast %243 : vector<8xf32> to vector<8x1xf32>
    %245 = vector.broadcast %244 : vector<8x1xf32> to vector<8x16xf32>
    %246 = arith.divf %242, %245 : vector<8x16xf32>
    %cst_76 = arith.constant 0.000000e+00 : f32
    %247 = vector.shape_cast %12 : vector<1x16xi1> to vector<1x16xi1>
    %248 = vector.broadcast %247 : vector<1x16xi1> to vector<8x16xi1>
    %249 = vector.broadcast %cst_76 : f32 to vector<8x16xf32>
    %250 = arith.select %248, %246, %249 : vector<8x16xi1>, vector<8x16xf32>
    %251 = arith.truncf %250 : vector<8x16xf32> to vector<8x16xbf16>
    "tpu.trace_start"() <{level = 10 : i32, message = "qk,kd->qd"}> : () -> ()
    %cst_77 = arith.constant dense<0.000000e+00> : vector<8x32xf32>
    %252 = tpu.matmul %251, %230, %cst_77 {dimension_numbers = #tpu.dot_dimension_numbers<[1], [0], [0], [1], [0, 0, 1, 1], [], []>} : vector<8x16xbf16>, vector<16x32xbf16>, vector<8x32xf32> -> vector<8x32xf32>
    "tpu.trace_stop"() : () -> ()
    %253 = vector.extract_strided_slice %185 {offsets = [0, 64], sizes = [8, 32], strides = [1, 1]} : vector<8x128xf32> to vector<8x32xf32>
    %254 = arith.truncf %253 : vector<8x32xf32> to vector<8x32xbf16>
    %255 = vector.extract_strided_slice %192 {offsets = [0, 64], sizes = [16, 32], strides = [1, 1]} : vector<16x128xf32> to vector<16x32xf32>
    %256 = arith.truncf %255 : vector<16x32xf32> to vector<16x32xbf16>
    %257 = vector.extract_strided_slice %196 {offsets = [0, 64], sizes = [16, 32], strides = [1, 1]} : vector<16x128xf32> to vector<16x32xf32>
    %258 = arith.truncf %257 : vector<16x32xf32> to vector<16x32xbf16>
    "tpu.trace_start"() <{level = 10 : i32, message = "qd,kd->qk"}> : () -> ()
    %cst_78 = arith.constant dense<0.000000e+00> : vector<8x16xf32>
    %259 = tpu.matmul %254, %256, %cst_78 {dimension_numbers = #tpu.dot_dimension_numbers<[1], [1], [0], [0], [0, 0, 1, 0], [], []>} : vector<8x32xbf16>, vector<16x32xbf16>, vector<8x16xf32> -> vector<8x16xf32>
    "tpu.trace_stop"() : () -> ()
    %cst_79 = arith.constant 0.176776692 : f32
    %260 = vector.broadcast %cst_79 : f32 to vector<8x16xf32>
    %261 = arith.mulf %259, %260 : vector<8x16xf32>
    %cst_80 = arith.constant -1.000000e+30 : f32
    %262 = vector.shape_cast %12 : vector<1x16xi1> to vector<1x16xi1>
    %263 = vector.broadcast %262 : vector<1x16xi1> to vector<8x16xi1>
    %264 = vector.broadcast %cst_80 : f32 to vector<8x16xf32>
    %265 = arith.select %263, %261, %264 : vector<8x16xi1>, vector<8x16xf32>
    %cst_81 = arith.constant dense<0xFF800000> : vector<8xf32>
    %266 = vector.multi_reduction <maximumf>, %265, %cst_81 [1] : vector<8x16xf32> to vector<8xf32>
    %267 = vector.shape_cast %266 : vector<8xf32> to vector<8x1xf32>
    %268 = vector.broadcast %267 : vector<8x1xf32> to vector<8x16xf32>
    %269 = arith.subf %265, %268 : vector<8x16xf32>
    %270 = math.exp %269 : vector<8x16xf32>
    %cst_82 = arith.constant dense<0.000000e+00> : vector<8xf32>
    %271 = vector.multi_reduction <add>, %270, %cst_82 [1] : vector<8x16xf32> to vector<8xf32>
    %272 = vector.shape_cast %271 : vector<8xf32> to vector<8x1xf32>
    %273 = vector.broadcast %272 : vector<8x1xf32> to vector<8x16xf32>
    %274 = arith.divf %270, %273 : vector<8x16xf32>
    %cst_83 = arith.constant 0.000000e+00 : f32
    %275 = vector.shape_cast %12 : vector<1x16xi1> to vector<1x16xi1>
    %276 = vector.broadcast %275 : vector<1x16xi1> to vector<8x16xi1>
    %277 = vector.broadcast %cst_83 : f32 to vector<8x16xf32>
    %278 = arith.select %276, %274, %277 : vector<8x16xi1>, vector<8x16xf32>
    %279 = arith.truncf %278 : vector<8x16xf32> to vector<8x16xbf16>
    "tpu.trace_start"() <{level = 10 : i32, message = "qk,kd->qd"}> : () -> ()
    %cst_84 = arith.constant dense<0.000000e+00> : vector<8x32xf32>
    %280 = tpu.matmul %279, %258, %cst_84 {dimension_numbers = #tpu.dot_dimension_numbers<[1], [0], [0], [1], [0, 0, 1, 1], [], []>} : vector<8x16xbf16>, vector<16x32xbf16>, vector<8x32xf32> -> vector<8x32xf32>
    "tpu.trace_stop"() : () -> ()
    %281 = vector.extract_strided_slice %185 {offsets = [0, 96], sizes = [8, 32], strides = [1, 1]} : vector<8x128xf32> to vector<8x32xf32>
    %282 = arith.truncf %281 : vector<8x32xf32> to vector<8x32xbf16>
    %283 = vector.extract_strided_slice %192 {offsets = [0, 96], sizes = [16, 32], strides = [1, 1]} : vector<16x128xf32> to vector<16x32xf32>
    %284 = arith.truncf %283 : vector<16x32xf32> to vector<16x32xbf16>
    %285 = vector.extract_strided_slice %196 {offsets = [0, 96], sizes = [16, 32], strides = [1, 1]} : vector<16x128xf32> to vector<16x32xf32>
    %286 = arith.truncf %285 : vector<16x32xf32> to vector<16x32xbf16>
    "tpu.trace_start"() <{level = 10 : i32, message = "qd,kd->qk"}> : () -> ()
    %cst_85 = arith.constant dense<0.000000e+00> : vector<8x16xf32>
    %287 = tpu.matmul %282, %284, %cst_85 {dimension_numbers = #tpu.dot_dimension_numbers<[1], [1], [0], [0], [0, 0, 1, 0], [], []>} : vector<8x32xbf16>, vector<16x32xbf16>, vector<8x16xf32> -> vector<8x16xf32>
    "tpu.trace_stop"() : () -> ()
    %cst_86 = arith.constant 0.176776692 : f32
    %288 = vector.broadcast %cst_86 : f32 to vector<8x16xf32>
    %289 = arith.mulf %287, %288 : vector<8x16xf32>
    %cst_87 = arith.constant -1.000000e+30 : f32
    %290 = vector.shape_cast %12 : vector<1x16xi1> to vector<1x16xi1>
    %291 = vector.broadcast %290 : vector<1x16xi1> to vector<8x16xi1>
    %292 = vector.broadcast %cst_87 : f32 to vector<8x16xf32>
    %293 = arith.select %291, %289, %292 : vector<8x16xi1>, vector<8x16xf32>
    %cst_88 = arith.constant dense<0xFF800000> : vector<8xf32>
    %294 = vector.multi_reduction <maximumf>, %293, %cst_88 [1] : vector<8x16xf32> to vector<8xf32>
    %295 = vector.shape_cast %294 : vector<8xf32> to vector<8x1xf32>
    %296 = vector.broadcast %295 : vector<8x1xf32> to vector<8x16xf32>
    %297 = arith.subf %293, %296 : vector<8x16xf32>
    %298 = math.exp %297 : vector<8x16xf32>
    %cst_89 = arith.constant dense<0.000000e+00> : vector<8xf32>
    %299 = vector.multi_reduction <add>, %298, %cst_89 [1] : vector<8x16xf32> to vector<8xf32>
    %300 = vector.shape_cast %299 : vector<8xf32> to vector<8x1xf32>
    %301 = vector.broadcast %300 : vector<8x1xf32> to vector<8x16xf32>
    %302 = arith.divf %298, %301 : vector<8x16xf32>
    %cst_90 = arith.constant 0.000000e+00 : f32
    %303 = vector.shape_cast %12 : vector<1x16xi1> to vector<1x16xi1>
    %304 = vector.broadcast %303 : vector<1x16xi1> to vector<8x16xi1>
    %305 = vector.broadcast %cst_90 : f32 to vector<8x16xf32>
    %306 = arith.select %304, %302, %305 : vector<8x16xi1>, vector<8x16xf32>
    %307 = arith.truncf %306 : vector<8x16xf32> to vector<8x16xbf16>
    "tpu.trace_start"() <{level = 10 : i32, message = "qk,kd->qd"}> : () -> ()
    %cst_91 = arith.constant dense<0.000000e+00> : vector<8x32xf32>
    %308 = tpu.matmul %307, %286, %cst_91 {dimension_numbers = #tpu.dot_dimension_numbers<[1], [0], [0], [1], [0, 0, 1, 1], [], []>} : vector<8x16xbf16>, vector<16x32xbf16>, vector<8x32xf32> -> vector<8x32xf32>
    "tpu.trace_stop"() : () -> ()
    %309 = tpu.concatenate %224, %252, %280, %308 in 1 : vector<8x32xf32>, vector<8x32xf32>, vector<8x32xf32>, vector<8x32xf32> -> vector<8x128xf32>
    %c0_92 = arith.constant 0 : index
    %c0_93 = arith.constant 0 : index
    %310 = vector.load %arg10[%c0_92, %c0_93] : memref<128x128xbf16, #tpu.memory_space<vmem>>, vector<128x128xbf16>
    %311 = arith.truncf %309 : vector<8x128xf32> to vector<8x128xbf16>
    %cst_94 = arith.constant dense<0.000000e+00> : vector<8x128xf32>
    %312 = tpu.matmul %311, %310, %cst_94 {dimension_numbers = #tpu.dot_dimension_numbers<[1], [0], [0], [1], [0, 0, 1, 1], [], []>} : vector<8x128xbf16>, vector<128x128xbf16>, vector<8x128xf32> -> vector<8x128xf32>
    %313 = arith.addf %155, %312 : vector<8x128xf32>
    %314 = vector.extract_strided_slice %0 {offsets = [13, 0], sizes = [1, 128], strides = [1, 1]} : vector<15x128xf32> to vector<1x128xf32>
    %315 = vector.broadcast %314 : vector<1x128xf32> to vector<8x128xf32>
    %316 = arith.addf %313, %315 : vector<8x128xf32>
    %317 = vector.extract_strided_slice %0 {offsets = [4, 0], sizes = [1, 128], strides = [1, 1]} : vector<15x128xf32> to vector<1x128xf32>
    %318 = vector.extract_strided_slice %0 {offsets = [5, 0], sizes = [1, 128], strides = [1, 1]} : vector<15x128xf32> to vector<1x128xf32>
    %cst_95 = arith.constant dense<0.000000e+00> : vector<8xf32>
    %319 = vector.multi_reduction <add>, %316, %cst_95 [1] : vector<8x128xf32> to vector<8xf32>
    %320 = vector.shape_cast %319 : vector<8xf32> to vector<8x1xf32>
    %cst_96 = arith.constant 1.280000e+02 : f32
    %321 = vector.broadcast %cst_96 : f32 to vector<8x1xf32>
    %322 = arith.divf %320, %321 : vector<8x1xf32>
    %323 = vector.broadcast %322 : vector<8x1xf32> to vector<8x128xf32>
    %324 = arith.subf %316, %323 : vector<8x128xf32>
    %325 = arith.mulf %324, %324 : vector<8x128xf32>
    %cst_97 = arith.constant dense<0.000000e+00> : vector<8xf32>
    %326 = vector.multi_reduction <add>, %325, %cst_97 [1] : vector<8x128xf32> to vector<8xf32>
    %327 = vector.shape_cast %326 : vector<8xf32> to vector<8x1xf32>
    %cst_98 = arith.constant 1.280000e+02 : f32
    %328 = vector.broadcast %cst_98 : f32 to vector<8x1xf32>
    %329 = arith.divf %327, %328 : vector<8x1xf32>
    %330 = vector.broadcast %322 : vector<8x1xf32> to vector<8x128xf32>
    %331 = arith.subf %316, %330 : vector<8x128xf32>
    %cst_99 = arith.constant 9.99999996E-13 : f32
    %332 = vector.broadcast %cst_99 : f32 to vector<8x1xf32>
    %333 = arith.addf %329, %332 : vector<8x1xf32>
    %334 = math.rsqrt %333 : vector<8x1xf32>
    %335 = vector.broadcast %334 : vector<8x1xf32> to vector<8x128xf32>
    %336 = arith.mulf %331, %335 : vector<8x128xf32>
    %337 = vector.broadcast %317 : vector<1x128xf32> to vector<8x128xf32>
    %338 = arith.mulf %336, %337 : vector<8x128xf32>
    %339 = vector.broadcast %318 : vector<1x128xf32> to vector<8x128xf32>
    %340 = arith.addf %338, %339 : vector<8x128xf32>
    %c0_100 = arith.constant 0 : index
    %c0_101 = arith.constant 0 : index
    %341 = vector.load %arg11[%c0_100, %c0_101] : memref<128x256xbf16, #tpu.memory_space<vmem>>, vector<128x256xbf16>
    %342 = arith.truncf %340 : vector<8x128xf32> to vector<8x128xbf16>
    %cst_102 = arith.constant dense<0.000000e+00> : vector<8x256xf32>
    %343 = tpu.matmul %342, %341, %cst_102 {dimension_numbers = #tpu.dot_dimension_numbers<[1], [0], [0], [1], [0, 0, 1, 1], [], []>} : vector<8x128xbf16>, vector<128x256xbf16>, vector<8x256xf32> -> vector<8x256xf32>
    %c0_103 = arith.constant 0 : index
    %c0_104 = arith.constant 0 : index
    %344 = vector.load %arg12[%c0_103, %c0_104] : memref<1x256xf32, #tpu.memory_space<vmem>>, vector<1x256xf32>
    %345 = vector.broadcast %344 : vector<1x256xf32> to vector<8x256xf32>
    %346 = arith.addf %343, %345 : vector<8x256xf32>
    %cst_105 = arith.constant 0.000000e+00 : f32
    %347 = vector.broadcast %cst_105 : f32 to vector<8x256xf32>
    %348 = arith.maximumf %346, %347 : vector<8x256xf32>
    %c0_106 = arith.constant 0 : index
    %c0_107 = arith.constant 0 : index
    %349 = vector.load %arg13[%c0_106, %c0_107] : memref<256x128xbf16, #tpu.memory_space<vmem>>, vector<256x128xbf16>
    %350 = arith.truncf %348 : vector<8x256xf32> to vector<8x256xbf16>
    %cst_108 = arith.constant dense<0.000000e+00> : vector<8x128xf32>
    %351 = tpu.matmul %350, %349, %cst_108 {dimension_numbers = #tpu.dot_dimension_numbers<[1], [0], [0], [1], [0, 0, 1, 1], [], []>} : vector<8x256xbf16>, vector<256x128xbf16>, vector<8x128xf32> -> vector<8x128xf32>
    %352 = arith.addf %316, %351 : vector<8x128xf32>
    %353 = vector.extract_strided_slice %0 {offsets = [14, 0], sizes = [1, 128], strides = [1, 1]} : vector<15x128xf32> to vector<1x128xf32>
    %354 = vector.broadcast %353 : vector<1x128xf32> to vector<8x128xf32>
    %355 = arith.addf %352, %354 : vector<8x128xf32>
    %c0_109 = arith.constant 0 : index
    %c0_110 = arith.constant 0 : index
    %c0_111 = arith.constant 0 : index
    %356 = vector.load %arg14[%c0_109, %c0_110, %c0_111] : memref<1x8x128xf32, #tpu.memory_space<vmem>>, vector<1x8x128xf32>
    %357 = vector.shape_cast %356 : vector<1x8x128xf32> to vector<8x128xf32>
    %358 = vector.shape_cast %355 : vector<8x128xf32> to vector<1x8x128xf32>
    tpu.vector_store %arg14[%c0_109, %c0_110, %c0_111], %358 {strides = array<i32>} : memref<1x8x128xf32, #tpu.memory_space<vmem>>, vector<1x8x128xf32>,
    return
  }
  func.func @transform_0(%arg0: i32) -> (i32, i32, i32) {
    %c0_i32 = arith.constant 0 : i32
    %c0_i32_0 = arith.constant 0 : i32
    %c0_i32_1 = arith.constant 0 : i32
    return %arg0, %c0_i32, %c0_i32_0 : i32, i32, i32
  }
  func.func @transform_1(%arg0: i32) -> (i32, i32, i32) {
    %c0_i32 = arith.constant 0 : i32
    %c0_i32_0 = arith.constant 0 : i32
    %c0_i32_1 = arith.constant 0 : i32
    return %arg0, %c0_i32, %c0_i32_0 : i32, i32, i32
  }
  func.func @transform_2(%arg0: i32) -> (i32, i32, i32) {
    %c0_i32 = arith.constant 0 : i32
    %c0_i32_0 = arith.constant 0 : i32
    %c0_i32_1 = arith.constant 0 : i32
    return %arg0, %c0_i32, %c0_i32_0 : i32, i32, i32
  }
  func.func @transform_3(%arg0: i32) -> (i32, i32, i32) {
    %c0_i32 = arith.constant 0 : i32
    %c0_i32_0 = arith.constant 0 : i32
    %c0_i32_1 = arith.constant 0 : i32
    return %arg0, %c0_i32, %c0_i32_0 : i32, i32, i32
  }
  func.func @transform_4(%arg0: i32) -> (i32, i32) {
    %c0_i32 = arith.constant 0 : i32
    %c0_i32_0 = arith.constant 0 : i32
    %c0_i32_1 = arith.constant 0 : i32
    return %c0_i32, %c0_i32_0 : i32, i32
  }
  func.func @transform_5(%arg0: i32) -> (i32, i32) {
    %c0_i32 = arith.constant 0 : i32
    %c0_i32_0 = arith.constant 0 : i32
    %c0_i32_1 = arith.constant 0 : i32
    return %c0_i32, %c0_i32_0 : i32, i32
  }
  func.func @transform_6(%arg0: i32) -> (i32, i32) {
    %c0_i32 = arith.constant 0 : i32
    %c0_i32_0 = arith.constant 0 : i32
    %c0_i32_1 = arith.constant 0 : i32
    return %c0_i32, %c0_i32_0 : i32, i32
  }
  func.func @transform_7(%arg0: i32) -> (i32, i32) {
    %c0_i32 = arith.constant 0 : i32
    %c0_i32_0 = arith.constant 0 : i32
    %c0_i32_1 = arith.constant 0 : i32
    return %c0_i32, %c0_i32_0 : i32, i32
  }
  func.func @transform_8(%arg0: i32) -> (i32, i32) {
    %c0_i32 = arith.constant 0 : i32
    %c0_i32_0 = arith.constant 0 : i32
    %c0_i32_1 = arith.constant 0 : i32
    return %c0_i32, %c0_i32_0 : i32, i32
  }
  func.func @transform_9(%arg0: i32) -> (i32, i32) {
    %c0_i32 = arith.constant 0 : i32
    %c0_i32_0 = arith.constant 0 : i32
    %c0_i32_1 = arith.constant 0 : i32
    return %c0_i32, %c0_i32_0 : i32, i32
  }
  func.func @transform_10(%arg0: i32) -> (i32, i32) {
    %c0_i32 = arith.constant 0 : i32
    %c0_i32_0 = arith.constant 0 : i32
    %c0_i32_1 = arith.constant 0 : i32
    return %c0_i32, %c0_i32_0 : i32, i32
  }
  func.func @transform_11(%arg0: i32) -> (i32, i32) {
    %c0_i32 = arith.constant 0 : i32
    %c0_i32_0 = arith.constant 0 : i32
    %c0_i32_1 = arith.constant 0 : i32
    return %c0_i32, %c0_i32_0 : i32, i32
  }
  func.func @transform_12(%arg0: i32) -> (i32, i32) {
    %c0_i32 = arith.constant 0 : i32
    %c0_i32_0 = arith.constant 0 : i32
    %c0_i32_1 = arith.constant 0 : i32
    return %c0_i32, %c0_i32_0 : i32, i32
  }
  func.func @transform_13(%arg0: i32) -> (i32, i32, i32) {
    %c0_i32 = arith.constant 0 : i32
    %c0_i32_0 = arith.constant 0 : i32
    %c0_i32_1 = arith.constant 0 : i32
    return %arg0, %c0_i32, %c0_i32_0 : i32, i32, i32
  }
}

</mosaic_0001>

<llo_original>
// kernel: tpu_custom_call.1
$region0: #{tpu_custom_call.1}
  #allocation0 [shape = 'u32[]', space=smem, size = 0x4, offset = 0x4, fixed_abs, tag = 'smem constant byte address 0x4 - core index']
  #allocation1 [shape = 'u32[144,128]{1,0:T(1,128)}', space=vmem, size = 0x12000, scoped, tag = 'internal scratch']
  %s0 = inlined_call_operand.hbm [shape: f32[2,8,128], index: 0, kind: input, shape index: {}]
  %s1 = inlined_call_operand.hbm [shape: f32[2,8,8], index: 1, kind: input, shape index: {}]
  %s2 = inlined_call_operand.hbm [shape: f32[2,16,128], index: 2, kind: input, shape index: {}]
  %s3 = inlined_call_operand.vmem [shape: f32[2,1,16], index: 3, kind: input, shape index: {}]
  %s4 = inlined_call_operand.hbm [shape: f32[15,128], index: 4, kind: input, shape index: {}]
  %s5 = inlined_call_operand.hbm [shape: bf16[128,384], index: 5, kind: input, shape index: {}]
  %s6 = inlined_call_operand.hbm [shape: bf16[128,128], index: 6, kind: input, shape index: {}]
  %s7 = inlined_call_operand.hbm [shape: bf16[128,128], index: 7, kind: input, shape index: {}]
  %s8 = inlined_call_operand.hbm [shape: bf16[128,256], index: 8, kind: input, shape index: {}]
  %s9 = inlined_call_operand.hbm [shape: bf16[128,128], index: 9, kind: input, shape index: {}]
  %s10 = inlined_call_operand.hbm [shape: bf16[128,256], index: 10, kind: input, shape index: {}]
  %s11 = inlined_call_operand.vmem [shape: f32[1,256], index: 11, kind: input, shape index: {}]
  %s12 = inlined_call_operand.hbm [shape: bf16[256,128], index: 12, kind: input, shape index: {}]
  %s13 = inlined_call_operand.hbm [shape: f32[2,8,128], index: 13, kind: output, shape index: {}]
  %s14 = sld [smem:[#allocation0]]
  $region129: #{tpu_custom_call.1} parent=0
    _
  %s16 = ssub.s32 1, %s14
  %s17 = scalar_select 0, %s16, %s14
  $region1: #{tpu_custom_call.1} parent=0
    #allocation2 [shape = 'u8[8192]{0}', space=vmem, size = 0x2000, scoped, tag = 'input window, operand 0']
    #allocation3 [shape = 's32[2]{0}', space=sflag, size = 0x8, scoped, tag = 'scoped memory for tpu_custom_call.1']
    #allocation4 [shape = 's32[2]{0}', space=sflag, size = 0x8, scoped, tag = 'scoped memory for tpu_custom_call.1']
    #allocation5 [shape = 'u8[8192]{0}', space=vmem, size = 0x2000, scoped, tag = 'input window, operand 1']
    #allocation6 [shape = 's32[2]{0}', space=sflag, size = 0x8, scoped, tag = 'scoped memory for tpu_custom_call.1']
    #allocation7 [shape = 'u8[16384]{0}', space=vmem, size = 0x4000, scoped, tag = 'input window, operand 2']
    #allocation8 [shape = 'u8[8192]{0}', space=vmem, size = 0x2000, scoped, tag = 'input window, operand 4, single buffered']
    #allocation9 [shape = 's32[1]{0}', space=sflag, size = 0x4, scoped, tag = 'scoped memory for tpu_custom_call.1']
    #allocation10 [shape = 'u8[98304]{0}', space=vmem, size = 0x18000, scoped, tag = 'input window, operand 5, single buffered']
    #allocation11 [shape = 'u8[32768]{0}', space=vmem, size = 0x8000, scoped, tag = 'input window, operand 6, single buffered']
    #allocation12 [shape = 's32[1]{0}', space=sflag, size = 0x4, scoped, tag = 'scoped memory for tpu_custom_call.1']
    #allocation13 [shape = 'u8[32768]{0}', space=vmem, size = 0x8000, scoped, tag = 'input window, operand 7, single buffered']
    #allocation14 [shape = 'u8[65536]{0}', space=vmem, size = 0x10000, scoped, tag = 'input window, operand 8, single buffered']
    #allocation15 [shape = 's32[1]{0}', space=sflag, size = 0x4, scoped, tag = 'scoped memory for tpu_custom_call.1']
    #allocation16 [shape = 'u8[32768]{0}', space=vmem, size = 0x8000, scoped, tag = 'input window, operand 9, single buffered']
    #allocation17 [shape = 'u8[65536]{0}', space=vmem, size = 0x10000, scoped, tag = 'input window, operand 10, single buffered']
    #allocation18 [shape = 's32[1]{0}', space=sflag, size = 0x4, scoped, tag = 'scoped memory for tpu_custom_call.1']
    #allocation19 [shape = 'u8[65536]{0}', space=vmem, size = 0x10000, scoped, tag = 'input window, operand 12, single buffered']
    #allocation20 [shape = 'u8[8192]{0}', space=vmem, size = 0x2000, scoped, tag = 'output window, operand 0']
    %18 = vsyncpa [#allocation3], 0
    %s19 = scalar_lea.sflag [#allocation3], 1
    %20 = vsyncpa %s19, 0
    %21 = vsyncpa [#allocation6], 0
    %s22 = scalar_lea.sflag [#allocation6], 1
    %23 = vsyncpa %s22, 0
    %24 = vsyncpa [#allocation9], 0
    %25 = vsyncpa [#allocation12], 0
    %26 = vsyncpa [#allocation15], 0
    %27 = vsyncpa [#allocation18], 0
    %28 = vsyncpa [#allocation4], 0
    %s29 = scalar_lea.sflag [#allocation4], 1
    %30 = vsyncpa %s29, 0
    loop: start=0, step=1, limit=4
    $region2: #{tpu_custom_call.1} parent=1 // loop_pre_header
      _
    $region3: #{tpu_custom_call.1} parent=1 // loop_header
      %s32 = sphi 0, %s36
      %p33 = scmp.ge.s32.totalorder %s32, 4
      %s42 = sphi 0, %s44
      %s45 = sphi 0, %s42
      %s46 = sphi 0, %s45
      %s62 = sphi 0, %s46
      %s68 = sphi 0, %s70
      %s71 = sphi 0, %s68
      %s72 = sphi 0, %s71
      %s88 = sphi 0, %s72
      %s94 = sphi 0, %s96
      %s97 = sphi 0, %s94
      %s98 = sphi 0, %s97
      %s114 = sphi 0, %s98
      %s120 = sphi 0, %s122
      %s123 = sphi 0, %s120
      %s124 = sphi 0, %s123
      %s140 = sphi 0, %s124
      %s144 = sphi 0, %s144
      %s146 = sphi 0, %s144
      %s147 = sphi 0, %s146
      %s161 = sphi 0, %s147
      %s165 = sphi 0, %s165
      %s167 = sphi 0, %s165
      %s168 = sphi 0, %s167
      %s182 = sphi 0, %s168
      %s186 = sphi 0, %s186
      %s188 = sphi 0, %s186
      %s189 = sphi 0, %s188
      %s203 = sphi 0, %s189
      %s207 = sphi 0, %s207
      %s209 = sphi 0, %s207
      %s210 = sphi 0, %s209
      %s224 = sphi 0, %s210
      %s228 = sphi 0, %s228
      %s230 = sphi 0, %s228
      %s231 = sphi 0, %s230
      %s245 = sphi 0, %s231
      %s249 = sphi 0, %s249
      %s251 = sphi 0, %s249
      %s252 = sphi 0, %s251
      %s266 = sphi 0, %s252
      %s270 = sphi 0, %s270
      %s272 = sphi 0, %s270
      %s273 = sphi 0, %s272
      %s287 = sphi 0, %s273
      %s291 = sphi 0, %s291
      %s293 = sphi 0, %s291
      %s294 = sphi 0, %s293
      %s308 = sphi 0, %s294
      %s312 = sphi 0, %s312
      %s314 = sphi 0, %s312
      %s315 = sphi 0, %s314
      %s329 = sphi 0, %s315
      %s335 = sphi 0, %s337
      %s338 = sphi 0, %s335
      %s339 = sphi 0, %s338
      %s355 = sphi 0, %s339
    $region4: #{tpu_custom_call.1} parent=1 // loop_header_branch
      %35 = sbr.rel (%p33) target = $region8
    $region5: #{tpu_custom_call.1} parent=1 // loop_body
      %s37 = ssub.s32 %s32, 1
      %s38 = ssub.s32 %s32, 2
      %s39 = sadd.s32 %s32, 1
      %s40 = ssub.s32 %s32, %s39
      %p41 = scmp.eq.s32.totalorder %s40, 0
      %s43 = sadd.s32 %s42, 1
      %s44 = scalar_select %p41, %s42, %s43
      %p47 = pneg %p41
      %p48 = scmp.eq.s32.totalorder %s32, 1
      %p49 = por %p47, %p48
      %p50 = scmp.ne.s32.totalorder %s42, %s45
      %p51 = scmp.eq.s32.totalorder %s32, 0
      %p52 = por %p50, %p51
      %p53 = scmp.ne.s32.totalorder %s42, %s45
      %p54 = scmp.eq.s32.totalorder %s37, 1
      %p55 = por %p53, %p54
      %p56 = scmp.ne.s32.totalorder %s45, %s46
      %p57 = scmp.eq.s32.totalorder %s37, 0
      %p58 = por %p56, %p57
      %p59 = scmp.ne.s32.totalorder %s45, %s46
      %p60 = scmp.eq.s32.totalorder %s38, 1
      %p61 = por %p59, %p60
      %p63 = scmp.ne.s32.totalorder %s46, %s62
      %p64 = scmp.eq.s32.totalorder %s38, 0
      %p65 = por %p63, %p64
      %s66 = ssub.s32 %s32, %s39
      %p67 = scmp.eq.s32.totalorder %s66, 0
      %s69 = sadd.s32 %s68, 1
      %s70 = scalar_select %p67, %s68, %s69
      %p73 = pneg %p67
      %p74 = scmp.eq.s32.totalorder %s32, 1
      %p75 = por %p73, %p74
      %p76 = scmp.ne.s32.totalorder %s68, %s71
      %p77 = scmp.eq.s32.totalorder %s32, 0
      %p78 = por %p76, %p77
      %p79 = scmp.ne.s32.totalorder %s68, %s71
      %p80 = scmp.eq.s32.totalorder %s37, 1
      %p81 = por %p79, %p80
      %p82 = scmp.ne.s32.totalorder %s71, %s72
      %p83 = scmp.eq.s32.totalorder %s37, 0
      %p84 = por %p82, %p83
      %p85 = scmp.ne.s32.totalorder %s71, %s72
      %p86 = scmp.eq.s32.totalorder %s38, 1
      %p87 = por %p85, %p86
      %p89 = scmp.ne.s32.totalorder %s72, %s88
      %p90 = scmp.eq.s32.totalorder %s38, 0
      %p91 = por %p89, %p90
      %s92 = ssub.s32 %s32, %s39
      %p93 = scmp.eq.s32.totalorder %s92, 0
      %s95 = sadd.s32 %s94, 1
      %s96 = scalar_select %p93, %s94, %s95
      %p99 = pneg %p93
      %p100 = scmp.eq.s32.totalorder %s32, 1
      %p101 = por %p99, %p100
      %p102 = scmp.ne.s32.totalorder %s94, %s97
      %p103 = scmp.eq.s32.totalorder %s32, 0
      %p104 = por %p102, %p103
      %p105 = scmp.ne.s32.totalorder %s94, %s97
      %p106 = scmp.eq.s32.totalorder %s37, 1
      %p107 = por %p105, %p106
      %p108 = scmp.ne.s32.totalorder %s97, %s98
      %p109 = scmp.eq.s32.totalorder %s37, 0
      %p110 = por %p108, %p109
      %p111 = scmp.ne.s32.totalorder %s97, %s98
      %p112 = scmp.eq.s32.totalorder %s38, 1
      %p113 = por %p111, %p112
      %p115 = scmp.ne.s32.totalorder %s98, %s114
      %p116 = scmp.eq.s32.totalorder %s38, 0
      %p117 = por %p115, %p116
      %s118 = ssub.s32 %s32, %s39
      %p119 = scmp.eq.s32.totalorder %s118, 0
      %s121 = sadd.s32 %s120, 1
      %s122 = scalar_select %p119, %s120, %s121
      %p125 = pneg %p119
      %p126 = scmp.eq.s32.totalorder %s32, 1
      %p127 = por %p125, %p126
      %p128 = scmp.ne.s32.totalorder %s120, %s123
      %p129 = scmp.eq.s32.totalorder %s32, 0
      %p130 = por %p128, %p129
      %p131 = scmp.ne.s32.totalorder %s120, %s123
      %p132 = scmp.eq.s32.totalorder %s37, 1
      %p133 = por %p131, %p132
      %p134 = scmp.ne.s32.totalorder %s123, %s124
      %p135 = scmp.eq.s32.totalorder %s37, 0
      %p136 = por %p134, %p135
      %p137 = scmp.ne.s32.totalorder %s123, %s124
      %p138 = scmp.eq.s32.totalorder %s38, 1
      %p139 = por %p137, %p138
      %p141 = scmp.ne.s32.totalorder %s124, %s140
      %p142 = scmp.eq.s32.totalorder %s38, 0
      %p143 = por %p141, %p142
      %s145 = sadd.s32 %s144, 1
      %p148 = scmp.eq.s32.totalorder %s32, 1
      %p149 = scmp.ne.s32.totalorder %s144, %s146
      %p150 = scmp.eq.s32.totalorder %s32, 0
      %p151 = por %p149, %p150
      %p152 = scmp.ne.s32.totalorder %s144, %s146
      %p153 = scmp.eq.s32.totalorder %s37, 1
      %p154 = por %p152, %p153
      %p155 = scmp.ne.s32.totalorder %s146, %s147
      %p156 = scmp.eq.s32.totalorder %s37, 0
      %p157 = por %p155, %p156
      %p158 = scmp.ne.s32.totalorder %s146, %s147
      %p159 = scmp.eq.s32.totalorder %s38, 1
      %p160 = por %p158, %p159
      %p162 = scmp.ne.s32.totalorder %s147, %s161
      %p163 = scmp.eq.s32.totalorder %s38, 0
      %p164 = por %p162, %p163
      %s166 = sadd.s32 %s165, 1
      %p169 = scmp.eq.s32.totalorder %s32, 1
      %p170 = scmp.ne.s32.totalorder %s165, %s167
      %p171 = scmp.eq.s32.totalorder %s32, 0
      %p172 = por %p170, %p171
      %p173 = scmp.ne.s32.totalorder %s165, %s167
      %p174 = scmp.eq.s32.totalorder %s37, 1
      %p175 = por %p173, %p174
      %p176 = scmp.ne.s32.totalorder %s167, %s168
      %p177 = scmp.eq.s32.totalorder %s37, 0
      %p178 = por %p176, %p177
      %p179 = scmp.ne.s32.totalorder %s167, %s168
      %p180 = scmp.eq.s32.totalorder %s38, 1
      %p181 = por %p179, %p180
      %p183 = scmp.ne.s32.totalorder %s168, %s182
      %p184 = scmp.eq.s32.totalorder %s38, 0
      %p185 = por %p183, %p184
      %s187 = sadd.s32 %s186, 1
      %p190 = scmp.eq.s32.totalorder %s32, 1
      %p191 = scmp.ne.s32.totalorder %s186, %s188
      %p192 = scmp.eq.s32.totalorder %s32, 0
      %p193 = por %p191, %p192
      %p194 = scmp.ne.s32.totalorder %s186, %s188
      %p195 = scmp.eq.s32.totalorder %s37, 1
      %p196 = por %p194, %p195
      %p197 = scmp.ne.s32.totalorder %s188, %s189
      %p198 = scmp.eq.s32.totalorder %s37, 0
      %p199 = por %p197, %p198
      %p200 = scmp.ne.s32.totalorder %s188, %s189
      %p201 = scmp.eq.s32.totalorder %s38, 1
      %p202 = por %p200, %p201
      %p204 = scmp.ne.s32.totalorder %s189, %s203
      %p205 = scmp.eq.s32.totalorder %s38, 0
      %p206 = por %p204, %p205
      %s208 = sadd.s32 %s207, 1
      %p211 = scmp.eq.s32.totalorder %s32, 1
      %p212 = scmp.ne.s32.totalorder %s207, %s209
      %p213 = scmp.eq.s32.totalorder %s32, 0
      %p214 = por %p212, %p213
      %p215 = scmp.ne.s32.totalorder %s207, %s209
      %p216 = scmp.eq.s32.totalorder %s37, 1
      %p217 = por %p215, %p216
      %p218 = scmp.ne.s32.totalorder %s209, %s210
      %p219 = scmp.eq.s32.totalorder %s37, 0
      %p220 = por %p218, %p219
      %p221 = scmp.ne.s32.totalorder %s209, %s210
      %p222 = scmp.eq.s32.totalorder %s38, 1
      %p223 = por %p221, %p222
      %p225 = scmp.ne.s32.totalorder %s210, %s224
      %p226 = scmp.eq.s32.totalorder %s38, 0
      %p227 = por %p225, %p226
      %s229 = sadd.s32 %s228, 1
      %p232 = scmp.eq.s32.totalorder %s32, 1
      %p233 = scmp.ne.s32.totalorder %s228, %s230
      %p234 = scmp.eq.s32.totalorder %s32, 0
      %p235 = por %p233, %p234
      %p236 = scmp.ne.s32.totalorder %s228, %s230
      %p237 = scmp.eq.s32.totalorder %s37, 1
      %p238 = por %p236, %p237
      %p239 = scmp.ne.s32.totalorder %s230, %s231
      %p240 = scmp.eq.s32.totalorder %s37, 0
      %p241 = por %p239, %p240
      %p242 = scmp.ne.s32.totalorder %s230, %s231
      %p243 = scmp.eq.s32.totalorder %s38, 1
      %p244 = por %p242, %p243
      %p246 = scmp.ne.s32.totalorder %s231, %s245
      %p247 = scmp.eq.s32.totalorder %s38, 0
      %p248 = por %p246, %p247
      %s250 = sadd.s32 %s249, 1
      %p253 = scmp.eq.s32.totalorder %s32, 1
      %p254 = scmp.ne.s32.totalorder %s249, %s251
      %p255 = scmp.eq.s32.totalorder %s32, 0
      %p256 = por %p254, %p255
      %p257 = scmp.ne.s32.totalorder %s249, %s251
      %p258 = scmp.eq.s32.totalorder %s37, 1
      %p259 = por %p257, %p258
      %p260 = scmp.ne.s32.totalorder %s251, %s252
      %p261 = scmp.eq.s32.totalorder %s37, 0
      %p262 = por %p260, %p261
      %p263 = scmp.ne.s32.totalorder %s251, %s252
      %p264 = scmp.eq.s32.totalorder %s38, 1
      %p265 = por %p263, %p264
      %p267 = scmp.ne.s32.totalorder %s252, %s266
      %p268 = scmp.eq.s32.totalorder %s38, 0
      %p269 = por %p267, %p268
      %s271 = sadd.s32 %s270, 1
      %p274 = scmp.eq.s32.totalorder %s32, 1
      %p275 = scmp.ne.s32.totalorder %s270, %s272
      %p276 = scmp.eq.s32.totalorder %s32, 0
      %p277 = por %p275, %p276
      %p278 = scmp.ne.s32.totalorder %s270, %s272
      %p279 = scmp.eq.s32.totalorder %s37, 1
      %p280 = por %p278, %p279
      %p281 = scmp.ne.s32.totalorder %s272, %s273
      %p282 = scmp.eq.s32.totalorder %s37, 0
      %p283 = por %p281, %p282
      %p284 = scmp.ne.s32.totalorder %s272, %s273
      %p285 = scmp.eq.s32.totalorder %s38, 1
      %p286 = por %p284, %p285
      %p288 = scmp.ne.s32.totalorder %s273, %s287
      %p289 = scmp.eq.s32.totalorder %s38, 0
      %p290 = por %p288, %p289
      %s292 = sadd.s32 %s291, 1
      %p295 = scmp.eq.s32.totalorder %s32, 1
      %p296 = scmp.ne.s32.totalorder %s291, %s293
      %p297 = scmp.eq.s32.totalorder %s32, 0
      %p298 = por %p296, %p297
      %p299 = scmp.ne.s32.totalorder %s291, %s293
      %p300 = scmp.eq.s32.totalorder %s37, 1
      %p301 = por %p299, %p300
      %p302 = scmp.ne.s32.totalorder %s293, %s294
      %p303 = scmp.eq.s32.totalorder %s37, 0
      %p304 = por %p302, %p303
      %p305 = scmp.ne.s32.totalorder %s293, %s294
      %p306 = scmp.eq.s32.totalorder %s38, 1
      %p307 = por %p305, %p306
      %p309 = scmp.ne.s32.totalorder %s294, %s308
      %p310 = scmp.eq.s32.totalorder %s38, 0
      %p311 = por %p309, %p310
      %s313 = sadd.s32 %s312, 1
      %p316 = scmp.eq.s32.totalorder %s32, 1
      %p317 = scmp.ne.s32.totalorder %s312, %s314
      %p318 = scmp.eq.s32.totalorder %s32, 0
      %p319 = por %p317, %p318
      %p320 = scmp.ne.s32.totalorder %s312, %s314
      %p321 = scmp.eq.s32.totalorder %s37, 1
      %p322 = por %p320, %p321
      %p323 = scmp.ne.s32.totalorder %s314, %s315
      %p324 = scmp.eq.s32.totalorder %s37, 0
      %p325 = por %p323, %p324
      %p326 = scmp.ne.s32.totalorder %s314, %s315
      %p327 = scmp.eq.s32.totalorder %s38, 1
      %p328 = por %p326, %p327
      %p330 = scmp.ne.s32.totalorder %s315, %s329
      %p331 = scmp.eq.s32.totalorder %s38, 0
      %p332 = por %p330, %p331
      %s333 = ssub.s32 %s32, %s39
      %p334 = scmp.eq.s32.totalorder %s333, 0
      %s336 = sadd.s32 %s335, 1
      %s337 = scalar_select %p334, %s335, %s336
      %p340 = pneg %p334
      %p341 = scmp.eq.s32.totalorder %s32, 1
      %p342 = por %p340, %p341
      %p343 = scmp.ne.s32.totalorder %s335, %s338
      %p344 = scmp.eq.s32.totalorder %s32, 0
      %p345 = por %p343, %p344
      %p346 = scmp.ne.s32.totalorder %s335, %s338
      %p347 = scmp.eq.s32.totalorder %s37, 1
      %p348 = por %p346, %p347
      %p349 = scmp.ne.s32.totalorder %s338, %s339
      %p350 = scmp.eq.s32.totalorder %s37, 0
      %p351 = por %p349, %p350
      %p352 = scmp.ne.s32.totalorder %s338, %s339
      %p353 = scmp.eq.s32.totalorder %s38, 1
      %p354 = por %p352, %p353
      %p356 = scmp.ne.s32.totalorder %s339, %s355
      %p357 = scmp.eq.s32.totalorder %s38, 0
      %p358 = por %p356, %p357
      %p359 = scmp.le.s32.totalorder 1, %s32
      %p360 = scmp.lt.s32.totalorder %s32, 3
      %p361 = pnand %p359, %p360
      %p362 = pneg %p361
      // Predicated region
      $region9: #{tpu_custom_call.1} parent=5 // pred_check
        _
      $region10: #{tpu_custom_call.1} parent=5 // pred_check_branch
        %364 = sbr.rel (%p361) target = $region12
      $region11: #{tpu_custom_call.1} parent=5 // pred_region
        %s365 = ssub.s32 %s32, 1
        // Predicated region
        $region13: #{tpu_custom_call.1} parent=11 // pred_check
          %p366 = pneg %p157
        $region14: #{tpu_custom_call.1} parent=11 // pred_check_branch
          %368 = sbr.rel (%p366) target = $region16
        $region15: #{tpu_custom_call.1} parent=11 // pred_region
          %s370 = ssub.s32 256, 256
          %371 = vsyncadd [#allocation9], %s370
          %s372 = sshll.u32 [#allocation8], 4
          %s373 = int_to_ptr.vmem [resolvable:$true] %s372
          %378 = dma.hbm_to_vmem [thread:$0]  %s4, 256, %s373, [#allocation9], 128, 128, 8
        $region16: #{tpu_custom_call.1} parent=11 // pred_fallthru
          _
        // Predicated region
        $region17: #{tpu_custom_call.1} parent=11 // pred_check
          %p379 = pneg %p178
        $region18: #{tpu_custom_call.1} parent=11 // pred_check_branch
          %381 = sbr.rel (%p379) target = $region20
        $region19: #{tpu_custom_call.1} parent=11 // pred_region
          %s383 = ssub.s32 3072, 3072
          %384 = vsyncadd [#allocation9], %s383
          %s385 = sshll.u32 [#allocation10], 4
          %s386 = int_to_ptr.vmem [resolvable:$true] %s385
          %391 = dma.hbm_to_vmem [thread:$0]  %s5, 3072, %s386, [#allocation9], 192, 192, 12
        $region20: #{tpu_custom_call.1} parent=11 // pred_fallthru
          _
        // Predicated region
        $region21: #{tpu_custom_call.1} parent=11 // pred_check
          %p392 = pneg %p199
        $region22: #{tpu_custom_call.1} parent=11 // pred_check_branch
          %394 = sbr.rel (%p392) target = $region24
        $region23: #{tpu_custom_call.1} parent=11 // pred_region
          %s396 = ssub.s32 1024, 1024
          %397 = vsyncadd [#allocation12], %s396
          %s398 = sshll.u32 [#allocation11], 4
          %s399 = int_to_ptr.vmem [resolvable:$true] %s398
          %404 = dma.hbm_to_vmem [thread:$0]  %s6, 1024, %s399, [#allocation12], 64, 64, 4
        $region24: #{tpu_custom_call.1} parent=11 // pred_fallthru
          _
        // Predicated region
        $region25: #{tpu_custom_call.1} parent=11 // pred_check
          %p405 = pneg %p220
        $region26: #{tpu_custom_call.1} parent=11 // pred_check_branch
          %407 = sbr.rel (%p405) target = $region28
        $region27: #{tpu_custom_call.1} parent=11 // pred_region
          %s409 = ssub.s32 1024, 1024
          %410 = vsyncadd [#allocation12], %s409
          %s411 = sshll.u32 [#allocation13], 4
          %s412 = int_to_ptr.vmem [resolvable:$true] %s411
          %417 = dma.hbm_to_vmem [thread:$0]  %s7, 1024, %s412, [#allocation12], 64, 64, 4
        $region28: #{tpu_custom_call.1} parent=11 // pred_fallthru
          _
        // Predicated region
        $region29: #{tpu_custom_call.1} parent=11 // pred_check
          %p418 = pneg %p241
        $region30: #{tpu_custom_call.1} parent=11 // pred_check_branch
          %420 = sbr.rel (%p418) target = $region32
        $region31: #{tpu_custom_call.1} parent=11 // pred_region
          %s422 = ssub.s32 2048, 2048
          %423 = vsyncadd [#allocation15], %s422
          %s424 = sshll.u32 [#allocation14], 4
          %s425 = int_to_ptr.vmem [resolvable:$true] %s424
          %430 = dma.hbm_to_vmem [thread:$0]  %s8, 2048, %s425, [#allocation15], 128, 128, 8
        $region32: #{tpu_custom_call.1} parent=11 // pred_fallthru
          _
        // Predicated region
        $region33: #{tpu_custom_call.1} parent=11 // pred_check
          %p431 = pneg %p262
        $region34: #{tpu_custom_call.1} parent=11 // pred_check_branch
          %433 = sbr.rel (%p431) target = $region36
        $region35: #{tpu_custom_call.1} parent=11 // pred_region
          %s435 = ssub.s32 1024, 1024
          %436 = vsyncadd [#allocation15], %s435
          %s437 = sshll.u32 [#allocation16], 4
          %s438 = int_to_ptr.vmem [resolvable:$true] %s437
          %443 = dma.hbm_to_vmem [thread:$0]  %s9, 1024, %s438, [#allocation15], 64, 64, 4
        $region36: #{tpu_custom_call.1} parent=11 // pred_fallthru
          _
        // Predicated region
        $region37: #{tpu_custom_call.1} parent=11 // pred_check
          %p444 = pneg %p283
        $region38: #{tpu_custom_call.1} parent=11 // pred_check_branch
          %446 = sbr.rel (%p444) target = $region40
        $region39: #{tpu_custom_call.1} parent=11 // pred_region
          %s448 = ssub.s32 2048, 2048
          %449 = vsyncadd [#allocation18], %s448
          %s450 = sshll.u32 [#allocation17], 4
          %s451 = int_to_ptr.vmem [resolvable:$true] %s450
          %456 = dma.hbm_to_vmem [thread:$0]  %s10, 2048, %s451, [#allocation18], 128, 128, 8
        $region40: #{tpu_custom_call.1} parent=11 // pred_fallthru
          _
        // Predicated region
        $region41: #{tpu_custom_call.1} parent=11 // pred_check
          %p457 = pneg %p304
        $region42: #{tpu_custom_call.1} parent=11 // pred_check_branch
          %459 = sbr.rel (%p457) target = $region44
        $region43: #{tpu_custom_call.1} parent=11 // pred_region
          _
        $region44: #{tpu_custom_call.1} parent=11 // pred_fallthru
          _
        // Predicated region
        $region45: #{tpu_custom_call.1} parent=11 // pred_check
          %p460 = pneg %p325
        $region46: #{tpu_custom_call.1} parent=11 // pred_check_branch
          %462 = sbr.rel (%p460) target = $region48
        $region47: #{tpu_custom_call.1} parent=11 // pred_region
          %s464 = ssub.s32 2048, 2048
          %465 = vsyncadd [#allocation18], %s464
          %s466 = sshll.u32 [#allocation19], 4
          %s467 = int_to_ptr.vmem [resolvable:$true] %s466
          %472 = dma.hbm_to_vmem [thread:$0]  %s12, 2048, %s467, [#allocation18], 64, 64, 4
        $region48: #{tpu_custom_call.1} parent=11 // pred_fallthru
          _
      $region12: #{tpu_custom_call.1} parent=5 // pred_fallthru
        _
      %p473 = scmp.lt.s32.totalorder %s32, 2
      // Predicated region
      $region49: #{tpu_custom_call.1} parent=5 // pred_check
        %p474 = pneg %p473
      $region50: #{tpu_custom_call.1} parent=5 // pred_check_branch
        %476 = sbr.rel (%p474) target = $region52
      $region51: #{tpu_custom_call.1} parent=5 // pred_region
        // Predicated region
        $region53: #{tpu_custom_call.1} parent=51 // pred_check
          %p477 = pneg %p52
        $region54: #{tpu_custom_call.1} parent=51 // pred_check_branch
          %479 = sbr.rel (%p477) target = $region56
        $region55: #{tpu_custom_call.1} parent=51 // pred_region
          %s480 = sand.u32 %s42, 1
          %s481 = scalar_lea.sflag [#allocation3], %s480
          %s482 = sand.u32 %s42, 1
          %s483 = smul.addr %s482, 8
          %s484 = scalar_lea.vmem [#allocation2], %s483
          %s486 = ssub.s32 128, 128
          %487 = vsyncadd %s481, %s486
          %s488 = smul.addr %s32, 128
          %s489 = scalar_lea.hbm %s0, %s488
          %s491 = sshll.u32 %s484, 4
          %s492 = int_to_ptr.vmem [resolvable:$true] %s491
          %494 = dma.hbm_to_vmem [thread:$0]  %s489, 128, %s492, %s481
        $region56: #{tpu_custom_call.1} parent=51 // pred_fallthru
          _
        // Predicated region
        $region57: #{tpu_custom_call.1} parent=51 // pred_check
          %p495 = pneg %p78
        $region58: #{tpu_custom_call.1} parent=51 // pred_check_branch
          %497 = sbr.rel (%p495) target = $region60
        $region59: #{tpu_custom_call.1} parent=51 // pred_region
          %s498 = sand.u32 %s32, 1
          %s499 = scalar_lea.sflag [#allocation6], %s498
          %s500 = sand.u32 %s68, 1
          %s501 = smul.addr %s500, 8
          %s502 = scalar_lea.vmem [#allocation5], %s501
          %s504 = ssub.s32 128, 128
          %505 = vsyncadd %s499, %s504
          %s506 = smul.addr %s32, 128
          %s507 = scalar_lea.hbm %s1, %s506
          %s509 = sshll.u32 %s502, 4
          %s510 = int_to_ptr.vmem [resolvable:$true] %s509
          %512 = dma.hbm_to_vmem [thread:$0]  %s507, 128, %s510, %s499
        $region60: #{tpu_custom_call.1} parent=51 // pred_fallthru
          _
        // Predicated region
        $region61: #{tpu_custom_call.1} parent=51 // pred_check
          %p513 = pneg %p104
        $region62: #{tpu_custom_call.1} parent=51 // pred_check_branch
          %515 = sbr.rel (%p513) target = $region64
        $region63: #{tpu_custom_call.1} parent=51 // pred_region
          %s516 = sand.u32 %s32, 1
          %s517 = scalar_lea.sflag [#allocation6], %s516
          %s518 = sand.u32 %s94, 1
          %s519 = smul.addr %s518, 16
          %s520 = scalar_lea.vmem [#allocation7], %s519
          %s522 = ssub.s32 256, 256
          %523 = vsyncadd %s517, %s522
          %s524 = smul.addr %s32, 2
          %s525 = smul.addr %s524, 128
          %s526 = scalar_lea.hbm %s2, %s525
          %s527 = sshll.u32 %s520, 4
          %s528 = int_to_ptr.vmem [resolvable:$true] %s527
          %533 = dma.hbm_to_vmem [thread:$0]  %s526, 256, %s528, %s517, 128, 128, 8
        $region64: #{tpu_custom_call.1} parent=51 // pred_fallthru
          _
        // Predicated region
        $region65: #{tpu_custom_call.1} parent=51 // pred_check
          %p534 = pneg %p130
        $region66: #{tpu_custom_call.1} parent=51 // pred_check_branch
          %536 = sbr.rel (%p534) target = $region68
        $region67: #{tpu_custom_call.1} parent=51 // pred_region
          %p537 = scmp.lt.s32.totalorder %s32, 1
          %s538 = scalar_select %p537, %s32, 1
          %s539 = scalar_lea.vmem %s3, %s538
        $region68: #{tpu_custom_call.1} parent=51 // pred_fallthru
          _
      $region52: #{tpu_custom_call.1} parent=5 // pred_fallthru
        _
      %p540 = scmp.le.s32.totalorder 1, %s32
      %p541 = scmp.lt.s32.totalorder %s32, 3
      %p542 = pnand %p540, %p541
      %p543 = pneg %p542
      // Predicated region
      $region69: #{tpu_custom_call.1} parent=5 // pred_check
        _
      $region70: #{tpu_custom_call.1} parent=5 // pred_check_branch
        %545 = sbr.rel (%p542) target = $region72
      $region71: #{tpu_custom_call.1} parent=5 // pred_region
        %s546 = ssub.s32 %s32, 1
        %s547 = sand.u32 %s45, 1
        %s548 = scalar_lea.sflag [#allocation3], %s547
        %s549 = sand.u32 %s45, 1
        %s550 = smul.addr %s549, 8
        %s551 = scalar_lea.vmem [#allocation2], %s550
        // Predicated region
        $region73: #{tpu_custom_call.1} parent=71 // pred_check
          %p552 = pneg %p58
        $region74: #{tpu_custom_call.1} parent=71 // pred_check_branch
          %554 = sbr.rel (%p552) target = $region76
        $region75: #{tpu_custom_call.1} parent=71 // pred_region
          %555 = dma.done %s548, 128
        $region76: #{tpu_custom_call.1} parent=71 // pred_fallthru
          _
        %s556 = sand.u32 %s37, 1
        %s557 = scalar_lea.sflag [#allocation6], %s556
        %s558 = sand.u32 %s71, 1
        %s559 = smul.addr %s558, 8
        %s560 = scalar_lea.vmem [#allocation5], %s559
        // Predicated region
        $region77: #{tpu_custom_call.1} parent=71 // pred_check
          %p561 = pneg %p84
        $region78: #{tpu_custom_call.1} parent=71 // pred_check_branch
          %563 = sbr.rel (%p561) target = $region80
        $region79: #{tpu_custom_call.1} parent=71 // pred_region
          %564 = dma.done %s557, 128
        $region80: #{tpu_custom_call.1} parent=71 // pred_fallthru
          _
        %s565 = sand.u32 %s37, 1
        %s566 = scalar_lea.sflag [#allocation6], %s565
        %s567 = sand.u32 %s97, 1
        %s568 = smul.addr %s567, 16
        %s569 = scalar_lea.vmem [#allocation7], %s568
        // Predicated region
        $region81: #{tpu_custom_call.1} parent=71 // pred_check
          %p570 = pneg %p110
        $region82: #{tpu_custom_call.1} parent=71 // pred_check_branch
          %572 = sbr.rel (%p570) target = $region84
        $region83: #{tpu_custom_call.1} parent=71 // pred_region
          %573 = dma.done %s566, 256
        $region84: #{tpu_custom_call.1} parent=71 // pred_fallthru
          _
        // Predicated region
        $region85: #{tpu_custom_call.1} parent=71 // pred_check
          %p574 = pneg %p157
        $region86: #{tpu_custom_call.1} parent=71 // pred_check_branch
          %576 = sbr.rel (%p574) target = $region88
        $region87: #{tpu_custom_call.1} parent=71 // pred_region
          %577 = dma.done [#allocation9], 256
        $region88: #{tpu_custom_call.1} parent=71 // pred_fallthru
          _
        // Predicated region
        $region89: #{tpu_custom_call.1} parent=71 // pred_check
          %p578 = pneg %p178
        $region90: #{tpu_custom_call.1} parent=71 // pred_check_branch
          %580 = sbr.rel (%p578) target = $region92
        $region91: #{tpu_custom_call.1} parent=71 // pred_region
          %581 = dma.done [#allocation9], 3072
        $region92: #{tpu_custom_call.1} parent=71 // pred_fallthru
          _
        // Predicated region
        $region93: #{tpu_custom_call.1} parent=71 // pred_check
          %p582 = pneg %p199
        $region94: #{tpu_custom_call.1} parent=71 // pred_check_branch
          %584 = sbr.rel (%p582) target = $region96
        $region95: #{tpu_custom_call.1} parent=71 // pred_region
          %585 = dma.done [#allocation12], 1024
        $region96: #{tpu_custom_call.1} parent=71 // pred_fallthru
          _
        // Predicated region
        $region97: #{tpu_custom_call.1} parent=71 // pred_check
          %p586 = pneg %p220
        $region98: #{tpu_custom_call.1} parent=71 // pred_check_branch
          %588 = sbr.rel (%p586) target = $region100
        $region99: #{tpu_custom_call.1} parent=71 // pred_region
          %589 = dma.done [#allocation12], 1024
        $region100: #{tpu_custom_call.1} parent=71 // pred_fallthru
          _
        // Predicated region
        $region101: #{tpu_custom_call.1} parent=71 // pred_check
          %p590 = pneg %p241
        $region102: #{tpu_custom_call.1} parent=71 // pred_check_branch
          %592 = sbr.rel (%p590) target = $region104
        $region103: #{tpu_custom_call.1} parent=71 // pred_region
          %593 = dma.done [#allocation15], 2048
        $region104: #{tpu_custom_call.1} parent=71 // pred_fallthru
          _
        // Predicated region
        $region105: #{tpu_custom_call.1} parent=71 // pred_check
          %p594 = pneg %p262
        $region106: #{tpu_custom_call.1} parent=71 // pred_check_branch
          %596 = sbr.rel (%p594) target = $region108
        $region107: #{tpu_custom_call.1} parent=71 // pred_region
          %597 = dma.done [#allocation15], 1024
        $region108: #{tpu_custom_call.1} parent=71 // pred_fallthru
          _
        // Predicated region
        $region109: #{tpu_custom_call.1} parent=71 // pred_check
          %p598 = pneg %p283
        $region110: #{tpu_custom_call.1} parent=71 // pred_check_branch
          %600 = sbr.rel (%p598) target = $region112
        $region111: #{tpu_custom_call.1} parent=71 // pred_region
          %601 = dma.done [#allocation18], 2048
        $region112: #{tpu_custom_call.1} parent=71 // pred_fallthru
          _
        // Predicated region
        $region113: #{tpu_custom_call.1} parent=71 // pred_check
          %p602 = pneg %p325
        $region114: #{tpu_custom_call.1} parent=71 // pred_check_branch
          %604 = sbr.rel (%p602) target = $region116
        $region115: #{tpu_custom_call.1} parent=71 // pred_region
          %605 = dma.done [#allocation18], 2048
        $region116: #{tpu_custom_call.1} parent=71 // pred_fallthru
          _
        %s606 = sand.u32 %s45, 1
        %s607 = scalar_lea.sflag [#allocation3], %s606
        %s608 = sand.u32 %s45, 1
        %s609 = smul.addr %s608, 8
        %s610 = scalar_lea.vmem [#allocation2], %s609
        %p611 = pneg %p58
        %p612 = pneg %p55
        %s613 = sand.u32 %s37, 1
        %s614 = scalar_lea.sflag [#allocation6], %s613
        %s615 = sand.u32 %s71, 1
        %s616 = smul.addr %s615, 8
        %s617 = scalar_lea.vmem [#allocation5], %s616
        %p618 = pneg %p84
        %p619 = pneg %p81
        %s620 = sand.u32 %s37, 1
        %s621 = scalar_lea.sflag [#allocation6], %s620
        %s622 = sand.u32 %s97, 1
        %s623 = smul.addr %s622, 16
        %s624 = scalar_lea.vmem [#allocation7], %s623
        %p625 = pneg %p110
        %p626 = pneg %p107
        %p627 = scmp.lt.s32.totalorder %s37, 1
        %s628 = scalar_select %p627, %s37, 1
        %s629 = scalar_lea.vmem %s3, %s628
        %p630 = pneg %p136
        %p631 = pneg %p133
        %p632 = pneg %p157
        %p633 = pneg %p154
        %p634 = pneg %p178
        %p635 = pneg %p175
        %p636 = pneg %p199
        %p637 = pneg %p196
        %p638 = pneg %p220
        %p639 = pneg %p217
        %p640 = pneg %p241
        %p641 = pneg %p238
        %p642 = pneg %p262
        %p643 = pneg %p259
        %p644 = pneg %p283
        %p645 = pneg %p280
        %p646 = pneg %p304
        %p647 = pneg %p301
        %p648 = pneg %p325
        %p649 = pneg %p322
        %p650 = pneg %p351
        %p651 = pneg %p348
        %s652 = sand.u32 %s338, 1
        %s653 = scalar_lea.sflag [#allocation4], %s652
        %s654 = sand.u32 %s338, 1
        %s655 = smul.addr %s654, 8
        %s656 = scalar_lea.vmem [#allocation20], %s655
        %p657 = scmp.lt.s32.totalorder %s37, 1
        %s658 = scalar_select %p657, %s37, 1
        %s659 = scalar_lea.vmem %s3, %s658
        %v661 = vld [vmem:[#allocation8] sm:$0xff]
        %v662 = vld [vmem:[#allocation8 + $0x8] sm:$0x7f]
        %v663 = vld [vmem:[%s551] sm:$0xff]
        %v664 = vld [vmem:[%s569] sm:$0xff]
        %v665 = vld [vmem:[%s569 + $0x8] sm:$0xff]
        %v666 = vld [vmem:[%s560] sm:$0xff]
        %vm667 = vcmp.gt.f32.partialorder %v666, 0.5
        %v668 = vld [vmem:[%s659] sm:$0x1]
        %vm669 = vcmp.gt.f32.partialorder %v668, 0.5
        %670 = vadd.xlane.f32.xlu0 %v663
        %v671 = vpop.xlane.xlu0 %670
        %v672 = vrcp.pop 128.0
        %v673 = vmul.f32 %v671, %v672
        %v674 = vsub.f32 %v663, %v673
        %v675 = vmul.f32 %v674, %v674
        %676 = vadd.xlane.f32.xlu0 %v675
        %v677 = vpop.xlane.xlu0 %676
        %v678 = vmul.f32 %v677, %v672
        %v679 = vadd.f32 %v678, 1e-12
        %v680 = vrsqrt.pop %v679
        %v681 = vmul.f32 %v674, %v680
        %v682 = vlaneseq
        %v683 = vshrl.u32 %v682, 7
        %v684 = vsub.s32 0, %v683
        %v685 = vrot.slane %v661, %v684
        %v686 = vmul.f32 %v681, %v685
        %v687 = vlaneseq
        %v688 = vshrl.u32 %v687, 7
        %v689 = vsub.s32 1, %v688
        %v690 = vrot.slane %v661, %v689
        %v691 = vadd.f32 %v686, %v690
        %v692 = vld [vmem:[#allocation10] sm:$0xff]
        %v693 = vld [vmem:[#allocation10 + $0x8] sm:$0xf]
        %v694 = vld [vmem:[#allocation10 + $0xc] sm:$0xff]
        %v695 = vld [vmem:[#allocation10 + $0x14] sm:$0xf]
        %v696 = vld [vmem:[#allocation10 + $0x18] sm:$0xff]
        %v697 = vld [vmem:[#allocation10 + $0x20] sm:$0xf]
        %v698 = vld [vmem:[#allocation10 + $0x24] sm:$0xff]
        %v699 = vld [vmem:[#allocation10 + $0x2c] sm:$0xf]
        %v700 = vld [vmem:[#allocation10 + $0x30] sm:$0xff]
        %v701 = vld [vmem:[#allocation10 + $0x38] sm:$0xf]
        %v702 = vld [vmem:[#allocation10 + $0x3c] sm:$0xff]
        %v703 = vld [vmem:[#allocation10 + $0x44] sm:$0xf]
        %v704 = vld [vmem:[#allocation10 + $0x48] sm:$0xff]
        %v705 = vld [vmem:[#allocation10 + $0x50] sm:$0xf]
        %v706 = vld [vmem:[#allocation10 + $0x54] sm:$0xff]
        %v707 = vld [vmem:[#allocation10 + $0x5c] sm:$0xf]
        %v708 = vld [vmem:[#allocation10 + $0x60] sm:$0xff]
        %v709 = vld [vmem:[#allocation10 + $0x68] sm:$0xf]
        %v710 = vld [vmem:[#allocation10 + $0x6c] sm:$0xff]
        %v711 = vld [vmem:[#allocation10 + $0x74] sm:$0xf]
        %v712 = vld [vmem:[#allocation10 + $0x78] sm:$0xff]
        %v713 = vld [vmem:[#allocation10 + $0x80] sm:$0xf]
        %v714 = vld [vmem:[#allocation10 + $0x84] sm:$0xff]
        %v715 = vld [vmem:[#allocation10 + $0x8c] sm:$0xf]
        %v716 = vld [vmem:[#allocation10 + $0x90] sm:$0xff]
        %v717 = vld [vmem:[#allocation10 + $0x98] sm:$0xf]
        %v718 = vld [vmem:[#allocation10 + $0x9c] sm:$0xff]
        %v719 = vld [vmem:[#allocation10 + $0xa4] sm:$0xf]
        %v720 = vld [vmem:[#allocation10 + $0xa8] sm:$0xff]
        %v721 = vld [vmem:[#allocation10 + $0xb0] sm:$0xf]
        %v722 = vld [vmem:[#allocation10 + $0xb4] sm:$0xff]
        %v723 = vld [vmem:[#allocation10 + $0xbc] sm:$0xf]
        %v724 = vpack.c.bf16 %v691, %v691
        %v757 = vunpack.c.l.b16 %v692
        %v758 = vunpack.c.h.b16 %v692
        %v759 = vunpack.c.l.b16 %v693
        %v760 = vunpack.c.l.b16 %v694
        %v761 = vunpack.c.h.b16 %v694
        %v762 = vunpack.c.l.b16 %v695
        %v763 = vunpack.c.l.b16 %v696
        %v764 = vunpack.c.h.b16 %v696
        %v765 = vunpack.c.l.b16 %v697
        %v766 = vunpack.c.l.b16 %v698
        %v767 = vunpack.c.h.b16 %v698
        %v768 = vunpack.c.l.b16 %v699
        %v769 = vunpack.c.l.b16 %v700
        %v770 = vunpack.c.h.b16 %v700
        %v771 = vunpack.c.l.b16 %v701
        %v772 = vunpack.c.l.b16 %v702
        %v773 = vunpack.c.h.b16 %v702
        %v774 = vunpack.c.l.b16 %v703
        %v775 = vunpack.c.l.b16 %v704
        %v776 = vunpack.c.h.b16 %v704
        %v777 = vunpack.c.l.b16 %v705
        %v778 = vunpack.c.l.b16 %v706
        %v779 = vunpack.c.h.b16 %v706
        %v780 = vunpack.c.l.b16 %v707
        %v781 = vunpack.c.l.b16 %v708
        %v782 = vunpack.c.h.b16 %v708
        %v783 = vunpack.c.l.b16 %v709
        %v784 = vunpack.c.l.b16 %v710
        %v785 = vunpack.c.h.b16 %v710
        %v786 = vunpack.c.l.b16 %v711
        %v787 = vunpack.c.l.b16 %v712
        %v788 = vunpack.c.h.b16 %v712
        %v789 = vunpack.c.l.b16 %v713
        %v790 = vunpack.c.l.b16 %v714
        %v791 = vunpack.c.h.b16 %v714
        %v792 = vunpack.c.l.b16 %v715
        %v793 = vunpack.c.l.b16 %v716
        %v794 = vunpack.c.h.b16 %v716
        %v795 = vunpack.c.l.b16 %v717
        %v796 = vunpack.c.l.b16 %v718
        %v797 = vunpack.c.h.b16 %v718
        %v798 = vunpack.c.l.b16 %v719
        %v799 = vunpack.c.l.b16 %v720
        %v800 = vunpack.c.h.b16 %v720
        %v801 = vunpack.c.l.b16 %v721
        %v802 = vunpack.c.l.b16 %v722
        %v803 = vunpack.c.h.b16 %v722
        %v804 = vunpack.c.l.b16 %v723
        %v805 = vpack.c.b16 %v760, %v757
        %v806 = vpack.c.b16 %v761, %v758
        %v807 = vpack.c.b16 %v762, %v759
        %v808 = vpack.c.b16 %v766, %v763
        %v809 = vpack.c.b16 %v767, %v764
        %v810 = vpack.c.b16 %v768, %v765
        %v811 = vpack.c.b16 %v772, %v769
        %v812 = vpack.c.b16 %v773, %v770
        %v813 = vpack.c.b16 %v774, %v771
        %v814 = vpack.c.b16 %v778, %v775
        %v815 = vpack.c.b16 %v779, %v776
        %v816 = vpack.c.b16 %v780, %v777
        %v817 = vpack.c.b16 %v784, %v781
        %v818 = vpack.c.b16 %v785, %v782
        %v819 = vpack.c.b16 %v786, %v783
        %v820 = vpack.c.b16 %v790, %v787
        %v821 = vpack.c.b16 %v791, %v788
        %v822 = vpack.c.b16 %v792, %v789
        %v823 = vpack.c.b16 %v796, %v793
        %v824 = vpack.c.b16 %v797, %v794
        %v825 = vpack.c.b16 %v798, %v795
        %v826 = vpack.c.b16 %v802, %v799
        %v827 = vpack.c.b16 %v803, %v800
        %v828 = vpack.c.b16 %v804, %v801
        %853 = vmatprep.subr.bf16.mxu0 %v806
        %854 = vmatpush1.bf16.msra.mxu0 %v805
        %855 = vmatprep.subr.bf16.mxu0 %v809
        %856 = vmatpush1.bf16.msra.mxu0 %v808
        %857 = vmatprep.subr.bf16.mxu0 %v812
        %858 = vmatpush1.bf16.msra.mxu0 %v811
        %859 = vmatprep.subr.bf16.mxu0 %v815
        %860 = vmatpush1.bf16.msra.mxu0 %v814
        %861 = vmatprep.subr.bf16.mxu0 %v818
        %862 = vmatpush1.bf16.msra.mxu0 %v817
        %863 = vmatprep.subr.bf16.mxu0 %v821
        %864 = vmatpush1.bf16.msra.mxu0 %v820
        %865 = vmatprep.subr.bf16.mxu0 %v824
        %866 = vmatpush1.bf16.msra.mxu0 %v823
        %867 = vmatprep.subr.bf16.mxu0 %v827
        %868 = vmatpush1.bf16.msra.mxu0 %v826
        %869 = vmatprep.subr.bf16.mxu0 0
        %870 = vmatpush1.bf16.msra.mxu0 0
        %871 = vmatprep.subr.bf16.mxu0 0
        %872 = vmatpush1.bf16.msra.mxu0 0
        %873 = vmatprep.subr.bf16.mxu0 0
        %874 = vmatpush1.bf16.msra.mxu0 0
        %875 = vmatprep.subr.bf16.mxu0 0
        %876 = vmatpush1.bf16.msra.mxu0 0
        %877 = vmatprep.subr.bf16.mxu0 0
        %878 = vmatpush1.bf16.msra.mxu0 0
        %879 = vmatprep.subr.bf16.mxu0 0
        %880 = vmatpush1.bf16.msra.mxu0 0
        %881 = vmatprep.subr.bf16.mxu0 0
        %882 = vmatpush1.bf16.msra.mxu0 0
        %883 = vmatprep.subr.bf16.mxu0 0
        %884 = vmatpush1.bf16.msra.mxu0 0
        %885 = vmatprep.mubr.bf16.mxu0 0
        %886 = vmatmul.mubr.bf16.gmra.mrb[0].mxu0 %v724
        %v887 = vpop.f32.mrb[0].mxu0
        %v888 = vadd.f32 0.0, %v887
        %v889 = vpop.f32.mrb[0].mxu0
        %v890 = vadd.f32 0.0, %v889
        %v891 = vpop.f32.mrb[0].mxu0
        %v892 = vpop.f32.mrb[0].mxu0
        %893 = vdwg.mxu0
        %894 = vmatprep.subr.bf16.mxu0 0
        %895 = vmatpush1.bf16.msra.mxu0 %v807
        %896 = vmatprep.subr.bf16.mxu0 0
        %897 = vmatpush1.bf16.msra.mxu0 %v810
        %898 = vmatprep.subr.bf16.mxu0 0
        %899 = vmatpush1.bf16.msra.mxu0 %v813
        %900 = vmatprep.subr.bf16.mxu0 0
        %901 = vmatpush1.bf16.msra.mxu0 %v816
        %902 = vmatprep.subr.bf16.mxu0 0
        %903 = vmatpush1.bf16.msra.mxu0 %v819
        %904 = vmatprep.subr.bf16.mxu0 0
        %905 = vmatpush1.bf16.msra.mxu0 %v822
        %906 = vmatprep.subr.bf16.mxu0 0
        %907 = vmatpush1.bf16.msra.mxu0 %v825
        %908 = vmatprep.subr.bf16.mxu0 0
        %909 = vmatpush1.bf16.msra.mxu0 %v828
        %910 = vmatprep.subr.bf16.mxu0 0
        %911 = vmatpush1.bf16.msra.mxu0 0
        %912 = vmatprep.subr.bf16.mxu0 0
        %913 = vmatpush1.bf16.msra.mxu0 0
        %914 = vmatprep.subr.bf16.mxu0 0
        %915 = vmatpush1.bf16.msra.mxu0 0
        %916 = vmatprep.subr.bf16.mxu0 0
        %917 = vmatpush1.bf16.msra.mxu0 0
        %918 = vmatprep.subr.bf16.mxu0 0
        %919 = vmatpush1.bf16.msra.mxu0 0
        %920 = vmatprep.subr.bf16.mxu0 0
        %921 = vmatpush1.bf16.msra.mxu0 0
        %922 = vmatprep.subr.bf16.mxu0 0
        %923 = vmatpush1.bf16.msra.mxu0 0
        %924 = vmatprep.subr.bf16.mxu0 0
        %925 = vmatpush1.bf16.msra.mxu0 0
        %926 = vmatprep.mubr.bf16.mxu0 0
        %927 = vmatmul.mubr.bf16.gmra.mrb[0].mxu0 %v724
        %v928 = vpop.f32.mrb[0].mxu0
        %v929 = vadd.f32 0.0, %v928
        %v930 = vpop.f32.mrb[0].mxu0
        %v931 = vpop.f32.mrb[0].mxu0
        %v932 = vpop.f32.mrb[0].mxu0
        %933 = vdwg.mxu0
        %v934 = vlaneseq
        %v935 = vshrl.u32 %v934, 7
        %v936 = vsub.s32 6, %v935
        %v937 = vrot.slane %v661, %v936
        %v938 = vadd.f32 %v888, %v937
        %v939 = vlaneseq
        %v940 = vshrl.u32 %v939, 7
        %v941 = vsub.s32 7, %v940
        %v942 = vrot.slane %v661, %v941
        %v943 = vadd.f32 %v890, %v942
        %v944 = vlaneseq
        %v945 = vshrl.u32 %v944, 7
        %v946 = vsub.s32 0, %v945
        %v947 = vrot.slane %v662, %v946
        %v948 = vadd.f32 %v929, %v947
        %v949 = vpack.c.bf16 %v938, %v938
        %v950 = vpack.c.bf16 %v943, %v943
        %v951 = vpack.c.bf16 %v948, %v948
        %vm952 = vcmask 261120
        %v954 = vsel %vm952, %v949, 0
        %v957 = vsel %vm952, %v950, 0
        %959 = vmatprep.subr.bf16.mxu0 0
        %960 = vmatpush1.bf16.xpose.msra.mxu0 %v957
        %961 = vmatprep.subr.bf16.mxu0 0
        %962 = vmatpush1.bf16.xpose.msra.mxu0 0
        %963 = vmatprep.subr.bf16.mxu0 0
        %964 = vmatpush1.bf16.xpose.msra.mxu0 0
        %965 = vmatprep.subr.bf16.mxu0 0
        %966 = vmatpush1.bf16.xpose.msra.mxu0 0
        %967 = vmatprep.subr.bf16.mxu0 0
        %968 = vmatpush1.bf16.xpose.msra.mxu0 0
        %969 = vmatprep.subr.bf16.mxu0 0
        %970 = vmatpush1.bf16.xpose.msra.mxu0 0
        %971 = vmatprep.subr.bf16.mxu0 0
        %972 = vmatpush1.bf16.xpose.msra.mxu0 0
        %973 = vmatprep.subr.bf16.mxu0 0
        %974 = vmatpush1.bf16.xpose.msra.mxu0 0
        %975 = vmatprep.subr.bf16.mxu0 0
        %976 = vmatpush1.bf16.xpose.msra.mxu0 0
        %977 = vmatprep.subr.bf16.mxu0 0
        %978 = vmatpush1.bf16.xpose.msra.mxu0 0
        %979 = vmatprep.subr.bf16.mxu0 0
        %980 = vmatpush1.bf16.xpose.msra.mxu0 0
        %981 = vmatprep.subr.bf16.mxu0 0
        %982 = vmatpush1.bf16.xpose.msra.mxu0 0
        %983 = vmatprep.subr.bf16.mxu0 0
        %984 = vmatpush1.bf16.xpose.msra.mxu0 0
        %985 = vmatprep.subr.bf16.mxu0 0
        %986 = vmatpush1.bf16.xpose.msra.mxu0 0
        %987 = vmatprep.subr.bf16.mxu0 0
        %988 = vmatpush1.bf16.xpose.msra.mxu0 0
        %989 = vmatprep.subr.bf16.mxu0 0
        %990 = vmatpush1.bf16.xpose.msra.mxu0 0
        %991 = vmatprep.mubr.bf16.mxu0 0
        %992 = vmatmul.mubr.bf16.gmra.mrb[0].mxu0 %v954
        %v993 = vpop.f32.mrb[0].mxu0
        %v994 = vadd.f32 0.0, %v993
        %v995 = vpop.f32.mrb[0].mxu0
        %v996 = vpop.f32.mrb[0].mxu0
        %v997 = vpop.f32.mrb[0].mxu0
        %998 = vdwg.mxu0
        %v999 = vmul.f32 %v994, 0.17677669
        %v1000 = vsel %vm667, %v999, -1e+30
        %vm1001 = vcmask 64512
        %v1002 = vsel %vm1001, %v1000, -inf
        %1003 = vmax.xlane.f32.xlu0 %v1002
        %v1004 = vpop.xlane.xlu0 %1003
        %v1005 = vsub.f32 %v1000, %v1004
        %v1006 = vmul.f32 %v1005, 1.442695
        %v1007 = vpow.pop %v1006
        %v1008 = vsel %vm1001, %v1007, 0.0
        %1009 = vadd.xlane.f32.xlu0 %v1008
        %v1010 = vpop.xlane.xlu0 %1009
        %v1011 = vrcp.pop %v1010
        %v1012 = vmul.f32 %v1007, %v1011
        %v1013 = vsel %vm667, %v1012, 0.0
        %v1014 = vpack.c.bf16 %v1013, %v1013
        %v1016 = vsel %vm1001, %v1014, 0
        %vm1018 = vcmask 1043456
        %v1020 = vsel %vm1018, %v951, 0
        %1022 = vmatprep.subr.bf16.mxu0 0
        %1023 = vmatpush1.bf16.msra.mxu0 %v1020
        %1024 = vmatprep.subr.bf16.mxu0 0
        %1025 = vmatpush1.bf16.msra.mxu0 0
        %1026 = vmatprep.subr.bf16.mxu0 0
        %1027 = vmatpush1.bf16.msra.mxu0 0
        %1028 = vmatprep.subr.bf16.mxu0 0
        %1029 = vmatpush1.bf16.msra.mxu0 0
        %1030 = vmatprep.subr.bf16.mxu0 0
        %1031 = vmatpush1.bf16.msra.mxu0 0
        %1032 = vmatprep.subr.bf16.mxu0 0
        %1033 = vmatpush1.bf16.msra.mxu0 0
        %1034 = vmatprep.subr.bf16.mxu0 0
        %1035 = vmatpush1.bf16.msra.mxu0 0
        %1036 = vmatprep.subr.bf16.mxu0 0
        %1037 = vmatpush1.bf16.msra.mxu0 0
        %1038 = vmatprep.subr.bf16.mxu0 0
        %1039 = vmatpush1.bf16.msra.mxu0 0
        %1040 = vmatprep.subr.bf16.mxu0 0
        %1041 = vmatpush1.bf16.msra.mxu0 0
        %1042 = vmatprep.subr.bf16.mxu0 0
        %1043 = vmatpush1.bf16.msra.mxu0 0
        %1044 = vmatprep.subr.bf16.mxu0 0
        %1045 = vmatpush1.bf16.msra.mxu0 0
        %1046 = vmatprep.subr.bf16.mxu0 0
        %1047 = vmatpush1.bf16.msra.mxu0 0
        %1048 = vmatprep.subr.bf16.mxu0 0
        %1049 = vmatpush1.bf16.msra.mxu0 0
        %1050 = vmatprep.subr.bf16.mxu0 0
        %1051 = vmatpush1.bf16.msra.mxu0 0
        %1052 = vmatprep.subr.bf16.mxu0 0
        %1053 = vmatpush1.bf16.msra.mxu0 0
        %1054 = vmatprep.mubr.bf16.mxu0 0
        %1055 = vmatmul.mubr.bf16.gmra.mrb[0].mxu0 %v1016
        %v1056 = vpop.f32.mrb[0].mxu0
        %v1057 = vadd.f32 0.0, %v1056
        %v1058 = vpop.f32.mrb[0].mxu0
        %v1059 = vpop.f32.mrb[0].mxu0
        %v1060 = vpop.f32.mrb[0].mxu0
        %1061 = vdwg.mxu0
        %1063 = vrot.lane.b32.xlu0 %v949, 96
        %v1064 = vpop.permute.xlu0 %1063
        %1066 = vrot.lane.b32.xlu0 %v950, 96
        %v1067 = vpop.permute.xlu0 %1066
        %v1069 = vsel %vm952, %v1064, 0
        %v1072 = vsel %vm952, %v1067, 0
        %1074 = vmatprep.subr.bf16.mxu0 0
        %1075 = vmatpush1.bf16.xpose.msra.mxu0 %v1072
        %1076 = vmatprep.subr.bf16.mxu0 0
        %1077 = vmatpush1.bf16.xpose.msra.mxu0 0
        %1078 = vmatprep.subr.bf16.mxu0 0
        %1079 = vmatpush1.bf16.xpose.msra.mxu0 0
        %1080 = vmatprep.subr.bf16.mxu0 0
        %1081 = vmatpush1.bf16.xpose.msra.mxu0 0
        %1082 = vmatprep.subr.bf16.mxu0 0
        %1083 = vmatpush1.bf16.xpose.msra.mxu0 0
        %1084 = vmatprep.subr.bf16.mxu0 0
        %1085 = vmatpush1.bf16.xpose.msra.mxu0 0
        %1086 = vmatprep.subr.bf16.mxu0 0
        %1087 = vmatpush1.bf16.xpose.msra.mxu0 0
        %1088 = vmatprep.subr.bf16.mxu0 0
        %1089 = vmatpush1.bf16.xpose.msra.mxu0 0
        %1090 = vmatprep.subr.bf16.mxu0 0
        %1091 = vmatpush1.bf16.xpose.msra.mxu0 0
        %1092 = vmatprep.subr.bf16.mxu0 0
        %1093 = vmatpush1.bf16.xpose.msra.mxu0 0
        %1094 = vmatprep.subr.bf16.mxu0 0
        %1095 = vmatpush1.bf16.xpose.msra.mxu0 0
        %1096 = vmatprep.subr.bf16.mxu0 0
        %1097 = vmatpush1.bf16.xpose.msra.mxu0 0
        %1098 = vmatprep.subr.bf16.mxu0 0
        %1099 = vmatpush1.bf16.xpose.msra.mxu0 0
        %1100 = vmatprep.subr.bf16.mxu0 0
        %1101 = vmatpush1.bf16.xpose.msra.mxu0 0
        %1102 = vmatprep.subr.bf16.mxu0 0
        %1103 = vmatpush1.bf16.xpose.msra.mxu0 0
        %1104 = vmatprep.subr.bf16.mxu0 0
        %1105 = vmatpush1.bf16.xpose.msra.mxu0 0
        %1106 = vmatprep.mubr.bf16.mxu0 0
        %1107 = vmatmul.mubr.bf16.gmra.mrb[0].mxu0 %v1069
        %v1108 = vpop.f32.mrb[0].mxu0
        %v1109 = vadd.f32 0.0, %v1108
        %v1110 = vpop.f32.mrb[0].mxu0
        %v1111 = vpop.f32.mrb[0].mxu0
        %v1112 = vpop.f32.mrb[0].mxu0
        %1113 = vdwg.mxu0
        %v1114 = vmul.f32 %v1109, 0.17677669
        %v1115 = vsel %vm667, %v1114, -1e+30
        %v1116 = vsel %vm1001, %v1115, -inf
        %1117 = vmax.xlane.f32.xlu0 %v1116
        %v1118 = vpop.xlane.xlu0 %1117
        %v1119 = vsub.f32 %v1115, %v1118
        %v1120 = vmul.f32 %v1119, 1.442695
        %v1121 = vpow.pop %v1120
        %v1122 = vsel %vm1001, %v1121, 0.0
        %1123 = vadd.xlane.f32.xlu0 %v1122
        %v1124 = vpop.xlane.xlu0 %1123
        %v1125 = vrcp.pop %v1124
        %v1126 = vmul.f32 %v1121, %v1125
        %v1127 = vsel %vm667, %v1126, 0.0
        %v1128 = vpack.c.bf16 %v1127, %v1127
        %1130 = vrot.lane.b32.xlu0 %v951, 96
        %v1131 = vpop.permute.xlu0 %1130
        %v1133 = vsel %vm1001, %v1128, 0
        %v1136 = vsel %vm1018, %v1131, 0
        %1138 = vmatprep.subr.bf16.mxu0 0
        %1139 = vmatpush1.bf16.msra.mxu0 %v1136
        %1140 = vmatprep.subr.bf16.mxu0 0
        %1141 = vmatpush1.bf16.msra.mxu0 0
        %1142 = vmatprep.subr.bf16.mxu0 0
        %1143 = vmatpush1.bf16.msra.mxu0 0
        %1144 = vmatprep.subr.bf16.mxu0 0
        %1145 = vmatpush1.bf16.msra.mxu0 0
        %1146 = vmatprep.subr.bf16.mxu0 0
        %1147 = vmatpush1.bf16.msra.mxu0 0
        %1148 = vmatprep.subr.bf16.mxu0 0
        %1149 = vmatpush1.bf16.msra.mxu0 0
        %1150 = vmatprep.subr.bf16.mxu0 0
        %1151 = vmatpush1.bf16.msra.mxu0 0
        %1152 = vmatprep.subr.bf16.mxu0 0
        %1153 = vmatpush1.bf16.msra.mxu0 0
        %1154 = vmatprep.subr.bf16.mxu0 0
        %1155 = vmatpush1.bf16.msra.mxu0 0
        %1156 = vmatprep.subr.bf16.mxu0 0
        %1157 = vmatpush1.bf16.msra.mxu0 0
        %1158 = vmatprep.subr.bf16.mxu0 0
        %1159 = vmatpush1.bf16.msra.mxu0 0
        %1160 = vmatprep.subr.bf16.mxu0 0
        %1161 = vmatpush1.bf16.msra.mxu0 0
        %1162 = vmatprep.subr.bf16.mxu0 0
        %1163 = vmatpush1.bf16.msra.mxu0 0
        %1164 = vmatprep.subr.bf16.mxu0 0
        %1165 = vmatpush1.bf16.msra.mxu0 0
        %1166 = vmatprep.subr.bf16.mxu0 0
        %1167 = vmatpush1.bf16.msra.mxu0 0
        %1168 = vmatprep.subr.bf16.mxu0 0
        %1169 = vmatpush1.bf16.msra.mxu0 0
        %1170 = vmatprep.mubr.bf16.mxu0 0
        %1171 = vmatmul.mubr.bf16.gmra.mrb[0].mxu0 %v1133
        %v1172 = vpop.f32.mrb[0].mxu0
        %v1173 = vadd.f32 0.0, %v1172
        %v1174 = vpop.f32.mrb[0].mxu0
        %v1175 = vpop.f32.mrb[0].mxu0
        %v1176 = vpop.f32.mrb[0].mxu0
        %1177 = vdwg.mxu0
        %1178 = vrot.lane.b32.xlu0 %v949, 64
        %v1179 = vpop.permute.xlu0 %1178
        %1180 = vrot.lane.b32.xlu0 %v950, 64
        %v1181 = vpop.permute.xlu0 %1180
        %v1183 = vsel %vm952, %v1179, 0
        %v1186 = vsel %vm952, %v1181, 0
        %1188 = vmatprep.subr.bf16.mxu0 0
        %1189 = vmatpush1.bf16.xpose.msra.mxu0 %v1186
        %1190 = vmatprep.subr.bf16.mxu0 0
        %1191 = vmatpush1.bf16.xpose.msra.mxu0 0
        %1192 = vmatprep.subr.bf16.mxu0 0
        %1193 = vmatpush1.bf16.xpose.msra.mxu0 0
        %1194 = vmatprep.subr.bf16.mxu0 0
        %1195 = vmatpush1.bf16.xpose.msra.mxu0 0
        %1196 = vmatprep.subr.bf16.mxu0 0
        %1197 = vmatpush1.bf16.xpose.msra.mxu0 0
        %1198 = vmatprep.subr.bf16.mxu0 0
        %1199 = vmatpush1.bf16.xpose.msra.mxu0 0
        %1200 = vmatprep.subr.bf16.mxu0 0
        %1201 = vmatpush1.bf16.xpose.msra.mxu0 0
        %1202 = vmatprep.subr.bf16.mxu0 0
        %1203 = vmatpush1.bf16.xpose.msra.mxu0 0
        %1204 = vmatprep.subr.bf16.mxu0 0
        %1205 = vmatpush1.bf16.xpose.msra.mxu0 0
        %1206 = vmatprep.subr.bf16.mxu0 0
        %1207 = vmatpush1.bf16.xpose.msra.mxu0 0
        %1208 = vmatprep.subr.bf16.mxu0 0
        %1209 = vmatpush1.bf16.xpose.msra.mxu0 0
        %1210 = vmatprep.subr.bf16.mxu0 0
        %1211 = vmatpush1.bf16.xpose.msra.mxu0 0
        %1212 = vmatprep.subr.bf16.mxu0 0
        %1213 = vmatpush1.bf16.xpose.msra.mxu0 0
        %1214 = vmatprep.subr.bf16.mxu0 0
        %1215 = vmatpush1.bf16.xpose.msra.mxu0 0
        %1216 = vmatprep.subr.bf16.mxu0 0
        %1217 = vmatpush1.bf16.xpose.msra.mxu0 0
        %1218 = vmatprep.subr.bf16.mxu0 0
        %1219 = vmatpush1.bf16.xpose.msra.mxu0 0
        %1220 = vmatprep.mubr.bf16.mxu0 0
        %1221 = vmatmul.mubr.bf16.gmra.mrb[0].mxu0 %v1183
        %v1222 = vpop.f32.mrb[0].mxu0
        %v1223 = vadd.f32 0.0, %v1222
        %v1224 = vpop.f32.mrb[0].mxu0
        %v1225 = vpop.f32.mrb[0].mxu0
        %v1226 = vpop.f32.mrb[0].mxu0
        %1227 = vdwg.mxu0
        %v1228 = vmul.f32 %v1223, 0.17677669
        %v1229 = vsel %vm667, %v1228, -1e+30
        %v1230 = vsel %vm1001, %v1229, -inf
        %1231 = vmax.xlane.f32.xlu0 %v1230
        %v1232 = vpop.xlane.xlu0 %1231
        %v1233 = vsub.f32 %v1229, %v1232
        %v1234 = vmul.f32 %v1233, 1.442695
        %v1235 = vpow.pop %v1234
        %v1236 = vsel %vm1001, %v1235, 0.0
        %1237 = vadd.xlane.f32.xlu0 %v1236
        %v1238 = vpop.xlane.xlu0 %1237
        %v1239 = vrcp.pop %v1238
        %v1240 = vmul.f32 %v1235, %v1239
        %v1241 = vsel %vm667, %v1240, 0.0
        %v1242 = vpack.c.bf16 %v1241, %v1241
        %1243 = vrot.lane.b32.xlu0 %v951, 64
        %v1244 = vpop.permute.xlu0 %1243
        %v1246 = vsel %vm1001, %v1242, 0
        %v1249 = vsel %vm1018, %v1244, 0
        %1251 = vmatprep.subr.bf16.mxu0 0
        %1252 = vmatpush1.bf16.msra.mxu0 %v1249
        %1253 = vmatprep.subr.bf16.mxu0 0
        %1254 = vmatpush1.bf16.msra.mxu0 0
        %1255 = vmatprep.subr.bf16.mxu0 0
        %1256 = vmatpush1.bf16.msra.mxu0 0
        %1257 = vmatprep.subr.bf16.mxu0 0
        %1258 = vmatpush1.bf16.msra.mxu0 0
        %1259 = vmatprep.subr.bf16.mxu0 0
        %1260 = vmatpush1.bf16.msra.mxu0 0
        %1261 = vmatprep.subr.bf16.mxu0 0
        %1262 = vmatpush1.bf16.msra.mxu0 0
        %1263 = vmatprep.subr.bf16.mxu0 0
        %1264 = vmatpush1.bf16.msra.mxu0 0
        %1265 = vmatprep.subr.bf16.mxu0 0
        %1266 = vmatpush1.bf16.msra.mxu0 0
        %1267 = vmatprep.subr.bf16.mxu0 0
        %1268 = vmatpush1.bf16.msra.mxu0 0
        %1269 = vmatprep.subr.bf16.mxu0 0
        %1270 = vmatpush1.bf16.msra.mxu0 0
        %1271 = vmatprep.subr.bf16.mxu0 0
        %1272 = vmatpush1.bf16.msra.mxu0 0
        %1273 = vmatprep.subr.bf16.mxu0 0
        %1274 = vmatpush1.bf16.msra.mxu0 0
        %1275 = vmatprep.subr.bf16.mxu0 0
        %1276 = vmatpush1.bf16.msra.mxu0 0
        %1277 = vmatprep.subr.bf16.mxu0 0
        %1278 = vmatpush1.bf16.msra.mxu0 0
        %1279 = vmatprep.subr.bf16.mxu0 0
        %1280 = vmatpush1.bf16.msra.mxu0 0
        %1281 = vmatprep.subr.bf16.mxu0 0
        %1282 = vmatpush1.bf16.msra.mxu0 0
        %1283 = vmatprep.mubr.bf16.mxu0 0
        %1284 = vmatmul.mubr.bf16.gmra.mrb[0].mxu0 %v1246
        %v1285 = vpop.f32.mrb[0].mxu0
        %v1286 = vadd.f32 0.0, %v1285
        %v1287 = vpop.f32.mrb[0].mxu0
        %v1288 = vpop.f32.mrb[0].mxu0
        %v1289 = vpop.f32.mrb[0].mxu0
        %1290 = vdwg.mxu0
        %1291 = vrot.lane.b32.xlu0 %v949, 32
        %v1292 = vpop.permute.xlu0 %1291
        %1293 = vrot.lane.b32.xlu0 %v950, 32
        %v1294 = vpop.permute.xlu0 %1293
        %v1296 = vsel %vm952, %v1292, 0
        %v1299 = vsel %vm952, %v1294, 0
        %1301 = vmatprep.subr.bf16.mxu0 0
        %1302 = vmatpush1.bf16.xpose.msra.mxu0 %v1299
        %1303 = vmatprep.subr.bf16.mxu0 0
        %1304 = vmatpush1.bf16.xpose.msra.mxu0 0
        %1305 = vmatprep.subr.bf16.mxu0 0
        %1306 = vmatpush1.bf16.xpose.msra.mxu0 0
        %1307 = vmatprep.subr.bf16.mxu0 0
        %1308 = vmatpush1.bf16.xpose.msra.mxu0 0
        %1309 = vmatprep.subr.bf16.mxu0 0
        %1310 = vmatpush1.bf16.xpose.msra.mxu0 0
        %1311 = vmatprep.subr.bf16.mxu0 0
        %1312 = vmatpush1.bf16.xpose.msra.mxu0 0
        %1313 = vmatprep.subr.bf16.mxu0 0
        %1314 = vmatpush1.bf16.xpose.msra.mxu0 0
        %1315 = vmatprep.subr.bf16.mxu0 0
        %1316 = vmatpush1.bf16.xpose.msra.mxu0 0
        %1317 = vmatprep.subr.bf16.mxu0 0
        %1318 = vmatpush1.bf16.xpose.msra.mxu0 0
        %1319 = vmatprep.subr.bf16.mxu0 0
        %1320 = vmatpush1.bf16.xpose.msra.mxu0 0
        %1321 = vmatprep.subr.bf16.mxu0 0
        %1322 = vmatpush1.bf16.xpose.msra.mxu0 0
        %1323 = vmatprep.subr.bf16.mxu0 0
        %1324 = vmatpush1.bf16.xpose.msra.mxu0 0
        %1325 = vmatprep.subr.bf16.mxu0 0
        %1326 = vmatpush1.bf16.xpose.msra.mxu0 0
        %1327 = vmatprep.subr.bf16.mxu0 0
        %1328 = vmatpush1.bf16.xpose.msra.mxu0 0
        %1329 = vmatprep.subr.bf16.mxu0 0
        %1330 = vmatpush1.bf16.xpose.msra.mxu0 0
        %1331 = vmatprep.subr.bf16.mxu0 0
        %1332 = vmatpush1.bf16.xpose.msra.mxu0 0
        %1333 = vmatprep.mubr.bf16.mxu0 0
        %1334 = vmatmul.mubr.bf16.gmra.mrb[0].mxu0 %v1296
        %v1335 = vpop.f32.mrb[0].mxu0
        %v1336 = vadd.f32 0.0, %v1335
        %v1337 = vpop.f32.mrb[0].mxu0
        %v1338 = vpop.f32.mrb[0].mxu0
        %v1339 = vpop.f32.mrb[0].mxu0
        %1340 = vdwg.mxu0
        %v1341 = vmul.f32 %v1336, 0.17677669
        %v1342 = vsel %vm667, %v1341, -1e+30
        %v1343 = vsel %vm1001, %v1342, -inf
        %1344 = vmax.xlane.f32.xlu0 %v1343
        %v1345 = vpop.xlane.xlu0 %1344
        %v1346 = vsub.f32 %v1342, %v1345
        %v1347 = vmul.f32 %v1346, 1.442695
        %v1348 = vpow.pop %v1347
        %v1349 = vsel %vm1001, %v1348, 0.0
        %1350 = vadd.xlane.f32.xlu0 %v1349
        %v1351 = vpop.xlane.xlu0 %1350
        %v1352 = vrcp.pop %v1351
        %v1353 = vmul.f32 %v1348, %v1352
        %v1354 = vsel %vm667, %v1353, 0.0
        %v1355 = vpack.c.bf16 %v1354, %v1354
        %1356 = vrot.lane.b32.xlu0 %v951, 32
        %v1357 = vpop.permute.xlu0 %1356
        %v1359 = vsel %vm1001, %v1355, 0
        %v1362 = vsel %vm1018, %v1357, 0
        %1364 = vmatprep.subr.bf16.mxu0 0
        %1365 = vmatpush1.bf16.msra.mxu0 %v1362
        %1366 = vmatprep.subr.bf16.mxu0 0
        %1367 = vmatpush1.bf16.msra.mxu0 0
        %1368 = vmatprep.subr.bf16.mxu0 0
        %1369 = vmatpush1.bf16.msra.mxu0 0
        %1370 = vmatprep.subr.bf16.mxu0 0
        %1371 = vmatpush1.bf16.msra.mxu0 0
        %1372 = vmatprep.subr.bf16.mxu0 0
        %1373 = vmatpush1.bf16.msra.mxu0 0
        %1374 = vmatprep.subr.bf16.mxu0 0
        %1375 = vmatpush1.bf16.msra.mxu0 0
        %1376 = vmatprep.subr.bf16.mxu0 0
        %1377 = vmatpush1.bf16.msra.mxu0 0
        %1378 = vmatprep.subr.bf16.mxu0 0
        %1379 = vmatpush1.bf16.msra.mxu0 0
        %1380 = vmatprep.subr.bf16.mxu0 0
        %1381 = vmatpush1.bf16.msra.mxu0 0
        %1382 = vmatprep.subr.bf16.mxu0 0
        %1383 = vmatpush1.bf16.msra.mxu0 0
        %1384 = vmatprep.subr.bf16.mxu0 0
        %1385 = vmatpush1.bf16.msra.mxu0 0
        %1386 = vmatprep.subr.bf16.mxu0 0
        %1387 = vmatpush1.bf16.msra.mxu0 0
        %1388 = vmatprep.subr.bf16.mxu0 0
        %1389 = vmatpush1.bf16.msra.mxu0 0
        %1390 = vmatprep.subr.bf16.mxu0 0
        %1391 = vmatpush1.bf16.msra.mxu0 0
        %1392 = vmatprep.subr.bf16.mxu0 0
        %1393 = vmatpush1.bf16.msra.mxu0 0
        %1394 = vmatprep.subr.bf16.mxu0 0
        %1395 = vmatpush1.bf16.msra.mxu0 0
        %1396 = vmatprep.mubr.bf16.mxu0 0
        %1397 = vmatmul.mubr.bf16.gmra.mrb[0].mxu0 %v1359
        %v1398 = vpop.f32.mrb[0].mxu0
        %v1399 = vadd.f32 0.0, %v1398
        %v1400 = vpop.f32.mrb[0].mxu0
        %v1401 = vpop.f32.mrb[0].mxu0
        %v1402 = vpop.f32.mrb[0].mxu0
        %1403 = vdwg.mxu0
        %1405 = vrot.lane.b32.xlu0 %v1173, 32
        %v1406 = vpop.permute.xlu0 %1405
        %1409 = vrot.lane.b32.xlu0 %v1286, 64
        %v1410 = vpop.permute.xlu0 %1409
        %1413 = vrot.lane.b32.xlu0 %v1399, 96
        %v1414 = vpop.permute.xlu0 %1413
        %v1416 = vsel %vm952, %v1057, %v1406
        %vm1417 = vcmask 523264
        %v1418 = vsel %vm1417, %v1416, %v1410
        %vm1419 = vcmask 785408
        %v1420 = vsel %vm1419, %v1418, %v1414
        %v1421 = vld [vmem:[#allocation11] sm:$0xf]
        %v1422 = vld [vmem:[#allocation11 + $0x4] sm:$0xf]
        %v1423 = vld [vmem:[#allocation11 + $0x8] sm:$0xf]
        %v1424 = vld [vmem:[#allocation11 + $0xc] sm:$0xf]
        %v1425 = vld [vmem:[#allocation11 + $0x10] sm:$0xf]
        %v1426 = vld [vmem:[#allocation11 + $0x14] sm:$0xf]
        %v1427 = vld [vmem:[#allocation11 + $0x18] sm:$0xf]
        %v1428 = vld [vmem:[#allocation11 + $0x1c] sm:$0xf]
        %v1429 = vld [vmem:[#allocation11 + $0x20] sm:$0xf]
        %v1430 = vld [vmem:[#allocation11 + $0x24] sm:$0xf]
        %v1431 = vld [vmem:[#allocation11 + $0x28] sm:$0xf]
        %v1432 = vld [vmem:[#allocation11 + $0x2c] sm:$0xf]
        %v1433 = vld [vmem:[#allocation11 + $0x30] sm:$0xf]
        %v1434 = vld [vmem:[#allocation11 + $0x34] sm:$0xf]
        %v1435 = vld [vmem:[#allocation11 + $0x38] sm:$0xf]
        %v1436 = vld [vmem:[#allocation11 + $0x3c] sm:$0xf]
        %v1437 = vpack.c.bf16 %v1420, %v1420
        %v1454 = vunpack.c.l.b16 %v1421
        %v1455 = vunpack.c.l.b16 %v1422
        %v1456 = vunpack.c.l.b16 %v1423
        %v1457 = vunpack.c.l.b16 %v1424
        %v1458 = vunpack.c.l.b16 %v1425
        %v1459 = vunpack.c.l.b16 %v1426
        %v1460 = vunpack.c.l.b16 %v1427
        %v1461 = vunpack.c.l.b16 %v1428
        %v1462 = vunpack.c.l.b16 %v1429
        %v1463 = vunpack.c.l.b16 %v1430
        %v1464 = vunpack.c.l.b16 %v1431
        %v1465 = vunpack.c.l.b16 %v1432
        %v1466 = vunpack.c.l.b16 %v1433
        %v1467 = vunpack.c.l.b16 %v1434
        %v1468 = vunpack.c.l.b16 %v1435
        %v1469 = vunpack.c.l.b16 %v1436
        %v1470 = vpack.c.b16 %v1455, %v1454
        %v1471 = vpack.c.b16 %v1457, %v1456
        %v1472 = vpack.c.b16 %v1459, %v1458
        %v1473 = vpack.c.b16 %v1461, %v1460
        %v1474 = vpack.c.b16 %v1463, %v1462
        %v1475 = vpack.c.b16 %v1465, %v1464
        %v1476 = vpack.c.b16 %v1467, %v1466
        %v1477 = vpack.c.b16 %v1469, %v1468
        %1486 = vmatprep.subr.bf16.mxu0 0
        %1487 = vmatpush1.bf16.msra.mxu0 %v1470
        %1488 = vmatprep.subr.bf16.mxu0 0
        %1489 = vmatpush1.bf16.msra.mxu0 %v1471
        %1490 = vmatprep.subr.bf16.mxu0 0
        %1491 = vmatpush1.bf16.msra.mxu0 %v1472
        %1492 = vmatprep.subr.bf16.mxu0 0
        %1493 = vmatpush1.bf16.msra.mxu0 %v1473
        %1494 = vmatprep.subr.bf16.mxu0 0
        %1495 = vmatpush1.bf16.msra.mxu0 %v1474
        %1496 = vmatprep.subr.bf16.mxu0 0
        %1497 = vmatpush1.bf16.msra.mxu0 %v1475
        %1498 = vmatprep.subr.bf16.mxu0 0
        %1499 = vmatpush1.bf16.msra.mxu0 %v1476
        %1500 = vmatprep.subr.bf16.mxu0 0
        %1501 = vmatpush1.bf16.msra.mxu0 %v1477
        %1502 = vmatprep.subr.bf16.mxu0 0
        %1503 = vmatpush1.bf16.msra.mxu0 0
        %1504 = vmatprep.subr.bf16.mxu0 0
        %1505 = vmatpush1.bf16.msra.mxu0 0
        %1506 = vmatprep.subr.bf16.mxu0 0
        %1507 = vmatpush1.bf16.msra.mxu0 0
        %1508 = vmatprep.subr.bf16.mxu0 0
        %1509 = vmatpush1.bf16.msra.mxu0 0
        %1510 = vmatprep.subr.bf16.mxu0 0
        %1511 = vmatpush1.bf16.msra.mxu0 0
        %1512 = vmatprep.subr.bf16.mxu0 0
        %1513 = vmatpush1.bf16.msra.mxu0 0
        %1514 = vmatprep.subr.bf16.mxu0 0
        %1515 = vmatpush1.bf16.msra.mxu0 0
        %1516 = vmatprep.subr.bf16.mxu0 0
        %1517 = vmatpush1.bf16.msra.mxu0 0
        %1518 = vmatprep.mubr.bf16.mxu0 0
        %1519 = vmatmul.mubr.bf16.gmra.mrb[0].mxu0 %v1437
        %v1520 = vpop.f32.mrb[0].mxu0
        %v1521 = vadd.f32 0.0, %v1520
        %v1522 = vpop.f32.mrb[0].mxu0
        %v1523 = vpop.f32.mrb[0].mxu0
        %v1524 = vpop.f32.mrb[0].mxu0
        %1525 = vdwg.mxu0
        %v1526 = vadd.f32 %v663, %v1521
        %v1527 = vlaneseq
        %v1528 = vshrl.u32 %v1527, 7
        %v1529 = vsub.s32 1, %v1528
        %v1530 = vrot.slane %v662, %v1529
        %v1531 = vadd.f32 %v1526, %v1530
        %1532 = vadd.xlane.f32.xlu0 %v1531
        %v1533 = vpop.xlane.xlu0 %1532
        %v1534 = vmul.f32 %v1533, %v672
        %v1535 = vsub.f32 %v1531, %v1534
        %v1536 = vmul.f32 %v1535, %v1535
        %1537 = vadd.xlane.f32.xlu0 %v1536
        %v1538 = vpop.xlane.xlu0 %1537
        %v1539 = vmul.f32 %v1538, %v672
        %v1540 = vadd.f32 %v1539, 1e-12
        %v1541 = vrsqrt.pop %v1540
        %v1542 = vmul.f32 %v1535, %v1541
        %v1543 = vlaneseq
        %v1544 = vshrl.u32 %v1543, 7
        %v1545 = vsub.s32 2, %v1544
        %v1546 = vrot.slane %v661, %v1545
        %v1547 = vmul.f32 %v1542, %v1546
        %v1548 = vlaneseq
        %v1549 = vshrl.u32 %v1548, 7
        %v1550 = vsub.s32 3, %v1549
        %v1551 = vrot.slane %v661, %v1550
        %v1552 = vadd.f32 %v1547, %v1551
        %v1553 = vld [vmem:[#allocation13] sm:$0xf]
        %v1554 = vld [vmem:[#allocation13 + $0x4] sm:$0xf]
        %v1555 = vld [vmem:[#allocation13 + $0x8] sm:$0xf]
        %v1556 = vld [vmem:[#allocation13 + $0xc] sm:$0xf]
        %v1557 = vld [vmem:[#allocation13 + $0x10] sm:$0xf]
        %v1558 = vld [vmem:[#allocation13 + $0x14] sm:$0xf]
        %v1559 = vld [vmem:[#allocation13 + $0x18] sm:$0xf]
        %v1560 = vld [vmem:[#allocation13 + $0x1c] sm:$0xf]
        %v1561 = vld [vmem:[#allocation13 + $0x20] sm:$0xf]
        %v1562 = vld [vmem:[#allocation13 + $0x24] sm:$0xf]
        %v1563 = vld [vmem:[#allocation13 + $0x28] sm:$0xf]
        %v1564 = vld [vmem:[#allocation13 + $0x2c] sm:$0xf]
        %v1565 = vld [vmem:[#allocation13 + $0x30] sm:$0xf]
        %v1566 = vld [vmem:[#allocation13 + $0x34] sm:$0xf]
        %v1567 = vld [vmem:[#allocation13 + $0x38] sm:$0xf]
        %v1568 = vld [vmem:[#allocation13 + $0x3c] sm:$0xf]
        %v1569 = vpack.c.bf16 %v1552, %v1552
        %v1570 = vlaneseq
        %v1571 = vshrl.u32 %v1570, 7
        %v1572 = vsub.s32 2, %v1571
        %v1573 = vrot.slane %v662, %v1572
        %v1590 = vunpack.c.l.b16 %v1553
        %v1591 = vunpack.c.l.b16 %v1554
        %v1592 = vunpack.c.l.b16 %v1555
        %v1593 = vunpack.c.l.b16 %v1556
        %v1594 = vunpack.c.l.b16 %v1557
        %v1595 = vunpack.c.l.b16 %v1558
        %v1596 = vunpack.c.l.b16 %v1559
        %v1597 = vunpack.c.l.b16 %v1560
        %v1598 = vunpack.c.l.b16 %v1561
        %v1599 = vunpack.c.l.b16 %v1562
        %v1600 = vunpack.c.l.b16 %v1563
        %v1601 = vunpack.c.l.b16 %v1564
        %v1602 = vunpack.c.l.b16 %v1565
        %v1603 = vunpack.c.l.b16 %v1566
        %v1604 = vunpack.c.l.b16 %v1567
        %v1605 = vunpack.c.l.b16 %v1568
        %v1606 = vpack.c.b16 %v1591, %v1590
        %v1607 = vpack.c.b16 %v1593, %v1592
        %v1608 = vpack.c.b16 %v1595, %v1594
        %v1609 = vpack.c.b16 %v1597, %v1596
        %v1610 = vpack.c.b16 %v1599, %v1598
        %v1611 = vpack.c.b16 %v1601, %v1600
        %v1612 = vpack.c.b16 %v1603, %v1602
        %v1613 = vpack.c.b16 %v1605, %v1604
        %1622 = vmatprep.subr.bf16.mxu0 0
        %1623 = vmatpush1.bf16.msra.mxu0 %v1606
        %1624 = vmatprep.subr.bf16.mxu0 0
        %1625 = vmatpush1.bf16.msra.mxu0 %v1607
        %1626 = vmatprep.subr.bf16.mxu0 0
        %1627 = vmatpush1.bf16.msra.mxu0 %v1608
        %1628 = vmatprep.subr.bf16.mxu0 0
        %1629 = vmatpush1.bf16.msra.mxu0 %v1609
        %1630 = vmatprep.subr.bf16.mxu0 0
        %1631 = vmatpush1.bf16.msra.mxu0 %v1610
        %1632 = vmatprep.subr.bf16.mxu0 0
        %1633 = vmatpush1.bf16.msra.mxu0 %v1611
        %1634 = vmatprep.subr.bf16.mxu0 0
        %1635 = vmatpush1.bf16.msra.mxu0 %v1612
        %1636 = vmatprep.subr.bf16.mxu0 0
        %1637 = vmatpush1.bf16.msra.mxu0 %v1613
        %1638 = vmatprep.subr.bf16.mxu0 0
        %1639 = vmatpush1.bf16.msra.mxu0 0
        %1640 = vmatprep.subr.bf16.mxu0 0
        %1641 = vmatpush1.bf16.msra.mxu0 0
        %1642 = vmatprep.subr.bf16.mxu0 0
        %1643 = vmatpush1.bf16.msra.mxu0 0
        %1644 = vmatprep.subr.bf16.mxu0 0
        %1645 = vmatpush1.bf16.msra.mxu0 0
        %1646 = vmatprep.subr.bf16.mxu0 0
        %1647 = vmatpush1.bf16.msra.mxu0 0
        %1648 = vmatprep.subr.bf16.mxu0 0
        %1649 = vmatpush1.bf16.msra.mxu0 0
        %1650 = vmatprep.subr.bf16.mxu0 0
        %1651 = vmatpush1.bf16.msra.mxu0 0
        %1652 = vmatprep.subr.bf16.mxu0 0
        %1653 = vmatpush1.bf16.msra.mxu0 0
        %1654 = vmatprep.mubr.bf16.mxu0 0
        %1655 = vmatmul.mubr.bf16.gmra.mrb[0].mxu0 %v1569
        %v1656 = vpop.f32.mrb[0].mxu0
        %v1657 = vadd.f32 %v1573, %v1656
        %v1658 = vpop.f32.mrb[0].mxu0
        %v1659 = vpop.f32.mrb[0].mxu0
        %v1660 = vpop.f32.mrb[0].mxu0
        %1661 = vdwg.mxu0
        %v1662 = vld [vmem:[#allocation14] sm:$0xff]
        %v1663 = vld [vmem:[#allocation14 + $0x8] sm:$0xff]
        %v1664 = vld [vmem:[#allocation14 + $0x10] sm:$0xff]
        %v1665 = vld [vmem:[#allocation14 + $0x18] sm:$0xff]
        %v1666 = vld [vmem:[#allocation14 + $0x20] sm:$0xff]
        %v1667 = vld [vmem:[#allocation14 + $0x28] sm:$0xff]
        %v1668 = vld [vmem:[#allocation14 + $0x30] sm:$0xff]
        %v1669 = vld [vmem:[#allocation14 + $0x38] sm:$0xff]
        %v1670 = vld [vmem:[#allocation14 + $0x40] sm:$0xff]
        %v1671 = vld [vmem:[#allocation14 + $0x48] sm:$0xff]
        %v1672 = vld [vmem:[#allocation14 + $0x50] sm:$0xff]
        %v1673 = vld [vmem:[#allocation14 + $0x58] sm:$0xff]
        %v1674 = vld [vmem:[#allocation14 + $0x60] sm:$0xff]
        %v1675 = vld [vmem:[#allocation14 + $0x68] sm:$0xff]
        %v1676 = vld [vmem:[#allocation14 + $0x70] sm:$0xff]
        %v1677 = vld [vmem:[#allocation14 + $0x78] sm:$0xff]
        %v1678 = vpack.c.bf16 %v665, %v664
        %v1695 = vunpack.c.l.b16 %v1662
        %v1696 = vunpack.c.h.b16 %v1662
        %v1697 = vunpack.c.l.b16 %v1663
        %v1698 = vunpack.c.h.b16 %v1663
        %v1699 = vunpack.c.l.b16 %v1664
        %v1700 = vunpack.c.h.b16 %v1664
        %v1701 = vunpack.c.l.b16 %v1665
        %v1702 = vunpack.c.h.b16 %v1665
        %v1703 = vunpack.c.l.b16 %v1666
        %v1704 = vunpack.c.h.b16 %v1666
        %v1705 = vunpack.c.l.b16 %v1667
        %v1706 = vunpack.c.h.b16 %v1667
        %v1707 = vunpack.c.l.b16 %v1668
        %v1708 = vunpack.c.h.b16 %v1668
        %v1709 = vunpack.c.l.b16 %v1669
        %v1710 = vunpack.c.h.b16 %v1669
        %v1711 = vunpack.c.l.b16 %v1670
        %v1712 = vunpack.c.h.b16 %v1670
        %v1713 = vunpack.c.l.b16 %v1671
        %v1714 = vunpack.c.h.b16 %v1671
        %v1715 = vunpack.c.l.b16 %v1672
        %v1716 = vunpack.c.h.b16 %v1672
        %v1717 = vunpack.c.l.b16 %v1673
        %v1718 = vunpack.c.h.b16 %v1673
        %v1719 = vunpack.c.l.b16 %v1674
        %v1720 = vunpack.c.h.b16 %v1674
        %v1721 = vunpack.c.l.b16 %v1675
        %v1722 = vunpack.c.h.b16 %v1675
        %v1723 = vunpack.c.l.b16 %v1676
        %v1724 = vunpack.c.h.b16 %v1676
        %v1725 = vunpack.c.l.b16 %v1677
        %v1726 = vunpack.c.h.b16 %v1677
        %v1727 = vpack.c.b16 %v1697, %v1695
        %v1728 = vpack.c.b16 %v1698, %v1696
        %v1729 = vpack.c.b16 %v1701, %v1699
        %v1730 = vpack.c.b16 %v1702, %v1700
        %v1731 = vpack.c.b16 %v1705, %v1703
        %v1732 = vpack.c.b16 %v1706, %v1704
        %v1733 = vpack.c.b16 %v1709, %v1707
        %v1734 = vpack.c.b16 %v1710, %v1708
        %v1735 = vpack.c.b16 %v1713, %v1711
        %v1736 = vpack.c.b16 %v1714, %v1712
        %v1737 = vpack.c.b16 %v1717, %v1715
        %v1738 = vpack.c.b16 %v1718, %v1716
        %v1739 = vpack.c.b16 %v1721, %v1719
        %v1740 = vpack.c.b16 %v1722, %v1720
        %v1741 = vpack.c.b16 %v1725, %v1723
        %v1742 = vpack.c.b16 %v1726, %v1724
        %1759 = vmatprep.subr.bf16.mxu0 %v1728
        %1760 = vmatpush1.bf16.msra.mxu0 %v1727
        %1761 = vmatprep.subr.bf16.mxu0 %v1730
        %1762 = vmatpush1.bf16.msra.mxu0 %v1729
        %1763 = vmatprep.subr.bf16.mxu0 %v1732
        %1764 = vmatpush1.bf16.msra.mxu0 %v1731
        %1765 = vmatprep.subr.bf16.mxu0 %v1734
        %1766 = vmatpush1.bf16.msra.mxu0 %v1733
        %1767 = vmatprep.subr.bf16.mxu0 %v1736
        %1768 = vmatpush1.bf16.msra.mxu0 %v1735
        %1769 = vmatprep.subr.bf16.mxu0 %v1738
        %1770 = vmatpush1.bf16.msra.mxu0 %v1737
        %1771 = vmatprep.subr.bf16.mxu0 %v1740
        %1772 = vmatpush1.bf16.msra.mxu0 %v1739
        %1773 = vmatprep.subr.bf16.mxu0 %v1742
        %1774 = vmatpush1.bf16.msra.mxu0 %v1741
        %1775 = vmatprep.subr.bf16.mxu0 0
        %1776 = vmatpush1.bf16.msra.mxu0 0
        %1777 = vmatprep.subr.bf16.mxu0 0
        %1778 = vmatpush1.bf16.msra.mxu0 0
        %1779 = vmatprep.subr.bf16.mxu0 0
        %1780 = vmatpush1.bf16.msra.mxu0 0
        %1781 = vmatprep.subr.bf16.mxu0 0
        %1782 = vmatpush1.bf16.msra.mxu0 0
        %1783 = vmatprep.subr.bf16.mxu0 0
        %1784 = vmatpush1.bf16.msra.mxu0 0
        %1785 = vmatprep.subr.bf16.mxu0 0
        %1786 = vmatpush1.bf16.msra.mxu0 0
        %1787 = vmatprep.subr.bf16.mxu0 0
        %1788 = vmatpush1.bf16.msra.mxu0 0
        %1789 = vmatprep.subr.bf16.mxu0 0
        %1790 = vmatpush1.bf16.msra.mxu0 0
        %1791 = vmatprep.mubr.bf16.mxu0 0
        %1792 = vmatmul.mubr.bf16.gmra.mrb[0].mxu0 %v1678
        %v1793 = vpop.f32.mrb[0].mxu0
        %v1794 = vadd.f32 0.0, %v1793
        %v1795 = vpop.f32.mrb[0].mxu0
        %v1796 = vadd.f32 0.0, %v1795
        %v1797 = vpop.f32.mrb[0].mxu0
        %v1798 = vadd.f32 0.0, %v1797
        %v1799 = vpop.f32.mrb[0].mxu0
        %v1800 = vadd.f32 0.0, %v1799
        %1801 = vdwg.mxu0
        %v1802 = vlaneseq
        %v1803 = vshrl.u32 %v1802, 7
        %v1804 = vsub.s32 3, %v1803
        %v1805 = vrot.slane %v662, %v1804
        %v1806 = vadd.f32 %v1794, %v1805
        %v1807 = vadd.f32 %v1798, %v1805
        %v1808 = vlaneseq
        %v1809 = vshrl.u32 %v1808, 7
        %v1810 = vsub.s32 4, %v1809
        %v1811 = vrot.slane %v662, %v1810
        %v1812 = vadd.f32 %v1796, %v1811
        %v1813 = vadd.f32 %v1800, %v1811
        %v1814 = vpack.c.bf16 %v1657, %v1657
        %v1815 = vpack.c.bf16 %v1807, %v1806
        %v1816 = vpack.c.bf16 %v1813, %v1812
        %v1818 = vsel %vm952, %v1814, 0
        %v1821 = vsel %vm952, %v1815, 0
        %1823 = vmatprep.subr.bf16.mxu0 0
        %1824 = vmatpush1.bf16.xpose.msra.mxu0 %v1821
        %1825 = vmatprep.subr.bf16.mxu0 0
        %1826 = vmatpush1.bf16.xpose.msra.mxu0 0
        %1827 = vmatprep.subr.bf16.mxu0 0
        %1828 = vmatpush1.bf16.xpose.msra.mxu0 0
        %1829 = vmatprep.subr.bf16.mxu0 0
        %1830 = vmatpush1.bf16.xpose.msra.mxu0 0
        %1831 = vmatprep.subr.bf16.mxu0 0
        %1832 = vmatpush1.bf16.xpose.msra.mxu0 0
        %1833 = vmatprep.subr.bf16.mxu0 0
        %1834 = vmatpush1.bf16.xpose.msra.mxu0 0
        %1835 = vmatprep.subr.bf16.mxu0 0
        %1836 = vmatpush1.bf16.xpose.msra.mxu0 0
        %1837 = vmatprep.subr.bf16.mxu0 0
        %1838 = vmatpush1.bf16.xpose.msra.mxu0 0
        %1839 = vmatprep.subr.bf16.mxu0 0
        %1840 = vmatpush1.bf16.xpose.msra.mxu0 0
        %1841 = vmatprep.subr.bf16.mxu0 0
        %1842 = vmatpush1.bf16.xpose.msra.mxu0 0
        %1843 = vmatprep.subr.bf16.mxu0 0
        %1844 = vmatpush1.bf16.xpose.msra.mxu0 0
        %1845 = vmatprep.subr.bf16.mxu0 0
        %1846 = vmatpush1.bf16.xpose.msra.mxu0 0
        %1847 = vmatprep.subr.bf16.mxu0 0
        %1848 = vmatpush1.bf16.xpose.msra.mxu0 0
        %1849 = vmatprep.subr.bf16.mxu0 0
        %1850 = vmatpush1.bf16.xpose.msra.mxu0 0
        %1851 = vmatprep.subr.bf16.mxu0 0
        %1852 = vmatpush1.bf16.xpose.msra.mxu0 0
        %1853 = vmatprep.subr.bf16.mxu0 0
        %1854 = vmatpush1.bf16.xpose.msra.mxu0 0
        %1855 = vmatprep.mubr.bf16.mxu0 0
        %1856 = vmatmul.mubr.bf16.gmra.mrb[0].mxu0 %v1818
        %v1857 = vpop.f32.mrb[0].mxu0
        %v1858 = vadd.f32 0.0, %v1857
        %v1859 = vpop.f32.mrb[0].mxu0
        %v1860 = vpop.f32.mrb[0].mxu0
        %v1861 = vpop.f32.mrb[0].mxu0
        %1862 = vdwg.mxu0
        %v1863 = vmul.f32 %v1858, 0.17677669
        %v1864 = vsel %vm669, 1, 0
        %v1865 = vlaneseq
        %v1866 = vshrl.u32 %v1865, 7
        %v1867 = vsub.s32 0, %v1866
        %v1868 = vrot.slane %v1864, %v1867
        %vm1869 = vcmp.eq.s32.totalorder %v1868, 1
        %v1870 = vsel %vm1869, %v1863, -1e+30
        %vm1871 = vcmask 130048
        %v1872 = vsel %vm1871, %v1870, -inf
        %1873 = vmax.xlane.f32.xlu0 %v1872
        %v1874 = vpop.xlane.xlu0 %1873
        %v1875 = vsub.f32 %v1870, %v1874
        %v1876 = vmul.f32 %v1875, 1.442695
        %v1877 = vpow.pop %v1876
        %v1878 = vsel %vm1871, %v1877, 0.0
        %1879 = vadd.xlane.f32.xlu0 %v1878
        %v1880 = vpop.xlane.xlu0 %1879
        %v1881 = vrcp.pop %v1880
        %v1882 = vmul.f32 %v1877, %v1881
        %v1883 = vsel %vm1869, %v1882, 0.0
        %v1884 = vpack.c.bf16 %v1883, %v1883
        %v1886 = vsel %vm1871, %v1884, 0
        %1888 = vmatprep.subr.bf16.mxu0 0
        %1889 = vmatpush1.bf16.msra.mxu0 %v1816
        %1890 = vmatprep.subr.bf16.mxu0 0
        %1891 = vmatpush1.bf16.msra.mxu0 0
        %1892 = vmatprep.subr.bf16.mxu0 0
        %1893 = vmatpush1.bf16.msra.mxu0 0
        %1894 = vmatprep.subr.bf16.mxu0 0
        %1895 = vmatpush1.bf16.msra.mxu0 0
        %1896 = vmatprep.subr.bf16.mxu0 0
        %1897 = vmatpush1.bf16.msra.mxu0 0
        %1898 = vmatprep.subr.bf16.mxu0 0
        %1899 = vmatpush1.bf16.msra.mxu0 0
        %1900 = vmatprep.subr.bf16.mxu0 0
        %1901 = vmatpush1.bf16.msra.mxu0 0
        %1902 = vmatprep.subr.bf16.mxu0 0
        %1903 = vmatpush1.bf16.msra.mxu0 0
        %1904 = vmatprep.subr.bf16.mxu0 0
        %1905 = vmatpush1.bf16.msra.mxu0 0
        %1906 = vmatprep.subr.bf16.mxu0 0
        %1907 = vmatpush1.bf16.msra.mxu0 0
        %1908 = vmatprep.subr.bf16.mxu0 0
        %1909 = vmatpush1.bf16.msra.mxu0 0
        %1910 = vmatprep.subr.bf16.mxu0 0
        %1911 = vmatpush1.bf16.msra.mxu0 0
        %1912 = vmatprep.subr.bf16.mxu0 0
        %1913 = vmatpush1.bf16.msra.mxu0 0
        %1914 = vmatprep.subr.bf16.mxu0 0
        %1915 = vmatpush1.bf16.msra.mxu0 0
        %1916 = vmatprep.subr.bf16.mxu0 0
        %1917 = vmatpush1.bf16.msra.mxu0 0
        %1918 = vmatprep.subr.bf16.mxu0 0
        %1919 = vmatpush1.bf16.msra.mxu0 0
        %1920 = vmatprep.mubr.bf16.mxu0 0
        %1921 = vmatmul.mubr.bf16.gmra.mrb[0].mxu0 %v1886
        %v1922 = vpop.f32.mrb[0].mxu0
        %v1923 = vadd.f32 0.0, %v1922
        %v1924 = vpop.f32.mrb[0].mxu0
        %v1925 = vpop.f32.mrb[0].mxu0
        %v1926 = vpop.f32.mrb[0].mxu0
        %1927 = vdwg.mxu0
        %1929 = vrot.lane.b32.xlu0 %v1814, 96
        %v1930 = vpop.permute.xlu0 %1929
        %1932 = vrot.lane.b32.xlu0 %v1815, 96
        %v1933 = vpop.permute.xlu0 %1932
        %v1935 = vsel %vm952, %v1930, 0
        %v1938 = vsel %vm952, %v1933, 0
        %1940 = vmatprep.subr.bf16.mxu0 0
        %1941 = vmatpush1.bf16.xpose.msra.mxu0 %v1938
        %1942 = vmatprep.subr.bf16.mxu0 0
        %1943 = vmatpush1.bf16.xpose.msra.mxu0 0
        %1944 = vmatprep.subr.bf16.mxu0 0
        %1945 = vmatpush1.bf16.xpose.msra.mxu0 0
        %1946 = vmatprep.subr.bf16.mxu0 0
        %1947 = vmatpush1.bf16.xpose.msra.mxu0 0
        %1948 = vmatprep.subr.bf16.mxu0 0
        %1949 = vmatpush1.bf16.xpose.msra.mxu0 0
        %1950 = vmatprep.subr.bf16.mxu0 0
        %1951 = vmatpush1.bf16.xpose.msra.mxu0 0
        %1952 = vmatprep.subr.bf16.mxu0 0
        %1953 = vmatpush1.bf16.xpose.msra.mxu0 0
        %1954 = vmatprep.subr.bf16.mxu0 0
        %1955 = vmatpush1.bf16.xpose.msra.mxu0 0
        %1956 = vmatprep.subr.bf16.mxu0 0
        %1957 = vmatpush1.bf16.xpose.msra.mxu0 0
        %1958 = vmatprep.subr.bf16.mxu0 0
        %1959 = vmatpush1.bf16.xpose.msra.mxu0 0
        %1960 = vmatprep.subr.bf16.mxu0 0
        %1961 = vmatpush1.bf16.xpose.msra.mxu0 0
        %1962 = vmatprep.subr.bf16.mxu0 0
        %1963 = vmatpush1.bf16.xpose.msra.mxu0 0
        %1964 = vmatprep.subr.bf16.mxu0 0
        %1965 = vmatpush1.bf16.xpose.msra.mxu0 0
        %1966 = vmatprep.subr.bf16.mxu0 0
        %1967 = vmatpush1.bf16.xpose.msra.mxu0 0
        %1968 = vmatprep.subr.bf16.mxu0 0
        %1969 = vmatpush1.bf16.xpose.msra.mxu0 0
        %1970 = vmatprep.subr.bf16.mxu0 0
        %1971 = vmatpush1.bf16.xpose.msra.mxu0 0
        %1972 = vmatprep.mubr.bf16.mxu0 0
        %1973 = vmatmul.mubr.bf16.gmra.mrb[0].mxu0 %v1935
        %v1974 = vpop.f32.mrb[0].mxu0
        %v1975 = vadd.f32 0.0, %v1974
        %v1976 = vpop.f32.mrb[0].mxu0
        %v1977 = vpop.f32.mrb[0].mxu0
        %v1978 = vpop.f32.mrb[0].mxu0
        %1979 = vdwg.mxu0
        %v1980 = vmul.f32 %v1975, 0.17677669
        %v1981 = vsel %vm1869, %v1980, -1e+30
        %v1982 = vsel %vm1871, %v1981, -inf
        %1983 = vmax.xlane.f32.xlu0 %v1982
        %v1984 = vpop.xlane.xlu0 %1983
        %v1985 = vsub.f32 %v1981, %v1984
        %v1986 = vmul.f32 %v1985, 1.442695
        %v1987 = vpow.pop %v1986
        %v1988 = vsel %vm1871, %v1987, 0.0
        %1989 = vadd.xlane.f32.xlu0 %v1988
        %v1990 = vpop.xlane.xlu0 %1989
        %v1991 = vrcp.pop %v1990
        %v1992 = vmul.f32 %v1987, %v1991
        %v1993 = vsel %vm1869, %v1992, 0.0
        %v1994 = vpack.c.bf16 %v1993, %v1993
        %1996 = vrot.lane.b32.xlu0 %v1816, 96
        %v1997 = vpop.permute.xlu0 %1996
        %v2000 = vsel %vm1871, %v1994, 0
        %2002 = vmatprep.subr.bf16.mxu0 0
        %2003 = vmatpush1.bf16.msra.mxu0 %v1997
        %2004 = vmatprep.subr.bf16.mxu0 0
        %2005 = vmatpush1.bf16.msra.mxu0 0
        %2006 = vmatprep.subr.bf16.mxu0 0
        %2007 = vmatpush1.bf16.msra.mxu0 0
        %2008 = vmatprep.subr.bf16.mxu0 0
        %2009 = vmatpush1.bf16.msra.mxu0 0
        %2010 = vmatprep.subr.bf16.mxu0 0
        %2011 = vmatpush1.bf16.msra.mxu0 0
        %2012 = vmatprep.subr.bf16.mxu0 0
        %2013 = vmatpush1.bf16.msra.mxu0 0
        %2014 = vmatprep.subr.bf16.mxu0 0
        %2015 = vmatpush1.bf16.msra.mxu0 0
        %2016 = vmatprep.subr.bf16.mxu0 0
        %2017 = vmatpush1.bf16.msra.mxu0 0
        %2018 = vmatprep.subr.bf16.mxu0 0
        %2019 = vmatpush1.bf16.msra.mxu0 0
        %2020 = vmatprep.subr.bf16.mxu0 0
        %2021 = vmatpush1.bf16.msra.mxu0 0
        %2022 = vmatprep.subr.bf16.mxu0 0
        %2023 = vmatpush1.bf16.msra.mxu0 0
        %2024 = vmatprep.subr.bf16.mxu0 0
        %2025 = vmatpush1.bf16.msra.mxu0 0
        %2026 = vmatprep.subr.bf16.mxu0 0
        %2027 = vmatpush1.bf16.msra.mxu0 0
        %2028 = vmatprep.subr.bf16.mxu0 0
        %2029 = vmatpush1.bf16.msra.mxu0 0
        %2030 = vmatprep.subr.bf16.mxu0 0
        %2031 = vmatpush1.bf16.msra.mxu0 0
        %2032 = vmatprep.subr.bf16.mxu0 0
        %2033 = vmatpush1.bf16.msra.mxu0 0
        %2034 = vmatprep.mubr.bf16.mxu0 0
        %2035 = vmatmul.mubr.bf16.gmra.mrb[0].mxu0 %v2000
        %v2036 = vpop.f32.mrb[0].mxu0
        %v2037 = vadd.f32 0.0, %v2036
        %v2038 = vpop.f32.mrb[0].mxu0
        %v2039 = vpop.f32.mrb[0].mxu0
        %v2040 = vpop.f32.mrb[0].mxu0
        %2041 = vdwg.mxu0
        %2042 = vrot.lane.b32.xlu0 %v1814, 64
        %v2043 = vpop.permute.xlu0 %2042
        %2044 = vrot.lane.b32.xlu0 %v1815, 64
        %v2045 = vpop.permute.xlu0 %2044
        %v2047 = vsel %vm952, %v2043, 0
        %v2050 = vsel %vm952, %v2045, 0
        %2052 = vmatprep.subr.bf16.mxu0 0
        %2053 = vmatpush1.bf16.xpose.msra.mxu0 %v2050
        %2054 = vmatprep.subr.bf16.mxu0 0
        %2055 = vmatpush1.bf16.xpose.msra.mxu0 0
        %2056 = vmatprep.subr.bf16.mxu0 0
        %2057 = vmatpush1.bf16.xpose.msra.mxu0 0
        %2058 = vmatprep.subr.bf16.mxu0 0
        %2059 = vmatpush1.bf16.xpose.msra.mxu0 0
        %2060 = vmatprep.subr.bf16.mxu0 0
        %2061 = vmatpush1.bf16.xpose.msra.mxu0 0
        %2062 = vmatprep.subr.bf16.mxu0 0
        %2063 = vmatpush1.bf16.xpose.msra.mxu0 0
        %2064 = vmatprep.subr.bf16.mxu0 0
        %2065 = vmatpush1.bf16.xpose.msra.mxu0 0
        %2066 = vmatprep.subr.bf16.mxu0 0
        %2067 = vmatpush1.bf16.xpose.msra.mxu0 0
        %2068 = vmatprep.subr.bf16.mxu0 0
        %2069 = vmatpush1.bf16.xpose.msra.mxu0 0
        %2070 = vmatprep.subr.bf16.mxu0 0
        %2071 = vmatpush1.bf16.xpose.msra.mxu0 0
        %2072 = vmatprep.subr.bf16.mxu0 0
        %2073 = vmatpush1.bf16.xpose.msra.mxu0 0
        %2074 = vmatprep.subr.bf16.mxu0 0
        %2075 = vmatpush1.bf16.xpose.msra.mxu0 0
        %2076 = vmatprep.subr.bf16.mxu0 0
        %2077 = vmatpush1.bf16.xpose.msra.mxu0 0
        %2078 = vmatprep.subr.bf16.mxu0 0
        %2079 = vmatpush1.bf16.xpose.msra.mxu0 0
        %2080 = vmatprep.subr.bf16.mxu0 0
        %2081 = vmatpush1.bf16.xpose.msra.mxu0 0
        %2082 = vmatprep.subr.bf16.mxu0 0
        %2083 = vmatpush1.bf16.xpose.msra.mxu0 0
        %2084 = vmatprep.mubr.bf16.mxu0 0
        %2085 = vmatmul.mubr.bf16.gmra.mrb[0].mxu0 %v2047
        %v2086 = vpop.f32.mrb[0].mxu0
        %v2087 = vadd.f32 0.0, %v2086
        %v2088 = vpop.f32.mrb[0].mxu0
        %v2089 = vpop.f32.mrb[0].mxu0
        %v2090 = vpop.f32.mrb[0].mxu0
        %2091 = vdwg.mxu0
        %v2092 = vmul.f32 %v2087, 0.17677669
        %v2093 = vsel %vm1869, %v2092, -1e+30
        %v2094 = vsel %vm1871, %v2093, -inf
        %2095 = vmax.xlane.f32.xlu0 %v2094
        %v2096 = vpop.xlane.xlu0 %2095
        %v2097 = vsub.f32 %v2093, %v2096
        %v2098 = vmul.f32 %v2097, 1.442695
        %v2099 = vpow.pop %v2098
        %v2100 = vsel %vm1871, %v2099, 0.0
        %2101 = vadd.xlane.f32.xlu0 %v2100
        %v2102 = vpop.xlane.xlu0 %2101
        %v2103 = vrcp.pop %v2102
        %v2104 = vmul.f32 %v2099, %v2103
        %v2105 = vsel %vm1869, %v2104, 0.0
        %v2106 = vpack.c.bf16 %v2105, %v2105
        %2107 = vrot.lane.b32.xlu0 %v1816, 64
        %v2108 = vpop.permute.xlu0 %2107
        %v2111 = vsel %vm1871, %v2106, 0
        %2113 = vmatprep.subr.bf16.mxu0 0
        %2114 = vmatpush1.bf16.msra.mxu0 %v2108
        %2115 = vmatprep.subr.bf16.mxu0 0
        %2116 = vmatpush1.bf16.msra.mxu0 0
        %2117 = vmatprep.subr.bf16.mxu0 0
        %2118 = vmatpush1.bf16.msra.mxu0 0
        %2119 = vmatprep.subr.bf16.mxu0 0
        %2120 = vmatpush1.bf16.msra.mxu0 0
        %2121 = vmatprep.subr.bf16.mxu0 0
        %2122 = vmatpush1.bf16.msra.mxu0 0
        %2123 = vmatprep.subr.bf16.mxu0 0
        %2124 = vmatpush1.bf16.msra.mxu0 0
        %2125 = vmatprep.subr.bf16.mxu0 0
        %2126 = vmatpush1.bf16.msra.mxu0 0
        %2127 = vmatprep.subr.bf16.mxu0 0
        %2128 = vmatpush1.bf16.msra.mxu0 0
        %2129 = vmatprep.subr.bf16.mxu0 0
        %2130 = vmatpush1.bf16.msra.mxu0 0
        %2131 = vmatprep.subr.bf16.mxu0 0
        %2132 = vmatpush1.bf16.msra.mxu0 0
        %2133 = vmatprep.subr.bf16.mxu0 0
        %2134 = vmatpush1.bf16.msra.mxu0 0
        %2135 = vmatprep.subr.bf16.mxu0 0
        %2136 = vmatpush1.bf16.msra.mxu0 0
        %2137 = vmatprep.subr.bf16.mxu0 0
        %2138 = vmatpush1.bf16.msra.mxu0 0
        %2139 = vmatprep.subr.bf16.mxu0 0
        %2140 = vmatpush1.bf16.msra.mxu0 0
        %2141 = vmatprep.subr.bf16.mxu0 0
        %2142 = vmatpush1.bf16.msra.mxu0 0
        %2143 = vmatprep.subr.bf16.mxu0 0
        %2144 = vmatpush1.bf16.msra.mxu0 0
        %2145 = vmatprep.mubr.bf16.mxu0 0
        %2146 = vmatmul.mubr.bf16.gmra.mrb[0].mxu0 %v2111
        %v2147 = vpop.f32.mrb[0].mxu0
        %v2148 = vadd.f32 0.0, %v2147
        %v2149 = vpop.f32.mrb[0].mxu0
        %v2150 = vpop.f32.mrb[0].mxu0
        %v2151 = vpop.f32.mrb[0].mxu0
        %2152 = vdwg.mxu0
        %2153 = vrot.lane.b32.xlu0 %v1814, 32
        %v2154 = vpop.permute.xlu0 %2153
        %2155 = vrot.lane.b32.xlu0 %v1815, 32
        %v2156 = vpop.permute.xlu0 %2155
        %v2158 = vsel %vm952, %v2154, 0
        %v2161 = vsel %vm952, %v2156, 0
        %2163 = vmatprep.subr.bf16.mxu0 0
        %2164 = vmatpush1.bf16.xpose.msra.mxu0 %v2161
        %2165 = vmatprep.subr.bf16.mxu0 0
        %2166 = vmatpush1.bf16.xpose.msra.mxu0 0
        %2167 = vmatprep.subr.bf16.mxu0 0
        %2168 = vmatpush1.bf16.xpose.msra.mxu0 0
        %2169 = vmatprep.subr.bf16.mxu0 0
        %2170 = vmatpush1.bf16.xpose.msra.mxu0 0
        %2171 = vmatprep.subr.bf16.mxu0 0
        %2172 = vmatpush1.bf16.xpose.msra.mxu0 0
        %2173 = vmatprep.subr.bf16.mxu0 0
        %2174 = vmatpush1.bf16.xpose.msra.mxu0 0
        %2175 = vmatprep.subr.bf16.mxu0 0
        %2176 = vmatpush1.bf16.xpose.msra.mxu0 0
        %2177 = vmatprep.subr.bf16.mxu0 0
        %2178 = vmatpush1.bf16.xpose.msra.mxu0 0
        %2179 = vmatprep.subr.bf16.mxu0 0
        %2180 = vmatpush1.bf16.xpose.msra.mxu0 0
        %2181 = vmatprep.subr.bf16.mxu0 0
        %2182 = vmatpush1.bf16.xpose.msra.mxu0 0
        %2183 = vmatprep.subr.bf16.mxu0 0
        %2184 = vmatpush1.bf16.xpose.msra.mxu0 0
        %2185 = vmatprep.subr.bf16.mxu0 0
        %2186 = vmatpush1.bf16.xpose.msra.mxu0 0
        %2187 = vmatprep.subr.bf16.mxu0 0
        %2188 = vmatpush1.bf16.xpose.msra.mxu0 0
        %2189 = vmatprep.subr.bf16.mxu0 0
        %2190 = vmatpush1.bf16.xpose.msra.mxu0 0
        %2191 = vmatprep.subr.bf16.mxu0 0
        %2192 = vmatpush1.bf16.xpose.msra.mxu0 0
        %2193 = vmatprep.subr.bf16.mxu0 0
        %2194 = vmatpush1.bf16.xpose.msra.mxu0 0
        %2195 = vmatprep.mubr.bf16.mxu0 0
        %2196 = vmatmul.mubr.bf16.gmra.mrb[0].mxu0 %v2158
        %v2197 = vpop.f32.mrb[0].mxu0
        %v2198 = vadd.f32 0.0, %v2197
        %v2199 = vpop.f32.mrb[0].mxu0
        %v2200 = vpop.f32.mrb[0].mxu0
        %v2201 = vpop.f32.mrb[0].mxu0
        %2202 = vdwg.mxu0
        %v2203 = vmul.f32 %v2198, 0.17677669
        %v2204 = vsel %vm1869, %v2203, -1e+30
        %v2205 = vsel %vm1871, %v2204, -inf
        %2206 = vmax.xlane.f32.xlu0 %v2205
        %v2207 = vpop.xlane.xlu0 %2206
        %v2208 = vsub.f32 %v2204, %v2207
        %v2209 = vmul.f32 %v2208, 1.442695
        %v2210 = vpow.pop %v2209
        %v2211 = vsel %vm1871, %v2210, 0.0
        %2212 = vadd.xlane.f32.xlu0 %v2211
        %v2213 = vpop.xlane.xlu0 %2212
        %v2214 = vrcp.pop %v2213
        %v2215 = vmul.f32 %v2210, %v2214
        %v2216 = vsel %vm1869, %v2215, 0.0
        %v2217 = vpack.c.bf16 %v2216, %v2216
        %2218 = vrot.lane.b32.xlu0 %v1816, 32
        %v2219 = vpop.permute.xlu0 %2218
        %v2222 = vsel %vm1871, %v2217, 0
        %2224 = vmatprep.subr.bf16.mxu0 0
        %2225 = vmatpush1.bf16.msra.mxu0 %v2219
        %2226 = vmatprep.subr.bf16.mxu0 0
        %2227 = vmatpush1.bf16.msra.mxu0 0
        %2228 = vmatprep.subr.bf16.mxu0 0
        %2229 = vmatpush1.bf16.msra.mxu0 0
        %2230 = vmatprep.subr.bf16.mxu0 0
        %2231 = vmatpush1.bf16.msra.mxu0 0
        %2232 = vmatprep.subr.bf16.mxu0 0
        %2233 = vmatpush1.bf16.msra.mxu0 0
        %2234 = vmatprep.subr.bf16.mxu0 0
        %2235 = vmatpush1.bf16.msra.mxu0 0
        %2236 = vmatprep.subr.bf16.mxu0 0
        %2237 = vmatpush1.bf16.msra.mxu0 0
        %2238 = vmatprep.subr.bf16.mxu0 0
        %2239 = vmatpush1.bf16.msra.mxu0 0
        %2240 = vmatprep.subr.bf16.mxu0 0
        %2241 = vmatpush1.bf16.msra.mxu0 0
        %2242 = vmatprep.subr.bf16.mxu0 0
        %2243 = vmatpush1.bf16.msra.mxu0 0
        %2244 = vmatprep.subr.bf16.mxu0 0
        %2245 = vmatpush1.bf16.msra.mxu0 0
        %2246 = vmatprep.subr.bf16.mxu0 0
        %2247 = vmatpush1.bf16.msra.mxu0 0
        %2248 = vmatprep.subr.bf16.mxu0 0
        %2249 = vmatpush1.bf16.msra.mxu0 0
        %2250 = vmatprep.subr.bf16.mxu0 0
        %2251 = vmatpush1.bf16.msra.mxu0 0
        %2252 = vmatprep.subr.bf16.mxu0 0
        %2253 = vmatpush1.bf16.msra.mxu0 0
        %2254 = vmatprep.subr.bf16.mxu0 0
        %2255 = vmatpush1.bf16.msra.mxu0 0
        %2256 = vmatprep.mubr.bf16.mxu0 0
        %2257 = vmatmul.mubr.bf16.gmra.mrb[0].mxu0 %v2222
        %v2258 = vpop.f32.mrb[0].mxu0
        %v2259 = vadd.f32 0.0, %v2258
        %v2260 = vpop.f32.mrb[0].mxu0
        %v2261 = vpop.f32.mrb[0].mxu0
        %v2262 = vpop.f32.mrb[0].mxu0
        %2263 = vdwg.mxu0
        %2265 = vrot.lane.b32.xlu0 %v2037, 32
        %v2266 = vpop.permute.xlu0 %2265
        %2269 = vrot.lane.b32.xlu0 %v2148, 64
        %v2270 = vpop.permute.xlu0 %2269
        %2273 = vrot.lane.b32.xlu0 %v2259, 96
        %v2274 = vpop.permute.xlu0 %2273
        %v2276 = vsel %vm952, %v1923, %v2266
        %v2277 = vsel %vm1417, %v2276, %v2270
        %v2278 = vsel %vm1419, %v2277, %v2274
        %v2279 = vld [vmem:[#allocation16] sm:$0xf]
        %v2280 = vld [vmem:[#allocation16 + $0x4] sm:$0xf]
        %v2281 = vld [vmem:[#allocation16 + $0x8] sm:$0xf]
        %v2282 = vld [vmem:[#allocation16 + $0xc] sm:$0xf]
        %v2283 = vld [vmem:[#allocation16 + $0x10] sm:$0xf]
        %v2284 = vld [vmem:[#allocation16 + $0x14] sm:$0xf]
        %v2285 = vld [vmem:[#allocation16 + $0x18] sm:$0xf]
        %v2286 = vld [vmem:[#allocation16 + $0x1c] sm:$0xf]
        %v2287 = vld [vmem:[#allocation16 + $0x20] sm:$0xf]
        %v2288 = vld [vmem:[#allocation16 + $0x24] sm:$0xf]
        %v2289 = vld [vmem:[#allocation16 + $0x28] sm:$0xf]
        %v2290 = vld [vmem:[#allocation16 + $0x2c] sm:$0xf]
        %v2291 = vld [vmem:[#allocation16 + $0x30] sm:$0xf]
        %v2292 = vld [vmem:[#allocation16 + $0x34] sm:$0xf]
        %v2293 = vld [vmem:[#allocation16 + $0x38] sm:$0xf]
        %v2294 = vld [vmem:[#allocation16 + $0x3c] sm:$0xf]
        %v2295 = vpack.c.bf16 %v2278, %v2278
        %v2312 = vunpack.c.l.b16 %v2279
        %v2313 = vunpack.c.l.b16 %v2280
        %v2314 = vunpack.c.l.b16 %v2281
        %v2315 = vunpack.c.l.b16 %v2282
        %v2316 = vunpack.c.l.b16 %v2283
        %v2317 = vunpack.c.l.b16 %v2284
        %v2318 = vunpack.c.l.b16 %v2285
        %v2319 = vunpack.c.l.b16 %v2286
        %v2320 = vunpack.c.l.b16 %v2287
        %v2321 = vunpack.c.l.b16 %v2288
        %v2322 = vunpack.c.l.b16 %v2289
        %v2323 = vunpack.c.l.b16 %v2290
        %v2324 = vunpack.c.l.b16 %v2291
        %v2325 = vunpack.c.l.b16 %v2292
        %v2326 = vunpack.c.l.b16 %v2293
        %v2327 = vunpack.c.l.b16 %v2294
        %v2328 = vpack.c.b16 %v2313, %v2312
        %v2329 = vpack.c.b16 %v2315, %v2314
        %v2330 = vpack.c.b16 %v2317, %v2316
        %v2331 = vpack.c.b16 %v2319, %v2318
        %v2332 = vpack.c.b16 %v2321, %v2320
        %v2333 = vpack.c.b16 %v2323, %v2322
        %v2334 = vpack.c.b16 %v2325, %v2324
        %v2335 = vpack.c.b16 %v2327, %v2326
        %2344 = vmatprep.subr.bf16.mxu0 0
        %2345 = vmatpush1.bf16.msra.mxu0 %v2328
        %2346 = vmatprep.subr.bf16.mxu0 0
        %2347 = vmatpush1.bf16.msra.mxu0 %v2329
        %2348 = vmatprep.subr.bf16.mxu0 0
        %2349 = vmatpush1.bf16.msra.mxu0 %v2330
        %2350 = vmatprep.subr.bf16.mxu0 0
        %2351 = vmatpush1.bf16.msra.mxu0 %v2331
        %2352 = vmatprep.subr.bf16.mxu0 0
        %2353 = vmatpush1.bf16.msra.mxu0 %v2332
        %2354 = vmatprep.subr.bf16.mxu0 0
        %2355 = vmatpush1.bf16.msra.mxu0 %v2333
        %2356 = vmatprep.subr.bf16.mxu0 0
        %2357 = vmatpush1.bf16.msra.mxu0 %v2334
        %2358 = vmatprep.subr.bf16.mxu0 0
        %2359 = vmatpush1.bf16.msra.mxu0 %v2335
        %2360 = vmatprep.subr.bf16.mxu0 0
        %2361 = vmatpush1.bf16.msra.mxu0 0
        %2362 = vmatprep.subr.bf16.mxu0 0
        %2363 = vmatpush1.bf16.msra.mxu0 0
        %2364 = vmatprep.subr.bf16.mxu0 0
        %2365 = vmatpush1.bf16.msra.mxu0 0
        %2366 = vmatprep.subr.bf16.mxu0 0
        %2367 = vmatpush1.bf16.msra.mxu0 0
        %2368 = vmatprep.subr.bf16.mxu0 0
        %2369 = vmatpush1.bf16.msra.mxu0 0
        %2370 = vmatprep.subr.bf16.mxu0 0
        %2371 = vmatpush1.bf16.msra.mxu0 0
        %2372 = vmatprep.subr.bf16.mxu0 0
        %2373 = vmatpush1.bf16.msra.mxu0 0
        %2374 = vmatprep.subr.bf16.mxu0 0
        %2375 = vmatpush1.bf16.msra.mxu0 0
        %2376 = vmatprep.mubr.bf16.mxu0 0
        %2377 = vmatmul.mubr.bf16.gmra.mrb[0].mxu0 %v2295
        %v2378 = vpop.f32.mrb[0].mxu0
        %v2379 = vadd.f32 0.0, %v2378
        %v2380 = vpop.f32.mrb[0].mxu0
        %v2381 = vpop.f32.mrb[0].mxu0
        %v2382 = vpop.f32.mrb[0].mxu0
        %2383 = vdwg.mxu0
        %v2384 = vadd.f32 %v1531, %v2379
        %v2385 = vlaneseq
        %v2386 = vshrl.u32 %v2385, 7
        %v2387 = vsub.s32 5, %v2386
        %v2388 = vrot.slane %v662, %v2387
        %v2389 = vadd.f32 %v2384, %v2388
        %2390 = vadd.xlane.f32.xlu0 %v2389
        %v2391 = vpop.xlane.xlu0 %2390
        %v2392 = vmul.f32 %v2391, %v672
        %v2393 = vsub.f32 %v2389, %v2392
        %v2394 = vmul.f32 %v2393, %v2393
        %2395 = vadd.xlane.f32.xlu0 %v2394
        %v2396 = vpop.xlane.xlu0 %2395
        %v2397 = vmul.f32 %v2396, %v672
        %v2398 = vadd.f32 %v2397, 1e-12
        %v2399 = vrsqrt.pop %v2398
        %v2400 = vmul.f32 %v2393, %v2399
        %v2401 = vlaneseq
        %v2402 = vshrl.u32 %v2401, 7
        %v2403 = vsub.s32 4, %v2402
        %v2404 = vrot.slane %v661, %v2403
        %v2405 = vmul.f32 %v2400, %v2404
        %v2406 = vlaneseq
        %v2407 = vshrl.u32 %v2406, 7
        %v2408 = vsub.s32 5, %v2407
        %v2409 = vrot.slane %v661, %v2408
        %v2410 = vadd.f32 %v2405, %v2409
        %v2411 = vld [vmem:[#allocation17] sm:$0xff]
        %v2412 = vld [vmem:[#allocation17 + $0x8] sm:$0xff]
        %v2413 = vld [vmem:[#allocation17 + $0x10] sm:$0xff]
        %v2414 = vld [vmem:[#allocation17 + $0x18] sm:$0xff]
        %v2415 = vld [vmem:[#allocation17 + $0x20] sm:$0xff]
        %v2416 = vld [vmem:[#allocation17 + $0x28] sm:$0xff]
        %v2417 = vld [vmem:[#allocation17 + $0x30] sm:$0xff]
        %v2418 = vld [vmem:[#allocation17 + $0x38] sm:$0xff]
        %v2419 = vld [vmem:[#allocation17 + $0x40] sm:$0xff]
        %v2420 = vld [vmem:[#allocation17 + $0x48] sm:$0xff]
        %v2421 = vld [vmem:[#allocation17 + $0x50] sm:$0xff]
        %v2422 = vld [vmem:[#allocation17 + $0x58] sm:$0xff]
        %v2423 = vld [vmem:[#allocation17 + $0x60] sm:$0xff]
        %v2424 = vld [vmem:[#allocation17 + $0x68] sm:$0xff]
        %v2425 = vld [vmem:[#allocation17 + $0x70] sm:$0xff]
        %v2426 = vld [vmem:[#allocation17 + $0x78] sm:$0xff]
        %v2427 = vpack.c.bf16 %v2410, %v2410
        %v2428 = vld [vmem:[%s11] sm:$0x3]
        %v2430 = vlaneseq
        %v2431 = vshrl.u32 %v2430, 7
        %v2432 = vsub.s32 0, %v2431
        %v2433 = vrot.slane %v2428, %v2432
        %v2434 = vlaneseq
        %v2435 = vshrl.u32 %v2434, 7
        %v2436 = vsub.s32 1, %v2435
        %v2437 = vrot.slane %v2428, %v2436
        %v2456 = vunpack.c.l.b16 %v2411
        %v2457 = vunpack.c.h.b16 %v2411
        %v2458 = vunpack.c.l.b16 %v2412
        %v2459 = vunpack.c.h.b16 %v2412
        %v2460 = vunpack.c.l.b16 %v2413
        %v2461 = vunpack.c.h.b16 %v2413
        %v2462 = vunpack.c.l.b16 %v2414
        %v2463 = vunpack.c.h.b16 %v2414
        %v2464 = vunpack.c.l.b16 %v2415
        %v2465 = vunpack.c.h.b16 %v2415
        %v2466 = vunpack.c.l.b16 %v2416
        %v2467 = vunpack.c.h.b16 %v2416
        %v2468 = vunpack.c.l.b16 %v2417
        %v2469 = vunpack.c.h.b16 %v2417
        %v2470 = vunpack.c.l.b16 %v2418
        %v2471 = vunpack.c.h.b16 %v2418
        %v2472 = vunpack.c.l.b16 %v2419
        %v2473 = vunpack.c.h.b16 %v2419
        %v2474 = vunpack.c.l.b16 %v2420
        %v2475 = vunpack.c.h.b16 %v2420
        %v2476 = vunpack.c.l.b16 %v2421
        %v2477 = vunpack.c.h.b16 %v2421
        %v2478 = vunpack.c.l.b16 %v2422
        %v2479 = vunpack.c.h.b16 %v2422
        %v2480 = vunpack.c.l.b16 %v2423
        %v2481 = vunpack.c.h.b16 %v2423
        %v2482 = vunpack.c.l.b16 %v2424
        %v2483 = vunpack.c.h.b16 %v2424
        %v2484 = vunpack.c.l.b16 %v2425
        %v2485 = vunpack.c.h.b16 %v2425
        %v2486 = vunpack.c.l.b16 %v2426
        %v2487 = vunpack.c.h.b16 %v2426
        %v2488 = vpack.c.b16 %v2458, %v2456
        %v2489 = vpack.c.b16 %v2459, %v2457
        %v2490 = vpack.c.b16 %v2462, %v2460
        %v2491 = vpack.c.b16 %v2463, %v2461
        %v2492 = vpack.c.b16 %v2466, %v2464
        %v2493 = vpack.c.b16 %v2467, %v2465
        %v2494 = vpack.c.b16 %v2470, %v2468
        %v2495 = vpack.c.b16 %v2471, %v2469
        %v2496 = vpack.c.b16 %v2474, %v2472
        %v2497 = vpack.c.b16 %v2475, %v2473
        %v2498 = vpack.c.b16 %v2478, %v2476
        %v2499 = vpack.c.b16 %v2479, %v2477
        %v2500 = vpack.c.b16 %v2482, %v2480
        %v2501 = vpack.c.b16 %v2483, %v2481
        %v2502 = vpack.c.b16 %v2486, %v2484
        %v2503 = vpack.c.b16 %v2487, %v2485
        %2520 = vmatprep.subr.bf16.mxu0 %v2489
        %2521 = vmatpush1.bf16.msra.mxu0 %v2488
        %2522 = vmatprep.subr.bf16.mxu0 %v2491
        %2523 = vmatpush1.bf16.msra.mxu0 %v2490
        %2524 = vmatprep.subr.bf16.mxu0 %v2493
        %2525 = vmatpush1.bf16.msra.mxu0 %v2492
        %2526 = vmatprep.subr.bf16.mxu0 %v2495
        %2527 = vmatpush1.bf16.msra.mxu0 %v2494
        %2528 = vmatprep.subr.bf16.mxu0 %v2497
        %2529 = vmatpush1.bf16.msra.mxu0 %v2496
        %2530 = vmatprep.subr.bf16.mxu0 %v2499
        %2531 = vmatpush1.bf16.msra.mxu0 %v2498
        %2532 = vmatprep.subr.bf16.mxu0 %v2501
        %2533 = vmatpush1.bf16.msra.mxu0 %v2500
        %2534 = vmatprep.subr.bf16.mxu0 %v2503
        %2535 = vmatpush1.bf16.msra.mxu0 %v2502
        %2536 = vmatprep.subr.bf16.mxu0 0
        %2537 = vmatpush1.bf16.msra.mxu0 0
        %2538 = vmatprep.subr.bf16.mxu0 0
        %2539 = vmatpush1.bf16.msra.mxu0 0
        %2540 = vmatprep.subr.bf16.mxu0 0
        %2541 = vmatpush1.bf16.msra.mxu0 0
        %2542 = vmatprep.subr.bf16.mxu0 0
        %2543 = vmatpush1.bf16.msra.mxu0 0
        %2544 = vmatprep.subr.bf16.mxu0 0
        %2545 = vmatpush1.bf16.msra.mxu0 0
        %2546 = vmatprep.subr.bf16.mxu0 0
        %2547 = vmatpush1.bf16.msra.mxu0 0
        %2548 = vmatprep.subr.bf16.mxu0 0
        %2549 = vmatpush1.bf16.msra.mxu0 0
        %2550 = vmatprep.subr.bf16.mxu0 0
        %2551 = vmatpush1.bf16.msra.mxu0 0
        %2552 = vmatprep.mubr.bf16.mxu0 0
        %2553 = vmatmul.mubr.bf16.gmra.mrb[0].mxu0 %v2427
        %v2554 = vpop.f32.mrb[0].mxu0
        %v2555 = vadd.f32 %v2433, %v2554
        %v2556 = vpop.f32.mrb[0].mxu0
        %v2557 = vadd.f32 %v2437, %v2556
        %v2558 = vpop.f32.mrb[0].mxu0
        %v2559 = vpop.f32.mrb[0].mxu0
        %2560 = vdwg.mxu0
        %v2561 = vmax.f32 %v2555, 0.0
        %v2562 = vmax.f32 %v2557, 0.0
        %v2563 = vld [vmem:[#allocation19] sm:$0xf]
        %v2564 = vld [vmem:[#allocation19 + $0x4] sm:$0xf]
        %v2565 = vld [vmem:[#allocation19 + $0x8] sm:$0xf]
        %v2566 = vld [vmem:[#allocation19 + $0xc] sm:$0xf]
        %v2567 = vld [vmem:[#allocation19 + $0x10] sm:$0xf]
        %v2568 = vld [vmem:[#allocation19 + $0x14] sm:$0xf]
        %v2569 = vld [vmem:[#allocation19 + $0x18] sm:$0xf]
        %v2570 = vld [vmem:[#allocation19 + $0x1c] sm:$0xf]
        %v2571 = vld [vmem:[#allocation19 + $0x20] sm:$0xf]
        %v2572 = vld [vmem:[#allocation19 + $0x24] sm:$0xf]
        %v2573 = vld [vmem:[#allocation19 + $0x28] sm:$0xf]
        %v2574 = vld [vmem:[#allocation19 + $0x2c] sm:$0xf]
        %v2575 = vld [vmem:[#allocation19 + $0x30] sm:$0xf]
        %v2576 = vld [vmem:[#allocation19 + $0x34] sm:$0xf]
        %v2577 = vld [vmem:[#allocation19 + $0x38] sm:$0xf]
        %v2578 = vld [vmem:[#allocation19 + $0x3c] sm:$0xf]
        %v2579 = vld [vmem:[#allocation19 + $0x40] sm:$0xf]
        %v2580 = vld [vmem:[#allocation19 + $0x44] sm:$0xf]
        %v2581 = vld [vmem:[#allocation19 + $0x48] sm:$0xf]
        %v2582 = vld [vmem:[#allocation19 + $0x4c] sm:$0xf]
        %v2583 = vld [vmem:[#allocation19 + $0x50] sm:$0xf]
        %v2584 = vld [vmem:[#allocation19 + $0x54] sm:$0xf]
        %v2585 = vld [vmem:[#allocation19 + $0x58] sm:$0xf]
        %v2586 = vld [vmem:[#allocation19 + $0x5c] sm:$0xf]
        %v2587 = vld [vmem:[#allocation19 + $0x60] sm:$0xf]
        %v2588 = vld [vmem:[#allocation19 + $0x64] sm:$0xf]
        %v2589 = vld [vmem:[#allocation19 + $0x68] sm:$0xf]
        %v2590 = vld [vmem:[#allocation19 + $0x6c] sm:$0xf]
        %v2591 = vld [vmem:[#allocation19 + $0x70] sm:$0xf]
        %v2592 = vld [vmem:[#allocation19 + $0x74] sm:$0xf]
        %v2593 = vld [vmem:[#allocation19 + $0x78] sm:$0xf]
        %v2594 = vld [vmem:[#allocation19 + $0x7c] sm:$0xf]
        %v2595 = vpack.c.bf16 %v2561, %v2561
        %v2596 = vpack.c.bf16 %v2562, %v2562
        %v2629 = vunpack.c.l.b16 %v2563
        %v2630 = vunpack.c.l.b16 %v2564
        %v2631 = vunpack.c.l.b16 %v2565
        %v2632 = vunpack.c.l.b16 %v2566
        %v2633 = vunpack.c.l.b16 %v2567
        %v2634 = vunpack.c.l.b16 %v2568
        %v2635 = vunpack.c.l.b16 %v2569
        %v2636 = vunpack.c.l.b16 %v2570
        %v2637 = vunpack.c.l.b16 %v2571
        %v2638 = vunpack.c.l.b16 %v2572
        %v2639 = vunpack.c.l.b16 %v2573
        %v2640 = vunpack.c.l.b16 %v2574
        %v2641 = vunpack.c.l.b16 %v2575
        %v2642 = vunpack.c.l.b16 %v2576
        %v2643 = vunpack.c.l.b16 %v2577
        %v2644 = vunpack.c.l.b16 %v2578
        %v2645 = vunpack.c.l.b16 %v2579
        %v2646 = vunpack.c.l.b16 %v2580
        %v2647 = vunpack.c.l.b16 %v2581
        %v2648 = vunpack.c.l.b16 %v2582
        %v2649 = vunpack.c.l.b16 %v2583
        %v2650 = vunpack.c.l.b16 %v2584
        %v2651 = vunpack.c.l.b16 %v2585
        %v2652 = vunpack.c.l.b16 %v2586
        %v2653 = vunpack.c.l.b16 %v2587
        %v2654 = vunpack.c.l.b16 %v2588
        %v2655 = vunpack.c.l.b16 %v2589
        %v2656 = vunpack.c.l.b16 %v2590
        %v2657 = vunpack.c.l.b16 %v2591
        %v2658 = vunpack.c.l.b16 %v2592
        %v2659 = vunpack.c.l.b16 %v2593
        %v2660 = vunpack.c.l.b16 %v2594
        %v2661 = vpack.c.b16 %v2630, %v2629
        %v2662 = vpack.c.b16 %v2632, %v2631
        %v2663 = vpack.c.b16 %v2634, %v2633
        %v2664 = vpack.c.b16 %v2636, %v2635
        %v2665 = vpack.c.b16 %v2638, %v2637
        %v2666 = vpack.c.b16 %v2640, %v2639
        %v2667 = vpack.c.b16 %v2642, %v2641
        %v2668 = vpack.c.b16 %v2644, %v2643
        %v2669 = vpack.c.b16 %v2646, %v2645
        %v2670 = vpack.c.b16 %v2648, %v2647
        %v2671 = vpack.c.b16 %v2650, %v2649
        %v2672 = vpack.c.b16 %v2652, %v2651
        %v2673 = vpack.c.b16 %v2654, %v2653
        %v2674 = vpack.c.b16 %v2656, %v2655
        %v2675 = vpack.c.b16 %v2658, %v2657
        %v2676 = vpack.c.b16 %v2660, %v2659
        %2693 = vmatprep.subr.bf16.mxu0 0
        %2694 = vmatpush1.bf16.msra.mxu0 %v2661
        %2695 = vmatprep.subr.bf16.mxu0 0
        %2696 = vmatpush1.bf16.msra.mxu0 %v2662
        %2697 = vmatprep.subr.bf16.mxu0 0
        %2698 = vmatpush1.bf16.msra.mxu0 %v2663
        %2699 = vmatprep.subr.bf16.mxu0 0
        %2700 = vmatpush1.bf16.msra.mxu0 %v2664
        %2701 = vmatprep.subr.bf16.mxu0 0
        %2702 = vmatpush1.bf16.msra.mxu0 %v2665
        %2703 = vmatprep.subr.bf16.mxu0 0
        %2704 = vmatpush1.bf16.msra.mxu0 %v2666
        %2705 = vmatprep.subr.bf16.mxu0 0
        %2706 = vmatpush1.bf16.msra.mxu0 %v2667
        %2707 = vmatprep.subr.bf16.mxu0 0
        %2708 = vmatpush1.bf16.msra.mxu0 %v2668
        %2709 = vmatprep.subr.bf16.mxu0 0
        %2710 = vmatpush1.bf16.msra.mxu0 %v2669
        %2711 = vmatprep.subr.bf16.mxu0 0
        %2712 = vmatpush1.bf16.msra.mxu0 %v2670
        %2713 = vmatprep.subr.bf16.mxu0 0
        %2714 = vmatpush1.bf16.msra.mxu0 %v2671
        %2715 = vmatprep.subr.bf16.mxu0 0
        %2716 = vmatpush1.bf16.msra.mxu0 %v2672
        %2717 = vmatprep.subr.bf16.mxu0 0
        %2718 = vmatpush1.bf16.msra.mxu0 %v2673
        %2719 = vmatprep.subr.bf16.mxu0 0
        %2720 = vmatpush1.bf16.msra.mxu0 %v2674
        %2721 = vmatprep.subr.bf16.mxu0 0
        %2722 = vmatpush1.bf16.msra.mxu0 %v2675
        %2723 = vmatprep.subr.bf16.mxu0 0
        %2724 = vmatpush1.bf16.msra.mxu0 %v2676
        %2725 = vmatprep.mubr.bf16.mxu0 %v2596
        %2726 = vmatmul.mubr.bf16.gmra.mrb[0].mxu0 %v2595
        %v2727 = vpop.f32.mrb[0].mxu0
        %v2728 = vadd.f32 0.0, %v2727
        %v2729 = vpop.f32.mrb[0].mxu0
        %v2730 = vpop.f32.mrb[0].mxu0
        %v2731 = vpop.f32.mrb[0].mxu0
        %2732 = vdwg.mxu0
        %v2733 = vadd.f32 %v2389, %v2728
        %v2734 = vlaneseq
        %v2735 = vshrl.u32 %v2734, 7
        %v2736 = vsub.s32 6, %v2735
        %v2737 = vrot.slane %v662, %v2736
        %v2738 = vadd.f32 %v2733, %v2737
        %2739 = vst [vmem:[%s656] sm:$0xff] %v2738
        %s2740 = sand.u32 %s338, 1
        %s2741 = scalar_lea.sflag [#allocation4], %s2740
        %s2742 = sand.u32 %s338, 1
        %s2743 = smul.addr %s2742, 8
        %s2744 = scalar_lea.vmem [#allocation20], %s2743
        // Predicated region
        $region117: #{tpu_custom_call.1} parent=71 // pred_check
          %p2745 = pneg %p348
        $region118: #{tpu_custom_call.1} parent=71 // pred_check_branch
          %2747 = sbr.rel (%p2745) target = $region120
        $region119: #{tpu_custom_call.1} parent=71 // pred_region
          %s2749 = ssub.s32 128, 128
          %2750 = vsyncadd %s2741, %s2749
          %s2751 = smul.addr %s37, 128
          %s2752 = scalar_lea.hbm %s13, %s2751
          %s2754 = sshll.u32 %s2744, 4
          %s2755 = int_to_ptr.vmem [resolvable:$true] %s2754
          %2757 = dma.vmem_to_hbm [thread:$0]  %s2755, 128, %s2752, %s2741
        $region120: #{tpu_custom_call.1} parent=71 // pred_fallthru
          _
      $region72: #{tpu_custom_call.1} parent=5 // pred_fallthru
        _
      %p2758 = scmp.le.s32.totalorder 2, %s32
      // Predicated region
      $region121: #{tpu_custom_call.1} parent=5 // pred_check
        %p2759 = pneg %p2758
      $region122: #{tpu_custom_call.1} parent=5 // pred_check_branch
        %2761 = sbr.rel (%p2759) target = $region124
      $region123: #{tpu_custom_call.1} parent=5 // pred_region
        %s2762 = ssub.s32 %s32, 2
        // Predicated region
        $region125: #{tpu_custom_call.1} parent=123 // pred_check
          %p2763 = pneg %p354
        $region126: #{tpu_custom_call.1} parent=123 // pred_check_branch
          %2765 = sbr.rel (%p2763) target = $region128
        $region127: #{tpu_custom_call.1} parent=123 // pred_region
          %s2766 = sand.u32 %s339, 1
          %s2767 = scalar_lea.sflag [#allocation4], %s2766
          %s2768 = sand.u32 %s339, 1
          %s2769 = smul.addr %s2768, 8
          %s2770 = scalar_lea.vmem [#allocation20], %s2769
          %2771 = dma.done %s2767, 128
        $region128: #{tpu_custom_call.1} parent=123 // pred_fallthru
          _
      $region124: #{tpu_custom_call.1} parent=5 // pred_fallthru
        _
    $region6: #{tpu_custom_call.1} parent=1 // loop_footer
      %s36 = sadd.s32 1, %s32
    $region7: #{tpu_custom_call.1} parent=1 // loop_footer_branch
      %31 = sbr.rel target = $region3
    $region8: #{tpu_custom_call.1} parent=1 // loop_exit
      _
    %2772 = vsyncpa [#allocation3], 1
    %s2773 = scalar_lea.sflag [#allocation3], 1
    %2774 = vsyncpa %s2773, 1
    %2775 = vsyncpa [#allocation6], 1
    %s2776 = scalar_lea.sflag [#allocation6], 1
    %2777 = vsyncpa %s2776, 1
    %2778 = vsyncpa [#allocation9], 1
    %2779 = vsyncpa [#allocation12], 1
    %2780 = vsyncpa [#allocation15], 1
    %2781 = vsyncpa [#allocation18], 1
    %2782 = vsyncpa [#allocation4], 1
    %s2783 = scalar_lea.sflag [#allocation4], 1
    %2784 = vsyncpa %s2783, 1

</llo_original>
